<compile_context>
chip_gen: v7x
topology: tpu7x:2x2x1
jax: 0.10.0
libtpu: 0.0.40
codegen_flags: <defaults>
</compile_context>

<pallas_src>
import functools
import numpy as np

import jax
import jax.numpy as jnp
from jax import lax
from jax.experimental import pallas as pl
from jax.experimental.pallas import tpu as pltpu


_VMEM_LIMIT = 48 * 1024 * 1024  # < v7x 64 MiB per-TC VMEM; fine on v5e/v6e (128 MiB)


# ------------------------------ in-kernel helpers ---------------------------

def _silu_conv(h, cw_ref, hp_ref, L, pad):
    """SiLU -> (h + depthwise_conv1d(h)) using a zero-padded VMEM scratch.
    Dropout = identity."""
    h = h * jax.nn.sigmoid(h)                                # SiLU
    C = h.shape[-1]
    K = cw_ref.shape[0]
    hp_ref[pl.ds(0, pad), :] = jnp.zeros((pad, C), jnp.float32)
    hp_ref[pl.ds(pad, L), :] = h
    hp_ref[pl.ds(pad + L, pad), :] = jnp.zeros((pad, C), jnp.float32)
    acc = h                                                  # conv residual folded in
    for k in range(K):                                       # static unroll (K = 17)
        acc = acc + hp_ref[pl.ds(k, L), :] * cw_ref[k, :]
    return acc


# ----------------------------- Pallas kernels ------------------------------

def fused_proj_kernel(x_ref, wt_ref, wb_ref, b_ref, cw_ref, scales_ref, trig_ref,
                      perm_ref, slab_ref, linkvu_ref, hp_ref,
                      *, L, Lp, Dh, half, pad, inv_n):
    """token_shift + shared ScaleNorm + (to_hidden | to_qk) wide linear + SiLU + depthwise
    conv, written as one group-padded bf16 slab [v|u|qk]; also computes the global
    linear-attention statistic lin_kvu = lin_k^T [v|u] / n over the unpadded rows."""
    x = x_ref[0]                                             # (L, Din) f32
    xp = x[:, half:]
    # token shift: first-half channels delayed by one time step (row 0 -> 0), built through
    # the conv scratch (no XLA concatenate / extra HBM round-trip).
    hp_ref[pl.ds(0, 1), pl.ds(0, half)] = jnp.zeros((1, half), jnp.float32)
    hp_ref[pl.ds(1, L), pl.ds(0, half)] = x[:, :half]
    xs = hp_ref[pl.ds(0, L), pl.ds(0, half)]                 # shifted first half
    # shared ScaleNorm over the shifted input (gains folded into the weights)
    din = 2 * half
    ss = jnp.sum(xs * xs, axis=-1, keepdims=True) + jnp.sum(xp * xp, axis=-1, keepdims=True)
    factor = jnp.minimum(lax.rsqrt(ss) * (din ** 0.5), 1e5)
    h = (jnp.dot((xs * factor).astype(jnp.bfloat16), wt_ref[...],
                 preferred_element_type=jnp.float32)
         + jnp.dot((xp * factor).astype(jnp.bfloat16), wb_ref[...],
                   preferred_element_type=jnp.float32)
         + b_ref[0])
    acc = _silu_conv(h, cw_ref, hp_ref, L, pad)              # (L, Dh + dk) f32
    Cc = acc.shape[-1]
    dk = Cc - Dh
    if Lp > L:                                               # static: zero group padding
        slab_ref[0, pl.ds(L, Lp - L), :] = jnp.zeros((Lp - L, Cc), jnp.bfloat16)
    slab_ref[0, pl.ds(0, L), :] = acc.astype(jnp.bfloat16)
    # lin_k head (OffsetScale head 3) + interleaved partial rotary over valid rows only
    qk = acc[:, Dh:]
    h3 = qk * scales_ref[3, :] + scales_ref[7, :]
    trig = trig_ref[pl.ds(0, L), :]
    cos = trig[:, :dk]
    sin_s = trig[:, dk:]
    lin_k = h3 * cos + jnp.dot(h3.astype(jnp.bfloat16), perm_ref[...],
                               preferred_element_type=jnp.float32) * sin_s
    hid = acc[:, :Dh]                                        # [v | u]
    linkvu_ref[0] = lax.dot_general(
        lin_k.astype(jnp.bfloat16), hid.astype(jnp.bfloat16),
        (((0,), (0,)), ((), ())), preferred_element_type=jnp.float32) * inv_n


def group_attn_kernel(slab_ref, linkvu_ref, scales_ref, trig_ref, perm_ref, o_ref,
                      *, ng, group_size, e, Dh):
    """NG groups of quadratic attention + global linear attention + output gating, batched
    in one grid step.  Rotary is hoisted (single pair-swap matmul; heads are pure FMAs).
    Padded rows carry vu = 0 so they contribute nothing (reference semantics)."""
    rows = ng * group_size
    slab = slab_ref[0]                                       # (rows, Dh + dk) bf16
    vu = slab[:, :Dh].astype(jnp.float32)                    # [v | u]
    qk = slab[:, Dh:].astype(jnp.float32)
    dk = qk.shape[-1]
    trig = trig_ref[...]
    cos = trig[:, :dk]
    sin_s = trig[:, dk:]
    A = qk * cos
    Bm = jnp.dot(qk.astype(jnp.bfloat16), perm_ref[...],
                 preferred_element_type=jnp.float32) * sin_s

    def head(i):                                             # rotary(qk*gamma_i + beta_i)
        return (A * scales_ref[i, :] + cos * scales_ref[4 + i, :]
                + Bm * scales_ref[8 + i, :] + sin_s * scales_ref[12 + i, :])

    quad_q, lin_q, quad_k = head(0), head(1), head(2)

    qg = quad_q.reshape(ng, group_size, dk).astype(jnp.bfloat16)
    kg = quad_k.reshape(ng, group_size, dk).astype(jnp.bfloat16)
    vug = vu.reshape(ng, group_size, 2 * e).astype(jnp.bfloat16)

    # per-group quadratic attention: relu(q k^T / g)^2, fused [v|u] matmul (batched over NG)
    sim = lax.dot_general(qg, kg, (((2,), (2,)), ((0,), (0,))),
                          preferred_element_type=jnp.float32) * (1.0 / group_size)
    attn = jnp.square(jnp.maximum(sim, 0.0))
    att = lax.dot_general(attn.astype(jnp.bfloat16), vug, (((2,), (1,)), ((0,), (0,))),
                          preferred_element_type=jnp.float32)
    att = att.reshape(rows, 2 * e)
    # global (non-causal) linear attention: lin_q @ [lin_kv | lin_ku]
    att = att + jnp.dot(lin_q.astype(jnp.bfloat16), linkvu_ref[0].astype(jnp.bfloat16),
                        preferred_element_type=jnp.float32)
    att_v, att_u = att[:, :e], att[:, e:]
    v, u = vu[:, :e], vu[:, e:]
    # gating:  out = (att_u * v) * sigmoid(att_v * u)
    o_ref[0] = ((att_u * v) * jax.nn.sigmoid(att_v * u)).astype(jnp.bfloat16)


def ffconvm_out_kernel(gate_ref, res_ref, w_ref, b_ref, cw_ref, o_ref, hp_ref,
                       *, L, pad):
    """to_out FFConvM with the outer residual (x + to_out(gate)) fused.
    Reads only the first L (unpadded) rows of the group-padded gate tensor."""
    x = gate_ref[0, pl.ds(0, L), :].astype(jnp.float32)      # (L, e)
    din = x.shape[-1]
    ss = jnp.sum(x * x, axis=-1, keepdims=True)
    factor = jnp.minimum(lax.rsqrt(ss) * (din ** 0.5), 1e5)
    h = jnp.dot((x * factor).astype(jnp.bfloat16), w_ref[...],
                preferred_element_type=jnp.float32) + b_ref[0]
    acc = _silu_conv(h, cw_ref, hp_ref, L, pad)
    o_ref[0] = res_ref[0] + acc


def layernorm_kernel(x_ref, w_ref, b_ref, o_ref):
    x = x_ref[0]                                             # (L, D)
    mean = jnp.mean(x, axis=-1, keepdims=True)
    xc = x - mean
    var = jnp.mean(xc * xc, axis=-1, keepdims=True)
    o_ref[0] = xc * lax.rsqrt(var + 1e-6) * w_ref[0] + b_ref[0]


# ------------------------------ pallas_call wrappers ------------------------

def _pick_ng(num_groups, group_size, max_rows=512):
    """Largest divisor of num_groups with NG*group_size <= max_rows, preferring an MXU-
    friendly multiple of 256 rows."""
    divisors = [d for d in range(1, num_groups + 1)
                if num_groups % d == 0 and d * group_size <= max_rows]
    if not divisors:
        return 1
    pref = [d for d in divisors if (d * group_size) % 256 == 0]
    return max(pref) if pref else max(divisors)


def fused_projection(x, bp, trig, perm_bf16, L, Lp):
    B, _, Din = x.shape
    Dh = bp["hid_dim"]
    Cc = bp["proj_b"].shape[1]                               # Dh + dk
    dk = Cc - Dh
    K = bp["proj_cw"].shape[0]
    pad = (K - 1) // 2
    half = Din // 2
    kern = functools.partial(fused_proj_kernel, L=L, Lp=Lp, Dh=Dh, half=half,
                             pad=pad, inv_n=1.0 / L)
    # TODO(synk): for very long sequences, additionally tile the L dimension with an
    # 8-row conv halo and accumulate linkvu across sequence tiles (VMEM on v7x).
    return pl.pallas_call(
        kern,
        out_shape=(jax.ShapeDtypeStruct((B, Lp, Cc), jnp.bfloat16),
                   jax.ShapeDtypeStruct((B, dk, Dh), jnp.float32)),
        grid=(B,),
        in_specs=[
            pl.BlockSpec((1, L, Din), lambda b: (b, 0, 0)),
            pl.BlockSpec((half, Cc), lambda b: (0, 0)),
            pl.BlockSpec((half, Cc), lambda b: (0, 0)),
            pl.BlockSpec((1, Cc), lambda b: (0, 0)),
            pl.BlockSpec((K, Cc), lambda b: (0, 0)),
            pl.BlockSpec((16, dk), lambda b: (0, 0)),
            pl.BlockSpec((Lp, 2 * dk), lambda b: (0, 0)),
            pl.BlockSpec((dk, dk), lambda b: (0, 0)),
        ],
        out_specs=(
            pl.BlockSpec((1, Lp, Cc), lambda b: (b, 0, 0)),
            pl.BlockSpec((1, dk, Dh), lambda b: (b, 0, 0)),
        ),
        scratch_shapes=[pltpu.VMEM((L + 2 * pad, Cc), jnp.float32)],
        compiler_params=pltpu.CompilerParams(
            dimension_semantics=("parallel",), vmem_limit_bytes=_VMEM_LIMIT),
    )(x, bp["proj_w_top"], bp["proj_w_bot"], bp["proj_b"], bp["proj_cw"],
      bp["scales"], trig, perm_bf16)


def attention_gate(slab, linkvu, bp, trig, perm_bf16, group_size):
    B, Lp, Cc = slab.shape
    Dh = bp["hid_dim"]
    dk = Cc - Dh
    e = Dh // 2
    G = Lp // group_size
    ng = _pick_ng(G, group_size)
    rows = ng * group_size
    kern = functools.partial(group_attn_kernel, ng=ng, group_size=group_size, e=e, Dh=Dh)
    return pl.pallas_call(
        kern,
        out_shape=jax.ShapeDtypeStruct((B, Lp, e), jnp.bfloat16),
        grid=(B, G // ng),
        in_specs=[
            pl.BlockSpec((1, rows, Cc), lambda b, t: (b, t, 0)),
            pl.BlockSpec((1, dk, Dh), lambda b, t: (b, 0, 0)),
            pl.BlockSpec((16, dk), lambda b, t: (0, 0)),
            pl.BlockSpec((rows, 2 * dk), lambda b, t: (t, 0)),
            pl.BlockSpec((dk, dk), lambda b, t: (0, 0)),
        ],
        out_specs=pl.BlockSpec((1, rows, e), lambda b, t: (b, t, 0)),
        compiler_params=pltpu.CompilerParams(
            dimension_semantics=("parallel", "parallel"),
            vmem_limit_bytes=_VMEM_LIMIT),
    )(slab, linkvu, bp["scales"], trig, perm_bf16)


def ffconvm_out(gate, x, bp):
    B, L, D = x.shape
    Lp, e = gate.shape[1], gate.shape[2]
    K = bp["out_cw"].shape[0]
    pad = (K - 1) // 2
    kern = functools.partial(ffconvm_out_kernel, L=L, pad=pad)
    return pl.pallas_call(
        kern,
        out_shape=jax.ShapeDtypeStruct((B, L, D), jnp.float32),
        grid=(B,),
        in_specs=[
            pl.BlockSpec((1, Lp, e), lambda b: (b, 0, 0)),
            pl.BlockSpec((1, L, D), lambda b: (b, 0, 0)),
            pl.BlockSpec((e, D), lambda b: (0, 0)),
            pl.BlockSpec((1, D), lambda b: (0, 0)),
            pl.BlockSpec((K, D), lambda b: (0, 0)),
        ],
        out_specs=pl.BlockSpec((1, L, D), lambda b: (b, 0, 0)),
        scratch_shapes=[pltpu.VMEM((L + 2 * pad, D), jnp.float32)],
        compiler_params=pltpu.CompilerParams(
            dimension_semantics=("parallel",), vmem_limit_bytes=_VMEM_LIMIT),
    )(gate, x, bp["out_w"], bp["out_b"], bp["out_cw"])


def layernorm(x, w, b):
    B, L, D = x.shape
    return pl.pallas_call(
        layernorm_kernel,
        out_shape=jax.ShapeDtypeStruct((B, L, D), jnp.float32),
        grid=(B,),
        in_specs=[
            pl.BlockSpec((1, L, D), lambda i: (i, 0, 0)),
            pl.BlockSpec((1, D), lambda i: (0, 0)),
            pl.BlockSpec((1, D), lambda i: (0, 0)),
        ],
        out_specs=pl.BlockSpec((1, L, D), lambda i: (i, 0, 0)),
        compiler_params=pltpu.CompilerParams(dimension_semantics=("parallel",)),
    )(x, w, b)


# --------------------------------- JAX glue ---------------------------------

def rotary_tables(lp, dk, rot_dim, theta=10000.0):
    """Packed cos|sign-folded-sin table and pairwise-swap permutation (interleaved rotary)."""
    inv_freq = 1.0 / (theta ** (np.arange(0, rot_dim, 2)[: rot_dim // 2].astype(np.float32) / rot_dim))
    freqs = np.arange(lp, dtype=np.float32)[:, None] * inv_freq[None, :]
    freqs = np.repeat(freqs, 2, axis=-1)                     # [f0,f0,f1,f1,...]
    cos = np.ones((lp, dk), np.float32)
    sin_s = np.zeros((lp, dk), np.float32)
    cos[:, :rot_dim] = np.cos(freqs)
    sign = np.tile(np.array([-1.0, 1.0], np.float32), rot_dim // 2)
    sin_s[:, :rot_dim] = np.sin(freqs) * sign
    perm = np.zeros((dk, dk), np.float32)
    for i in range(rot_dim // 2):                            # swap adjacent pairs
        perm[2 * i + 1, 2 * i] = 1.0
        perm[2 * i, 2 * i + 1] = 1.0
    trig = np.concatenate([cos, sin_s], axis=-1)             # (lp, 2*dk)
    return jnp.asarray(trig), jnp.asarray(perm), jnp.asarray(perm, dtype=jnp.bfloat16)


def prepare_block(p, perm):
    """Fold ScaleNorm gains into the linear weights, concatenate to_hidden/to_qk into one
    wide projection (split top/bottom for the fused token shift), cast matmul weights to
    bf16, pack OffsetScale tables (with swapped copies for the hoisted rotary)."""
    w_h = p["to_hidden"]["w"] * p["to_hidden"]["g"][0, 0]
    w_q = p["to_qk"]["w"] * p["to_qk"]["g"][0, 0]
    w = jnp.concatenate([w_h, w_q], axis=1).astype(jnp.bfloat16)
    half = w.shape[0] // 2
    gamma, beta = p["gamma"], p["beta"]
    return {
        "proj_w_top": w[:half],
        "proj_w_bot": w[half:],
        "proj_b": jnp.concatenate([p["to_hidden"]["b"], p["to_qk"]["b"]], axis=1),
        "proj_cw": jnp.concatenate([p["to_hidden"]["conv_w"], p["to_qk"]["conv_w"]], axis=1),
        "hid_dim": p["to_hidden"]["w"].shape[1],
        "scales": jnp.concatenate(
            [gamma, beta, jnp.dot(gamma, perm), jnp.dot(beta, perm)], axis=0),
        "out_w": (p["to_out"]["w"] * p["to_out"]["g"][0, 0]).astype(jnp.bfloat16),
        "out_b": p["to_out"]["b"],
        "out_cw": p["to_out"]["conv_w"],
    }


def flash_block(x, bp, *, group_size, trig, perm_bf16, L, Lp):
    """One FLASH_ShareA_FFConvM layer (non-causal)."""
    slab, linkvu = fused_projection(x, bp, trig, perm_bf16, L, Lp)
    gate = attention_gate(slab, linkvu, bp, trig, perm_bf16, group_size)
    return ffconvm_out(gate, x, bp)                          # x + to_out(gate), fused


def mossformer_m2_forward(src, params, *, group_size):
    B, L, D = src.shape
    Lp = L + ((-L) % group_size)
    dk = params["blocks"][0]["to_qk"]["w"].shape[1]
    rot_dim = min(32, dk)
    trig, perm_f32, perm_bf16 = rotary_tables(Lp, dk, rot_dim)
    x = src
    for p in params["blocks"]:
        bp = prepare_block(p, perm_f32)
        x = flash_block(x, bp, group_size=group_size, trig=trig, perm_bf16=perm_bf16,
                        L=L, Lp=Lp)
    return layernorm(x, params["norm_w"], params["norm_b"])


# --------------------------- deterministic params ---------------------------

def init_params(key, num_blocks, d_model, qk_dim, expansion_factor=4.0, conv_k=17):
    hidden = int(d_model * expansion_factor)
    out_in = d_model * int(expansion_factor // 2)
    del out_in  # equals hidden // 2

    def ffconvm_params(k, din, dout):
        k1, k2, k3 = jax.random.split(k, 3)
        return {
            "g": jnp.ones((1, 1), jnp.float32),                               # ScaleNorm g
            "w": 0.05 * jax.random.normal(k1, (din, dout), jnp.float32),      # Linear
            "b": 0.01 * jax.random.normal(k2, (1, dout), jnp.float32),
            "conv_w": 0.1 * jax.random.normal(k3, (conv_k, dout), jnp.float32),  # depthwise
        }

    blocks = []
    for _ in range(num_blocks):
        key, k1, k2, k3, k4 = jax.random.split(key, 5)
        blocks.append({
            "to_hidden": ffconvm_params(k1, d_model, hidden),
            "to_qk": ffconvm_params(k2, d_model, qk_dim),
            "gamma": 0.02 * jax.random.normal(k3, (4, qk_dim), jnp.float32),  # OffsetScale
            "beta": jnp.zeros((4, qk_dim), jnp.float32),
            "to_out": ffconvm_params(k4, hidden // 2, d_model),
        })
    return {
        "blocks": blocks,
        "norm_w": jnp.ones((1, d_model), jnp.float32),                        # LayerNorm
        "norm_b": jnp.zeros((1, d_model), jnp.float32),
    }


# ----------------------------------- main ------------------------------------

if __name__ == "__main__":
    # small shapes: B=2, L=12 time points, d_model=64, qk_dim=32, group_size=8
    # (L not a multiple of group_size exercises the group-padding path)
    B, L, D = 2, 12, 64
    num_blocks, group_size, qk_dim = 2, 8, 32

    key = jax.random.PRNGKey(0)
    kx, kp = jax.random.split(key)
    src = jax.random.normal(kx, (B, L, D), jnp.float32)
    params = init_params(kp, num_blocks, D, qk_dim)

    fwd = jax.jit(functools.partial(mossformer_m2_forward, group_size=group_size))
    out = jax.block_until_ready(fwd(src, params))

    assert out.shape == (B, L, D)
    assert bool(jnp.all(jnp.isfinite(out)))
    # TODO(synk): nn.Dropout paths are eval-mode identity (no train-time RNG dropout).
    print("KERNEL_OK")
</pallas_src>

<mosaic_0001>
module attributes {stable_mosaic.version = 11 : i64} {
  func.func @group_attn_kernel(%arg0: i32, %arg1: i32, %arg2: memref<1x16x288xbf16, #tpu.memory_space<vmem>>, %arg3: memref<1x32x256xf32, #tpu.memory_space<vmem>>, %arg4: memref<16x32xf32, #tpu.memory_space<vmem>>, %arg5: memref<16x64xf32, #tpu.memory_space<vmem>>, %arg6: memref<32x32xbf16, #tpu.memory_space<vmem>>, %arg7: memref<1x16x128xbf16, #tpu.memory_space<vmem>>) attributes {dimension_semantics = [#tpu.dimension_semantics<parallel>, #tpu.dimension_semantics<parallel>], iteration_bounds = array<i64: 2, 1>, scalar_prefetch = 0 : i64, scratch_operands = 0 : i64, tpu.core_type = #tpu.core_type<tc>, window_params = [{transform_indices = @transform_0, window_bounds = array<i64: 1, 16, 288>}, {transform_indices = @transform_1, window_bounds = array<i64: 1, 32, 256>}, {pipeline_mode = #tpu.pipeline_mode<synchronous>, transform_indices = @transform_2, window_bounds = array<i64: 16, 32>}, {transform_indices = @transform_3, window_bounds = array<i64: 16, 64>}, {pipeline_mode = #tpu.pipeline_mode<synchronous>, transform_indices = @transform_4, window_bounds = array<i64: 32, 32>}, {transform_indices = @transform_5, window_bounds = array<i64: 1, 16, 128>}]} {
    %c0 = arith.constant 0 : index
    %c0_0 = arith.constant 0 : index
    %c0_1 = arith.constant 0 : index
    %0 = vector.load %arg2[%c0, %c0_0, %c0_1] : memref<1x16x288xbf16, #tpu.memory_space<vmem>>, vector<1x16x288xbf16>
    %1 = vector.shape_cast %0 : vector<1x16x288xbf16> to vector<16x288xbf16>
    %2 = vector.extract_strided_slice %1 {offsets = [0, 0], sizes = [16, 256], strides = [1, 1]} : vector<16x288xbf16> to vector<16x256xbf16>
    %3 = arith.extf %2 : vector<16x256xbf16> to vector<16x256xf32>
    %4 = vector.extract_strided_slice %1 {offsets = [0, 256], sizes = [16, 32], strides = [1, 1]} : vector<16x288xbf16> to vector<16x32xbf16>
    %5 = arith.extf %4 : vector<16x32xbf16> to vector<16x32xf32>
    %c0_2 = arith.constant 0 : index
    %c0_3 = arith.constant 0 : index
    %6 = vector.load %arg5[%c0_2, %c0_3] : memref<16x64xf32, #tpu.memory_space<vmem>>, vector<16x64xf32>
    %7 = vector.extract_strided_slice %6 {offsets = [0, 0], sizes = [16, 32], strides = [1, 1]} : vector<16x64xf32> to vector<16x32xf32>
    %8 = vector.extract_strided_slice %6 {offsets = [0, 32], sizes = [16, 32], strides = [1, 1]} : vector<16x64xf32> to vector<16x32xf32>
    %9 = arith.mulf %5, %7 : vector<16x32xf32>
    %10 = arith.truncf %5 : vector<16x32xf32> to vector<16x32xbf16>
    %c0_4 = arith.constant 0 : index
    %c0_5 = arith.constant 0 : index
    %11 = vector.load %arg6[%c0_4, %c0_5] : memref<32x32xbf16, #tpu.memory_space<vmem>>, vector<32x32xbf16>
    %cst = arith.constant dense<0.000000e+00> : vector<16x32xf32>
    %12 = tpu.matmul %10, %11, %cst {dimension_numbers = #tpu.dot_dimension_numbers<[1], [0], [0], [1], [0, 0, 1, 1], [], []>} : vector<16x32xbf16>, vector<32x32xbf16>, vector<16x32xf32> -> vector<16x32xf32>
    %13 = arith.mulf %12, %8 : vector<16x32xf32>
    %c0_6 = arith.constant 0 : index
    %c0_7 = arith.constant 0 : index
    %14 = vector.load %arg4[%c0_6, %c0_7] : memref<16x32xf32, #tpu.memory_space<vmem>>, vector<1x32xf32>
    %15 = vector.shape_cast %14 : vector<1x32xf32> to vector<32xf32>
    %16 = vector.shape_cast %15 : vector<32xf32> to vector<1x32xf32>
    %17 = vector.broadcast %16 : vector<1x32xf32> to vector<16x32xf32>
    %18 = arith.mulf %9, %17 : vector<16x32xf32>
    %c4 = arith.constant 4 : index
    %c0_8 = arith.constant 0 : index
    %19 = vector.load %arg4[%c4, %c0_8] : memref<16x32xf32, #tpu.memory_space<vmem>>, vector<1x32xf32>
    %20 = vector.shape_cast %19 : vector<1x32xf32> to vector<32xf32>
    %21 = vector.shape_cast %20 : vector<32xf32> to vector<1x32xf32>
    %22 = vector.broadcast %21 : vector<1x32xf32> to vector<16x32xf32>
    %23 = arith.mulf %7, %22 : vector<16x32xf32>
    %24 = arith.addf %18, %23 : vector<16x32xf32>
    %c8 = arith.constant 8 : index
    %c0_9 = arith.constant 0 : index
    %25 = vector.load %arg4[%c8, %c0_9] : memref<16x32xf32, #tpu.memory_space<vmem>>, vector<1x32xf32>
    %26 = vector.shape_cast %25 : vector<1x32xf32> to vector<32xf32>
    %27 = vector.shape_cast %26 : vector<32xf32> to vector<1x32xf32>
    %28 = vector.broadcast %27 : vector<1x32xf32> to vector<16x32xf32>
    %29 = arith.mulf %13, %28 : vector<16x32xf32>
    %30 = arith.addf %24, %29 : vector<16x32xf32>
    %c12 = arith.constant 12 : index
    %c0_10 = arith.constant 0 : index
    %31 = vector.load %arg4[%c12, %c0_10] : memref<16x32xf32, #tpu.memory_space<vmem>>, vector<1x32xf32>
    %32 = vector.shape_cast %31 : vector<1x32xf32> to vector<32xf32>
    %33 = vector.shape_cast %32 : vector<32xf32> to vector<1x32xf32>
    %34 = vector.broadcast %33 : vector<1x32xf32> to vector<16x32xf32>
    %35 = arith.mulf %8, %34 : vector<16x32xf32>
    %36 = arith.addf %30, %35 : vector<16x32xf32>
    %c1 = arith.constant 1 : index
    %c0_11 = arith.constant 0 : index
    %37 = vector.load %arg4[%c1, %c0_11] : memref<16x32xf32, #tpu.memory_space<vmem>>, vector<1x32xf32>
    %38 = vector.shape_cast %37 : vector<1x32xf32> to vector<32xf32>
    %39 = vector.shape_cast %38 : vector<32xf32> to vector<1x32xf32>
    %40 = vector.broadcast %39 : vector<1x32xf32> to vector<16x32xf32>
    %41 = arith.mulf %9, %40 : vector<16x32xf32>
    %c5 = arith.constant 5 : index
    %c0_12 = arith.constant 0 : index
    %42 = vector.load %arg4[%c5, %c0_12] : memref<16x32xf32, #tpu.memory_space<vmem>>, vector<1x32xf32>
    %43 = vector.shape_cast %42 : vector<1x32xf32> to vector<32xf32>
    %44 = vector.shape_cast %43 : vector<32xf32> to vector<1x32xf32>
    %45 = vector.broadcast %44 : vector<1x32xf32> to vector<16x32xf32>
    %46 = arith.mulf %7, %45 : vector<16x32xf32>
    %47 = arith.addf %41, %46 : vector<16x32xf32>
    %c9 = arith.constant 9 : index
    %c0_13 = arith.constant 0 : index
    %48 = vector.load %arg4[%c9, %c0_13] : memref<16x32xf32, #tpu.memory_space<vmem>>, vector<1x32xf32>
    %49 = vector.shape_cast %48 : vector<1x32xf32> to vector<32xf32>
    %50 = vector.shape_cast %49 : vector<32xf32> to vector<1x32xf32>
    %51 = vector.broadcast %50 : vector<1x32xf32> to vector<16x32xf32>
    %52 = arith.mulf %13, %51 : vector<16x32xf32>
    %53 = arith.addf %47, %52 : vector<16x32xf32>
    %c13 = arith.constant 13 : index
    %c0_14 = arith.constant 0 : index
    %54 = vector.load %arg4[%c13, %c0_14] : memref<16x32xf32, #tpu.memory_space<vmem>>, vector<1x32xf32>
    %55 = vector.shape_cast %54 : vector<1x32xf32> to vector<32xf32>
    %56 = vector.shape_cast %55 : vector<32xf32> to vector<1x32xf32>
    %57 = vector.broadcast %56 : vector<1x32xf32> to vector<16x32xf32>
    %58 = arith.mulf %8, %57 : vector<16x32xf32>
    %59 = arith.addf %53, %58 : vector<16x32xf32>
    %c2 = arith.constant 2 : index
    %c0_15 = arith.constant 0 : index
    %60 = vector.load %arg4[%c2, %c0_15] : memref<16x32xf32, #tpu.memory_space<vmem>>, vector<1x32xf32>
    %61 = vector.shape_cast %60 : vector<1x32xf32> to vector<32xf32>
    %62 = vector.shape_cast %61 : vector<32xf32> to vector<1x32xf32>
    %63 = vector.broadcast %62 : vector<1x32xf32> to vector<16x32xf32>
    %64 = arith.mulf %9, %63 : vector<16x32xf32>
    %c6 = arith.constant 6 : index
    %c0_16 = arith.constant 0 : index
    %65 = vector.load %arg4[%c6, %c0_16] : memref<16x32xf32, #tpu.memory_space<vmem>>, vector<1x32xf32>
    %66 = vector.shape_cast %65 : vector<1x32xf32> to vector<32xf32>
    %67 = vector.shape_cast %66 : vector<32xf32> to vector<1x32xf32>
    %68 = vector.broadcast %67 : vector<1x32xf32> to vector<16x32xf32>
    %69 = arith.mulf %7, %68 : vector<16x32xf32>
    %70 = arith.addf %64, %69 : vector<16x32xf32>
    %c10 = arith.constant 10 : index
    %c0_17 = arith.constant 0 : index
    %71 = vector.load %arg4[%c10, %c0_17] : memref<16x32xf32, #tpu.memory_space<vmem>>, vector<1x32xf32>
    %72 = vector.shape_cast %71 : vector<1x32xf32> to vector<32xf32>
    %73 = vector.shape_cast %72 : vector<32xf32> to vector<1x32xf32>
    %74 = vector.broadcast %73 : vector<1x32xf32> to vector<16x32xf32>
    %75 = arith.mulf %13, %74 : vector<16x32xf32>
    %76 = arith.addf %70, %75 : vector<16x32xf32>
    %c14 = arith.constant 14 : index
    %c0_18 = arith.constant 0 : index
    %77 = vector.load %arg4[%c14, %c0_18] : memref<16x32xf32, #tpu.memory_space<vmem>>, vector<1x32xf32>
    %78 = vector.shape_cast %77 : vector<1x32xf32> to vector<32xf32>
    %79 = vector.shape_cast %78 : vector<32xf32> to vector<1x32xf32>
    %80 = vector.broadcast %79 : vector<1x32xf32> to vector<16x32xf32>
    %81 = arith.mulf %8, %80 : vector<16x32xf32>
    %82 = arith.addf %76, %81 : vector<16x32xf32>
    %83 = vector.shape_cast %36 : vector<16x32xf32> to vector<2x8x32xf32>
    %84 = arith.truncf %83 : vector<2x8x32xf32> to vector<2x8x32xbf16>
    %85 = vector.shape_cast %82 : vector<16x32xf32> to vector<2x8x32xf32>
    %86 = arith.truncf %85 : vector<2x8x32xf32> to vector<2x8x32xbf16>
    %87 = vector.shape_cast %3 : vector<16x256xf32> to vector<2x8x256xf32>
    %88 = arith.truncf %87 : vector<2x8x256xf32> to vector<2x8x256xbf16>
    %cst_19 = arith.constant dense<0.000000e+00> : vector<2x8x8xf32>
    %89 = tpu.matmul %84, %86, %cst_19 {dimension_numbers = #tpu.dot_dimension_numbers<[2], [2], [1], [1], [0, 0, 0, 1, 1, 1], [0], [0]>} : vector<2x8x32xbf16>, vector<2x8x32xbf16>, vector<2x8x8xf32> -> vector<2x8x8xf32>
    %cst_20 = arith.constant 1.250000e-01 : f32
    %90 = vector.broadcast %cst_20 : f32 to vector<2x8x8xf32>
    %91 = arith.mulf %89, %90 : vector<2x8x8xf32>
    %cst_21 = arith.constant 0.000000e+00 : f32
    %92 = vector.broadcast %cst_21 : f32 to vector<2x8x8xf32>
    %93 = arith.maximumf %91, %92 : vector<2x8x8xf32>
    %94 = arith.mulf %93, %93 : vector<2x8x8xf32>
    %95 = arith.truncf %94 : vector<2x8x8xf32> to vector<2x8x8xbf16>
    %cst_22 = arith.constant dense<0.000000e+00> : vector<2x8x256xf32>
    %96 = tpu.matmul %95, %88, %cst_22 {dimension_numbers = #tpu.dot_dimension_numbers<[2], [1], [1], [2], [0, 0, 0, 1, 1, 2], [0], [0]>} : vector<2x8x8xbf16>, vector<2x8x256xbf16>, vector<2x8x256xf32> -> vector<2x8x256xf32>
    %97 = vector.shape_cast %96 : vector<2x8x256xf32> to vector<16x256xf32>
    %98 = arith.truncf %59 : vector<16x32xf32> to vector<16x32xbf16>
    %c0_23 = arith.constant 0 : index
    %c0_24 = arith.constant 0 : index
    %c0_25 = arith.constant 0 : index
    %99 = vector.load %arg3[%c0_23, %c0_24, %c0_25] : memref<1x32x256xf32, #tpu.memory_space<vmem>>, vector<1x32x256xf32>
    %100 = vector.shape_cast %99 : vector<1x32x256xf32> to vector<32x256xf32>
    %101 = arith.truncf %100 : vector<32x256xf32> to vector<32x256xbf16>
    %cst_26 = arith.constant dense<0.000000e+00> : vector<16x256xf32>
    %102 = tpu.matmul %98, %101, %cst_26 {dimension_numbers = #tpu.dot_dimension_numbers<[1], [0], [0], [1], [0, 0, 1, 1], [], []>} : vector<16x32xbf16>, vector<32x256xbf16>, vector<16x256xf32> -> vector<16x256xf32>
    %103 = arith.addf %97, %102 : vector<16x256xf32>
    %104 = vector.extract_strided_slice %103 {offsets = [0, 0], sizes = [16, 128], strides = [1, 1]} : vector<16x256xf32> to vector<16x128xf32>
    %105 = vector.extract_strided_slice %103 {offsets = [0, 128], sizes = [16, 128], strides = [1, 1]} : vector<16x256xf32> to vector<16x128xf32>
    %106 = vector.extract_strided_slice %3 {offsets = [0, 0], sizes = [16, 128], strides = [1, 1]} : vector<16x256xf32> to vector<16x128xf32>
    %107 = vector.extract_strided_slice %3 {offsets = [0, 128], sizes = [16, 128], strides = [1, 1]} : vector<16x256xf32> to vector<16x128xf32>
    %108 = arith.mulf %105, %106 : vector<16x128xf32>
    %109 = arith.mulf %104, %107 : vector<16x128xf32>
    %110 = arith.negf %109 : vector<16x128xf32>
    %111 = math.exp %110 : vector<16x128xf32>
    %cst_27 = arith.constant 1.000000e+00 : f32
    %112 = vector.broadcast %cst_27 : f32 to vector<16x128xf32>
    %113 = arith.addf %112, %111 : vector<16x128xf32>
    %114 = arith.divf %112, %113 : vector<16x128xf32>
    %115 = arith.mulf %108, %114 : vector<16x128xf32>
    %116 = arith.truncf %115 : vector<16x128xf32> to vector<16x128xbf16>
    %c0_28 = arith.constant 0 : index
    %c0_29 = arith.constant 0 : index
    %c0_30 = arith.constant 0 : index
    %117 = vector.load %arg7[%c0_28, %c0_29, %c0_30] : memref<1x16x128xbf16, #tpu.memory_space<vmem>>, vector<1x16x128xbf16>
    %118 = vector.shape_cast %117 : vector<1x16x128xbf16> to vector<16x128xbf16>
    %119 = vector.shape_cast %116 : vector<16x128xbf16> to vector<1x16x128xbf16>
    tpu.vector_store %arg7[%c0_28, %c0_29, %c0_30], %119 {strides = array<i32>} : memref<1x16x128xbf16, #tpu.memory_space<vmem>>, vector<1x16x128xbf16>,
    return
  }
  func.func @transform_0(%arg0: i32, %arg1: i32) -> (i32, i32, i32) {
    %c0_i32 = arith.constant 0 : i32
    %c0_i32_0 = arith.constant 0 : i32
    return %arg0, %arg1, %c0_i32 : i32, i32, i32
  }
  func.func @transform_1(%arg0: i32, %arg1: i32) -> (i32, i32, i32) {
    %c0_i32 = arith.constant 0 : i32
    %c0_i32_0 = arith.constant 0 : i32
    %c0_i32_1 = arith.constant 0 : i32
    return %arg0, %c0_i32, %c0_i32_0 : i32, i32, i32
  }
  func.func @transform_2(%arg0: i32, %arg1: i32) -> (i32, i32) {
    %c0_i32 = arith.constant 0 : i32
    %c0_i32_0 = arith.constant 0 : i32
    %c0_i32_1 = arith.constant 0 : i32
    return %c0_i32, %c0_i32_0 : i32, i32
  }
  func.func @transform_3(%arg0: i32, %arg1: i32) -> (i32, i32) {
    %c0_i32 = arith.constant 0 : i32
    %c0_i32_0 = arith.constant 0 : i32
    return %arg1, %c0_i32 : i32, i32
  }
  func.func @transform_4(%arg0: i32, %arg1: i32) -> (i32, i32) {
    %c0_i32 = arith.constant 0 : i32
    %c0_i32_0 = arith.constant 0 : i32
    %c0_i32_1 = arith.constant 0 : i32
    return %c0_i32, %c0_i32_0 : i32, i32
  }
  func.func @transform_5(%arg0: i32, %arg1: i32) -> (i32, i32, i32) {
    %c0_i32 = arith.constant 0 : i32
    %c0_i32_0 = arith.constant 0 : i32
    return %arg0, %arg1, %c0_i32 : i32, i32, i32
  }
}

module attributes {stable_mosaic.version = 11 : i64} {
  func.func @ffconvm_out_kernel(%arg0: i32, %arg1: memref<1x16x128xbf16, #tpu.memory_space<vmem>>, %arg2: memref<1x12x64xf32, #tpu.memory_space<vmem>>, %arg3: memref<128x64xbf16, #tpu.memory_space<vmem>>, %arg4: memref<1x64xf32, #tpu.memory_space<vmem>>, %arg5: memref<17x64xf32, #tpu.memory_space<vmem>>, %arg6: memref<1x12x64xf32, #tpu.memory_space<vmem>>, %arg7: memref<28x64xf32, #tpu.memory_space<vmem>>) attributes {dimension_semantics = [#tpu.dimension_semantics<parallel>], iteration_bounds = array<i64: 2>, scalar_prefetch = 0 : i64, scratch_operands = 1 : i64, tpu.core_type = #tpu.core_type<tc>, window_params = [{transform_indices = @transform_0, window_bounds = array<i64: 1, 16, 128>}, {transform_indices = @transform_1, window_bounds = array<i64: 1, 12, 64>}, {pipeline_mode = #tpu.pipeline_mode<synchronous>, transform_indices = @transform_2, window_bounds = array<i64: 128, 64>}, {pipeline_mode = #tpu.pipeline_mode<synchronous>, transform_indices = @transform_3, window_bounds = array<i64: 1, 64>}, {pipeline_mode = #tpu.pipeline_mode<synchronous>, transform_indices = @transform_4, window_bounds = array<i64: 17, 64>}, {transform_indices = @transform_5, window_bounds = array<i64: 1, 12, 64>}]} {
    %c0 = arith.constant 0 : index
    %c0_0 = arith.constant 0 : index
    %c0_1 = arith.constant 0 : index
    %0 = vector.load %arg1[%c0, %c0_0, %c0_1] : memref<1x16x128xbf16, #tpu.memory_space<vmem>>, vector<1x12x128xbf16>
    %1 = vector.shape_cast %0 : vector<1x12x128xbf16> to vector<12x128xbf16>
    %2 = arith.extf %1 : vector<12x128xbf16> to vector<12x128xf32>
    %3 = arith.mulf %2, %2 : vector<12x128xf32>
    %cst = arith.constant dense<0.000000e+00> : vector<12xf32>
    %4 = vector.multi_reduction <add>, %3, %cst [1] : vector<12x128xf32> to vector<12xf32>
    %5 = vector.shape_cast %4 : vector<12xf32> to vector<12x1xf32>
    %6 = math.rsqrt %5 : vector<12x1xf32>
    %cst_2 = arith.constant 11.3137083 : f32
    %7 = vector.broadcast %cst_2 : f32 to vector<12x1xf32>
    %8 = arith.mulf %6, %7 : vector<12x1xf32>
    %cst_3 = arith.constant 1.000000e+05 : f32
    %9 = vector.broadcast %cst_3 : f32 to vector<12x1xf32>
    %10 = arith.minimumf %8, %9 : vector<12x1xf32>
    %11 = vector.broadcast %10 : vector<12x1xf32> to vector<12x128xf32>
    %12 = arith.mulf %2, %11 : vector<12x128xf32>
    %13 = arith.truncf %12 : vector<12x128xf32> to vector<12x128xbf16>
    %c0_4 = arith.constant 0 : index
    %c0_5 = arith.constant 0 : index
    %14 = vector.load %arg3[%c0_4, %c0_5] : memref<128x64xbf16, #tpu.memory_space<vmem>>, vector<128x64xbf16>
    %cst_6 = arith.constant dense<0.000000e+00> : vector<12x64xf32>
    %15 = tpu.matmul %13, %14, %cst_6 {dimension_numbers = #tpu.dot_dimension_numbers<[1], [0], [0], [1], [0, 0, 1, 1], [], []>} : vector<12x128xbf16>, vector<128x64xbf16>, vector<12x64xf32> -> vector<12x64xf32>
    %c0_7 = arith.constant 0 : index
    %c0_8 = arith.constant 0 : index
    %16 = vector.load %arg4[%c0_7, %c0_8] : memref<1x64xf32, #tpu.memory_space<vmem>>, vector<1x64xf32>
    %17 = vector.shape_cast %16 : vector<1x64xf32> to vector<64xf32>
    %18 = vector.shape_cast %17 : vector<64xf32> to vector<1x64xf32>
    %19 = vector.broadcast %18 : vector<1x64xf32> to vector<12x64xf32>
    %20 = arith.addf %15, %19 : vector<12x64xf32>
    %21 = arith.negf %20 : vector<12x64xf32>
    %22 = math.exp %21 : vector<12x64xf32>
    %cst_9 = arith.constant 1.000000e+00 : f32
    %23 = vector.broadcast %cst_9 : f32 to vector<12x64xf32>
    %24 = arith.addf %23, %22 : vector<12x64xf32>
    %25 = arith.divf %23, %24 : vector<12x64xf32>
    %26 = arith.mulf %20, %25 : vector<12x64xf32>
    %cst_10 = arith.constant 0.000000e+00 : f32
    %27 = vector.broadcast %cst_10 : f32 to vector<8x64xf32>
    %c0_11 = arith.constant 0 : index
    %c0_12 = arith.constant 0 : index
    %28 = vector.load %arg7[%c0_11, %c0_12] : memref<28x64xf32, #tpu.memory_space<vmem>>, vector<8x64xf32>
    tpu.vector_store %arg7[%c0_11, %c0_12], %27 {strides = array<i32>} : memref<28x64xf32, #tpu.memory_space<vmem>>, vector<8x64xf32>,
    %c8 = arith.constant 8 : index
    %c0_13 = arith.constant 0 : index
    %29 = vector.load %arg7[%c8, %c0_13] : memref<28x64xf32, #tpu.memory_space<vmem>>, vector<12x64xf32>
    tpu.vector_store %arg7[%c8, %c0_13], %26 {strides = array<i32>} : memref<28x64xf32, #tpu.memory_space<vmem>>, vector<12x64xf32>,
    %cst_14 = arith.constant 0.000000e+00 : f32
    %30 = vector.broadcast %cst_14 : f32 to vector<8x64xf32>
    %c20 = arith.constant 20 : index
    %c0_15 = arith.constant 0 : index
    %31 = vector.load %arg7[%c20, %c0_15] : memref<28x64xf32, #tpu.memory_space<vmem>>, vector<8x64xf32>
    tpu.vector_store %arg7[%c20, %c0_15], %30 {strides = array<i32>} : memref<28x64xf32, #tpu.memory_space<vmem>>, vector<8x64xf32>,
    %c0_16 = arith.constant 0 : index
    %c0_17 = arith.constant 0 : index
    %32 = vector.load %arg7[%c0_16, %c0_17] : memref<28x64xf32, #tpu.memory_space<vmem>>, vector<12x64xf32>
    %c0_18 = arith.constant 0 : index
    %c0_19 = arith.constant 0 : index
    %33 = vector.load %arg5[%c0_18, %c0_19] : memref<17x64xf32, #tpu.memory_space<vmem>>, vector<1x64xf32>
    %34 = vector.shape_cast %33 : vector<1x64xf32> to vector<64xf32>
    %35 = vector.shape_cast %34 : vector<64xf32> to vector<1x64xf32>
    %36 = vector.broadcast %35 : vector<1x64xf32> to vector<12x64xf32>
    %37 = arith.mulf %32, %36 : vector<12x64xf32>
    %38 = arith.addf %26, %37 : vector<12x64xf32>
    %c1 = arith.constant 1 : index
    %c0_20 = arith.constant 0 : index
    %39 = vector.load %arg7[%c1, %c0_20] : memref<28x64xf32, #tpu.memory_space<vmem>>, vector<12x64xf32>
    %c1_21 = arith.constant 1 : index
    %c0_22 = arith.constant 0 : index
    %40 = vector.load %arg5[%c1_21, %c0_22] : memref<17x64xf32, #tpu.memory_space<vmem>>, vector<1x64xf32>
    %41 = vector.shape_cast %40 : vector<1x64xf32> to vector<64xf32>
    %42 = vector.shape_cast %41 : vector<64xf32> to vector<1x64xf32>
    %43 = vector.broadcast %42 : vector<1x64xf32> to vector<12x64xf32>
    %44 = arith.mulf %39, %43 : vector<12x64xf32>
    %45 = arith.addf %38, %44 : vector<12x64xf32>
    %c2 = arith.constant 2 : index
    %c0_23 = arith.constant 0 : index
    %46 = vector.load %arg7[%c2, %c0_23] : memref<28x64xf32, #tpu.memory_space<vmem>>, vector<12x64xf32>
    %c2_24 = arith.constant 2 : index
    %c0_25 = arith.constant 0 : index
    %47 = vector.load %arg5[%c2_24, %c0_25] : memref<17x64xf32, #tpu.memory_space<vmem>>, vector<1x64xf32>
    %48 = vector.shape_cast %47 : vector<1x64xf32> to vector<64xf32>
    %49 = vector.shape_cast %48 : vector<64xf32> to vector<1x64xf32>
    %50 = vector.broadcast %49 : vector<1x64xf32> to vector<12x64xf32>
    %51 = arith.mulf %46, %50 : vector<12x64xf32>
    %52 = arith.addf %45, %51 : vector<12x64xf32>
    %c3 = arith.constant 3 : index
    %c0_26 = arith.constant 0 : index
    %53 = vector.load %arg7[%c3, %c0_26] : memref<28x64xf32, #tpu.memory_space<vmem>>, vector<12x64xf32>
    %c3_27 = arith.constant 3 : index
    %c0_28 = arith.constant 0 : index
    %54 = vector.load %arg5[%c3_27, %c0_28] : memref<17x64xf32, #tpu.memory_space<vmem>>, vector<1x64xf32>
    %55 = vector.shape_cast %54 : vector<1x64xf32> to vector<64xf32>
    %56 = vector.shape_cast %55 : vector<64xf32> to vector<1x64xf32>
    %57 = vector.broadcast %56 : vector<1x64xf32> to vector<12x64xf32>
    %58 = arith.mulf %53, %57 : vector<12x64xf32>
    %59 = arith.addf %52, %58 : vector<12x64xf32>
    %c4 = arith.constant 4 : index
    %c0_29 = arith.constant 0 : index
    %60 = vector.load %arg7[%c4, %c0_29] : memref<28x64xf32, #tpu.memory_space<vmem>>, vector<12x64xf32>
    %c4_30 = arith.constant 4 : index
    %c0_31 = arith.constant 0 : index
    %61 = vector.load %arg5[%c4_30, %c0_31] : memref<17x64xf32, #tpu.memory_space<vmem>>, vector<1x64xf32>
    %62 = vector.shape_cast %61 : vector<1x64xf32> to vector<64xf32>
    %63 = vector.shape_cast %62 : vector<64xf32> to vector<1x64xf32>
    %64 = vector.broadcast %63 : vector<1x64xf32> to vector<12x64xf32>
    %65 = arith.mulf %60, %64 : vector<12x64xf32>
    %66 = arith.addf %59, %65 : vector<12x64xf32>
    %c5 = arith.constant 5 : index
    %c0_32 = arith.constant 0 : index
    %67 = vector.load %arg7[%c5, %c0_32] : memref<28x64xf32, #tpu.memory_space<vmem>>, vector<12x64xf32>
    %c5_33 = arith.constant 5 : index
    %c0_34 = arith.constant 0 : index
    %68 = vector.load %arg5[%c5_33, %c0_34] : memref<17x64xf32, #tpu.memory_space<vmem>>, vector<1x64xf32>
    %69 = vector.shape_cast %68 : vector<1x64xf32> to vector<64xf32>
    %70 = vector.shape_cast %69 : vector<64xf32> to vector<1x64xf32>
    %71 = vector.broadcast %70 : vector<1x64xf32> to vector<12x64xf32>
    %72 = arith.mulf %67, %71 : vector<12x64xf32>
    %73 = arith.addf %66, %72 : vector<12x64xf32>
    %c6 = arith.constant 6 : index
    %c0_35 = arith.constant 0 : index
    %74 = vector.load %arg7[%c6, %c0_35] : memref<28x64xf32, #tpu.memory_space<vmem>>, vector<12x64xf32>
    %c6_36 = arith.constant 6 : index
    %c0_37 = arith.constant 0 : index
    %75 = vector.load %arg5[%c6_36, %c0_37] : memref<17x64xf32, #tpu.memory_space<vmem>>, vector<1x64xf32>
    %76 = vector.shape_cast %75 : vector<1x64xf32> to vector<64xf32>
    %77 = vector.shape_cast %76 : vector<64xf32> to vector<1x64xf32>
    %78 = vector.broadcast %77 : vector<1x64xf32> to vector<12x64xf32>
    %79 = arith.mulf %74, %78 : vector<12x64xf32>
    %80 = arith.addf %73, %79 : vector<12x64xf32>
    %c7 = arith.constant 7 : index
    %c0_38 = arith.constant 0 : index
    %81 = vector.load %arg7[%c7, %c0_38] : memref<28x64xf32, #tpu.memory_space<vmem>>, vector<12x64xf32>
    %c7_39 = arith.constant 7 : index
    %c0_40 = arith.constant 0 : index
    %82 = vector.load %arg5[%c7_39, %c0_40] : memref<17x64xf32, #tpu.memory_space<vmem>>, vector<1x64xf32>
    %83 = vector.shape_cast %82 : vector<1x64xf32> to vector<64xf32>
    %84 = vector.shape_cast %83 : vector<64xf32> to vector<1x64xf32>
    %85 = vector.broadcast %84 : vector<1x64xf32> to vector<12x64xf32>
    %86 = arith.mulf %81, %85 : vector<12x64xf32>
    %87 = arith.addf %80, %86 : vector<12x64xf32>
    %c8_41 = arith.constant 8 : index
    %c0_42 = arith.constant 0 : index
    %88 = vector.load %arg7[%c8_41, %c0_42] : memref<28x64xf32, #tpu.memory_space<vmem>>, vector<12x64xf32>
    %c8_43 = arith.constant 8 : index
    %c0_44 = arith.constant 0 : index
    %89 = vector.load %arg5[%c8_43, %c0_44] : memref<17x64xf32, #tpu.memory_space<vmem>>, vector<1x64xf32>
    %90 = vector.shape_cast %89 : vector<1x64xf32> to vector<64xf32>
    %91 = vector.shape_cast %90 : vector<64xf32> to vector<1x64xf32>
    %92 = vector.broadcast %91 : vector<1x64xf32> to vector<12x64xf32>
    %93 = arith.mulf %88, %92 : vector<12x64xf32>
    %94 = arith.addf %87, %93 : vector<12x64xf32>
    %c9 = arith.constant 9 : index
    %c0_45 = arith.constant 0 : index
    %95 = vector.load %arg7[%c9, %c0_45] : memref<28x64xf32, #tpu.memory_space<vmem>>, vector<12x64xf32>
    %c9_46 = arith.constant 9 : index
    %c0_47 = arith.constant 0 : index
    %96 = vector.load %arg5[%c9_46, %c0_47] : memref<17x64xf32, #tpu.memory_space<vmem>>, vector<1x64xf32>
    %97 = vector.shape_cast %96 : vector<1x64xf32> to vector<64xf32>
    %98 = vector.shape_cast %97 : vector<64xf32> to vector<1x64xf32>
    %99 = vector.broadcast %98 : vector<1x64xf32> to vector<12x64xf32>
    %100 = arith.mulf %95, %99 : vector<12x64xf32>
    %101 = arith.addf %94, %100 : vector<12x64xf32>
    %c10 = arith.constant 10 : index
    %c0_48 = arith.constant 0 : index
    %102 = vector.load %arg7[%c10, %c0_48] : memref<28x64xf32, #tpu.memory_space<vmem>>, vector<12x64xf32>
    %c10_49 = arith.constant 10 : index
    %c0_50 = arith.constant 0 : index
    %103 = vector.load %arg5[%c10_49, %c0_50] : memref<17x64xf32, #tpu.memory_space<vmem>>, vector<1x64xf32>
    %104 = vector.shape_cast %103 : vector<1x64xf32> to vector<64xf32>
    %105 = vector.shape_cast %104 : vector<64xf32> to vector<1x64xf32>
    %106 = vector.broadcast %105 : vector<1x64xf32> to vector<12x64xf32>
    %107 = arith.mulf %102, %106 : vector<12x64xf32>
    %108 = arith.addf %101, %107 : vector<12x64xf32>
    %c11 = arith.constant 11 : index
    %c0_51 = arith.constant 0 : index
    %109 = vector.load %arg7[%c11, %c0_51] : memref<28x64xf32, #tpu.memory_space<vmem>>, vector<12x64xf32>
    %c11_52 = arith.constant 11 : index
    %c0_53 = arith.constant 0 : index
    %110 = vector.load %arg5[%c11_52, %c0_53] : memref<17x64xf32, #tpu.memory_space<vmem>>, vector<1x64xf32>
    %111 = vector.shape_cast %110 : vector<1x64xf32> to vector<64xf32>
    %112 = vector.shape_cast %111 : vector<64xf32> to vector<1x64xf32>
    %113 = vector.broadcast %112 : vector<1x64xf32> to vector<12x64xf32>
    %114 = arith.mulf %109, %113 : vector<12x64xf32>
    %115 = arith.addf %108, %114 : vector<12x64xf32>
    %c12 = arith.constant 12 : index
    %c0_54 = arith.constant 0 : index
    %116 = vector.load %arg7[%c12, %c0_54] : memref<28x64xf32, #tpu.memory_space<vmem>>, vector<12x64xf32>
    %c12_55 = arith.constant 12 : index
    %c0_56 = arith.constant 0 : index
    %117 = vector.load %arg5[%c12_55, %c0_56] : memref<17x64xf32, #tpu.memory_space<vmem>>, vector<1x64xf32>
    %118 = vector.shape_cast %117 : vector<1x64xf32> to vector<64xf32>
    %119 = vector.shape_cast %118 : vector<64xf32> to vector<1x64xf32>
    %120 = vector.broadcast %119 : vector<1x64xf32> to vector<12x64xf32>
    %121 = arith.mulf %116, %120 : vector<12x64xf32>
    %122 = arith.addf %115, %121 : vector<12x64xf32>
    %c13 = arith.constant 13 : index
    %c0_57 = arith.constant 0 : index
    %123 = vector.load %arg7[%c13, %c0_57] : memref<28x64xf32, #tpu.memory_space<vmem>>, vector<12x64xf32>
    %c13_58 = arith.constant 13 : index
    %c0_59 = arith.constant 0 : index
    %124 = vector.load %arg5[%c13_58, %c0_59] : memref<17x64xf32, #tpu.memory_space<vmem>>, vector<1x64xf32>
    %125 = vector.shape_cast %124 : vector<1x64xf32> to vector<64xf32>
    %126 = vector.shape_cast %125 : vector<64xf32> to vector<1x64xf32>
    %127 = vector.broadcast %126 : vector<1x64xf32> to vector<12x64xf32>
    %128 = arith.mulf %123, %127 : vector<12x64xf32>
    %129 = arith.addf %122, %128 : vector<12x64xf32>
    %c14 = arith.constant 14 : index
    %c0_60 = arith.constant 0 : index
    %130 = vector.load %arg7[%c14, %c0_60] : memref<28x64xf32, #tpu.memory_space<vmem>>, vector<12x64xf32>
    %c14_61 = arith.constant 14 : index
    %c0_62 = arith.constant 0 : index
    %131 = vector.load %arg5[%c14_61, %c0_62] : memref<17x64xf32, #tpu.memory_space<vmem>>, vector<1x64xf32>
    %132 = vector.shape_cast %131 : vector<1x64xf32> to vector<64xf32>
    %133 = vector.shape_cast %132 : vector<64xf32> to vector<1x64xf32>
    %134 = vector.broadcast %133 : vector<1x64xf32> to vector<12x64xf32>
    %135 = arith.mulf %130, %134 : vector<12x64xf32>
    %136 = arith.addf %129, %135 : vector<12x64xf32>
    %c15 = arith.constant 15 : index
    %c0_63 = arith.constant 0 : index
    %137 = vector.load %arg7[%c15, %c0_63] : memref<28x64xf32, #tpu.memory_space<vmem>>, vector<12x64xf32>
    %c15_64 = arith.constant 15 : index
    %c0_65 = arith.constant 0 : index
    %138 = vector.load %arg5[%c15_64, %c0_65] : memref<17x64xf32, #tpu.memory_space<vmem>>, vector<1x64xf32>
    %139 = vector.shape_cast %138 : vector<1x64xf32> to vector<64xf32>
    %140 = vector.shape_cast %139 : vector<64xf32> to vector<1x64xf32>
    %141 = vector.broadcast %140 : vector<1x64xf32> to vector<12x64xf32>
    %142 = arith.mulf %137, %141 : vector<12x64xf32>
    %143 = arith.addf %136, %142 : vector<12x64xf32>
    %c16 = arith.constant 16 : index
    %c0_66 = arith.constant 0 : index
    %144 = vector.load %arg7[%c16, %c0_66] : memref<28x64xf32, #tpu.memory_space<vmem>>, vector<12x64xf32>
    %c16_67 = arith.constant 16 : index
    %c0_68 = arith.constant 0 : index
    %145 = vector.load %arg5[%c16_67, %c0_68] : memref<17x64xf32, #tpu.memory_space<vmem>>, vector<1x64xf32>
    %146 = vector.shape_cast %145 : vector<1x64xf32> to vector<64xf32>
    %147 = vector.shape_cast %146 : vector<64xf32> to vector<1x64xf32>
    %148 = vector.broadcast %147 : vector<1x64xf32> to vector<12x64xf32>
    %149 = arith.mulf %144, %148 : vector<12x64xf32>
    %150 = arith.addf %143, %149 : vector<12x64xf32>
    %c0_69 = arith.constant 0 : index
    %c0_70 = arith.constant 0 : index
    %c0_71 = arith.constant 0 : index
    %151 = vector.load %arg2[%c0_69, %c0_70, %c0_71] : memref<1x12x64xf32, #tpu.memory_space<vmem>>, vector<1x12x64xf32>
    %152 = vector.shape_cast %151 : vector<1x12x64xf32> to vector<12x64xf32>
    %153 = arith.addf %152, %150 : vector<12x64xf32>
    %c0_72 = arith.constant 0 : index
    %c0_73 = arith.constant 0 : index
    %c0_74 = arith.constant 0 : index
    %154 = vector.load %arg6[%c0_72, %c0_73, %c0_74] : memref<1x12x64xf32, #tpu.memory_space<vmem>>, vector<1x12x64xf32>
    %155 = vector.shape_cast %154 : vector<1x12x64xf32> to vector<12x64xf32>
    %156 = vector.shape_cast %153 : vector<12x64xf32> to vector<1x12x64xf32>
    tpu.vector_store %arg6[%c0_72, %c0_73, %c0_74], %156 {strides = array<i32>} : memref<1x12x64xf32, #tpu.memory_space<vmem>>, vector<1x12x64xf32>,
    return
  }
  func.func @transform_0(%arg0: i32) -> (i32, i32, i32) {
    %c0_i32 = arith.constant 0 : i32
    %c0_i32_0 = arith.constant 0 : i32
    %c0_i32_1 = arith.constant 0 : i32
    return %arg0, %c0_i32, %c0_i32_0 : i32, i32, i32
  }
  func.func @transform_1(%arg0: i32) -> (i32, i32, i32) {
    %c0_i32 = arith.constant 0 : i32
    %c0_i32_0 = arith.constant 0 : i32
    %c0_i32_1 = arith.constant 0 : i32
    return %arg0, %c0_i32, %c0_i32_0 : i32, i32, i32
  }
  func.func @transform_2(%arg0: i32) -> (i32, i32) {
    %c0_i32 = arith.constant 0 : i32
    %c0_i32_0 = arith.constant 0 : i32
    %c0_i32_1 = arith.constant 0 : i32
    return %c0_i32, %c0_i32_0 : i32, i32
  }
  func.func @transform_3(%arg0: i32) -> (i32, i32) {
    %c0_i32 = arith.constant 0 : i32
    %c0_i32_0 = arith.constant 0 : i32
    %c0_i32_1 = arith.constant 0 : i32
    return %c0_i32, %c0_i32_0 : i32, i32
  }
  func.func @transform_4(%arg0: i32) -> (i32, i32) {
    %c0_i32 = arith.constant 0 : i32
    %c0_i32_0 = arith.constant 0 : i32
    %c0_i32_1 = arith.constant 0 : i32
    return %c0_i32, %c0_i32_0 : i32, i32
  }
  func.func @transform_5(%arg0: i32) -> (i32, i32, i32) {
    %c0_i32 = arith.constant 0 : i32
    %c0_i32_0 = arith.constant 0 : i32
    %c0_i32_1 = arith.constant 0 : i32
    return %arg0, %c0_i32, %c0_i32_0 : i32, i32, i32
  }
}

module attributes {stable_mosaic.version = 11 : i64} {
  func.func @layernorm_kernel(%arg0: i32, %arg1: memref<1x12x64xf32, #tpu.memory_space<vmem>>, %arg2: memref<1x64xf32, #tpu.memory_space<vmem>>, %arg3: memref<1x64xf32, #tpu.memory_space<vmem>>, %arg4: memref<1x12x64xf32, #tpu.memory_space<vmem>>) attributes {dimension_semantics = [#tpu.dimension_semantics<parallel>], iteration_bounds = array<i64: 2>, scalar_prefetch = 0 : i64, scratch_operands = 0 : i64, tpu.core_type = #tpu.core_type<tc>, window_params = [{transform_indices = @transform_0, window_bounds = array<i64: 1, 12, 64>}, {pipeline_mode = #tpu.pipeline_mode<synchronous>, transform_indices = @transform_1, window_bounds = array<i64: 1, 64>}, {pipeline_mode = #tpu.pipeline_mode<synchronous>, transform_indices = @transform_2, window_bounds = array<i64: 1, 64>}, {transform_indices = @transform_3, window_bounds = array<i64: 1, 12, 64>}]} {
    %c0 = arith.constant 0 : index
    %c0_0 = arith.constant 0 : index
    %c0_1 = arith.constant 0 : index
    %0 = vector.load %arg1[%c0, %c0_0, %c0_1] : memref<1x12x64xf32, #tpu.memory_space<vmem>>, vector<1x12x64xf32>
    %1 = vector.shape_cast %0 : vector<1x12x64xf32> to vector<12x64xf32>
    %cst = arith.constant dense<0.000000e+00> : vector<12xf32>
    %2 = vector.multi_reduction <add>, %1, %cst [1] : vector<12x64xf32> to vector<12xf32>
    %3 = vector.shape_cast %2 : vector<12xf32> to vector<12x1xf32>
    %cst_2 = arith.constant 6.400000e+01 : f32
    %4 = vector.broadcast %cst_2 : f32 to vector<12x1xf32>
    %5 = arith.divf %3, %4 : vector<12x1xf32>
    %6 = vector.broadcast %5 : vector<12x1xf32> to vector<12x64xf32>
    %7 = arith.subf %1, %6 : vector<12x64xf32>
    %8 = arith.mulf %7, %7 : vector<12x64xf32>
    %cst_3 = arith.constant dense<0.000000e+00> : vector<12xf32>
    %9 = vector.multi_reduction <add>, %8, %cst_3 [1] : vector<12x64xf32> to vector<12xf32>
    %10 = vector.shape_cast %9 : vector<12xf32> to vector<12x1xf32>
    %cst_4 = arith.constant 6.400000e+01 : f32
    %11 = vector.broadcast %cst_4 : f32 to vector<12x1xf32>
    %12 = arith.divf %10, %11 : vector<12x1xf32>
    %cst_5 = arith.constant 9.99999997E-7 : f32
    %13 = vector.broadcast %cst_5 : f32 to vector<12x1xf32>
    %14 = arith.addf %12, %13 : vector<12x1xf32>
    %15 = math.rsqrt %14 : vector<12x1xf32>
    %16 = vector.broadcast %15 : vector<12x1xf32> to vector<12x64xf32>
    %17 = arith.mulf %7, %16 : vector<12x64xf32>
    %c0_6 = arith.constant 0 : index
    %c0_7 = arith.constant 0 : index
    %18 = vector.load %arg2[%c0_6, %c0_7] : memref<1x64xf32, #tpu.memory_space<vmem>>, vector<1x64xf32>
    %19 = vector.shape_cast %18 : vector<1x64xf32> to vector<64xf32>
    %20 = vector.shape_cast %19 : vector<64xf32> to vector<1x64xf32>
    %21 = vector.broadcast %20 : vector<1x64xf32> to vector<12x64xf32>
    %22 = arith.mulf %17, %21 : vector<12x64xf32>
    %c0_8 = arith.constant 0 : index
    %c0_9 = arith.constant 0 : index
    %23 = vector.load %arg3[%c0_8, %c0_9] : memref<1x64xf32, #tpu.memory_space<vmem>>, vector<1x64xf32>
    %24 = vector.shape_cast %23 : vector<1x64xf32> to vector<64xf32>
    %25 = vector.shape_cast %24 : vector<64xf32> to vector<1x64xf32>
    %26 = vector.broadcast %25 : vector<1x64xf32> to vector<12x64xf32>
    %27 = arith.addf %22, %26 : vector<12x64xf32>
    %c0_10 = arith.constant 0 : index
    %c0_11 = arith.constant 0 : index
    %c0_12 = arith.constant 0 : index
    %28 = vector.load %arg4[%c0_10, %c0_11, %c0_12] : memref<1x12x64xf32, #tpu.memory_space<vmem>>, vector<1x12x64xf32>
    %29 = vector.shape_cast %28 : vector<1x12x64xf32> to vector<12x64xf32>
    %30 = vector.shape_cast %27 : vector<12x64xf32> to vector<1x12x64xf32>
    tpu.vector_store %arg4[%c0_10, %c0_11, %c0_12], %30 {strides = array<i32>} : memref<1x12x64xf32, #tpu.memory_space<vmem>>, vector<1x12x64xf32>,
    return
  }
  func.func @transform_0(%arg0: i32) -> (i32, i32, i32) {
    %c0_i32 = arith.constant 0 : i32
    %c0_i32_0 = arith.constant 0 : i32
    %c0_i32_1 = arith.constant 0 : i32
    return %arg0, %c0_i32, %c0_i32_0 : i32, i32, i32
  }
  func.func @transform_1(%arg0: i32) -> (i32, i32) {
    %c0_i32 = arith.constant 0 : i32
    %c0_i32_0 = arith.constant 0 : i32
    %c0_i32_1 = arith.constant 0 : i32
    return %c0_i32, %c0_i32_0 : i32, i32
  }
  func.func @transform_2(%arg0: i32) -> (i32, i32) {
    %c0_i32 = arith.constant 0 : i32
    %c0_i32_0 = arith.constant 0 : i32
    %c0_i32_1 = arith.constant 0 : i32
    return %c0_i32, %c0_i32_0 : i32, i32
  }
  func.func @transform_3(%arg0: i32) -> (i32, i32, i32) {
    %c0_i32 = arith.constant 0 : i32
    %c0_i32_0 = arith.constant 0 : i32
    %c0_i32_1 = arith.constant 0 : i32
    return %arg0, %c0_i32, %c0_i32_0 : i32, i32, i32
  }
}

module attributes {stable_mosaic.version = 11 : i64} {
  func.func @fused_proj_kernel(%arg0: i32, %arg1: memref<1x12x64xf32, #tpu.memory_space<vmem>>, %arg2: memref<32x288xbf16, #tpu.memory_space<vmem>>, %arg3: memref<32x288xbf16, #tpu.memory_space<vmem>>, %arg4: memref<1x288xf32, #tpu.memory_space<vmem>>, %arg5: memref<17x288xf32, #tpu.memory_space<vmem>>, %arg6: memref<16x32xf32, #tpu.memory_space<vmem>>, %arg7: memref<16x64xf32, #tpu.memory_space<vmem>>, %arg8: memref<32x32xbf16, #tpu.memory_space<vmem>>, %arg9: memref<1x16x288xbf16, #tpu.memory_space<vmem>>, %arg10: memref<1x32x256xf32, #tpu.memory_space<vmem>>, %arg11: memref<28x288xf32, #tpu.memory_space<vmem>>) attributes {dimension_semantics = [#tpu.dimension_semantics<parallel>], iteration_bounds = array<i64: 2>, scalar_prefetch = 0 : i64, scratch_operands = 1 : i64, tpu.core_type = #tpu.core_type<tc>, window_params = [{transform_indices = @transform_0, window_bounds = array<i64: 1, 12, 64>}, {pipeline_mode = #tpu.pipeline_mode<synchronous>, transform_indices = @transform_1, window_bounds = array<i64: 32, 288>}, {pipeline_mode = #tpu.pipeline_mode<synchronous>, transform_indices = @transform_2, window_bounds = array<i64: 32, 288>}, {pipeline_mode = #tpu.pipeline_mode<synchronous>, transform_indices = @transform_3, window_bounds = array<i64: 1, 288>}, {pipeline_mode = #tpu.pipeline_mode<synchronous>, transform_indices = @transform_4, window_bounds = array<i64: 17, 288>}, {pipeline_mode = #tpu.pipeline_mode<synchronous>, transform_indices = @transform_5, window_bounds = array<i64: 16, 32>}, {pipeline_mode = #tpu.pipeline_mode<synchronous>, transform_indices = @transform_6, window_bounds = array<i64: 16, 64>}, {pipeline_mode = #tpu.pipeline_mode<synchronous>, transform_indices = @transform_7, window_bounds = array<i64: 32, 32>}, {transform_indices = @transform_8, window_bounds = array<i64: 1, 16, 288>}, {transform_indices = @transform_9, window_bounds = array<i64: 1, 32, 256>}]} {
    %c0 = arith.constant 0 : index
    %c0_0 = arith.constant 0 : index
    %c0_1 = arith.constant 0 : index
    %0 = vector.load %arg1[%c0, %c0_0, %c0_1] : memref<1x12x64xf32, #tpu.memory_space<vmem>>, vector<1x12x64xf32>
    %1 = vector.shape_cast %0 : vector<1x12x64xf32> to vector<12x64xf32>
    %2 = vector.extract_strided_slice %1 {offsets = [0, 32], sizes = [12, 32], strides = [1, 1]} : vector<12x64xf32> to vector<12x32xf32>
    %cst = arith.constant 0.000000e+00 : f32
    %3 = vector.broadcast %cst : f32 to vector<1x32xf32>
    %c0_2 = arith.constant 0 : index
    %c0_3 = arith.constant 0 : index
    %4 = vector.load %arg11[%c0_2, %c0_3] : memref<28x288xf32, #tpu.memory_space<vmem>>, vector<1x32xf32>
    tpu.vector_store %arg11[%c0_2, %c0_3], %3 {strides = array<i32>} : memref<28x288xf32, #tpu.memory_space<vmem>>, vector<1x32xf32>,
    %5 = vector.extract_strided_slice %1 {offsets = [0, 0], sizes = [12, 32], strides = [1, 1]} : vector<12x64xf32> to vector<12x32xf32>
    %c1 = arith.constant 1 : index
    %c0_4 = arith.constant 0 : index
    %6 = vector.load %arg11[%c1, %c0_4] : memref<28x288xf32, #tpu.memory_space<vmem>>, vector<12x32xf32>
    tpu.vector_store %arg11[%c1, %c0_4], %5 {strides = array<i32>} : memref<28x288xf32, #tpu.memory_space<vmem>>, vector<12x32xf32>,
    %c0_5 = arith.constant 0 : index
    %c0_6 = arith.constant 0 : index
    %7 = vector.load %arg11[%c0_5, %c0_6] : memref<28x288xf32, #tpu.memory_space<vmem>>, vector<12x32xf32>
    %8 = arith.mulf %7, %7 : vector<12x32xf32>
    %cst_7 = arith.constant dense<0.000000e+00> : vector<12xf32>
    %9 = vector.multi_reduction <add>, %8, %cst_7 [1] : vector<12x32xf32> to vector<12xf32>
    %10 = vector.shape_cast %9 : vector<12xf32> to vector<12x1xf32>
    %11 = arith.mulf %2, %2 : vector<12x32xf32>
    %cst_8 = arith.constant dense<0.000000e+00> : vector<12xf32>
    %12 = vector.multi_reduction <add>, %11, %cst_8 [1] : vector<12x32xf32> to vector<12xf32>
    %13 = vector.shape_cast %12 : vector<12xf32> to vector<12x1xf32>
    %14 = arith.addf %10, %13 : vector<12x1xf32>
    %15 = math.rsqrt %14 : vector<12x1xf32>
    %cst_9 = arith.constant 8.000000e+00 : f32
    %16 = vector.broadcast %cst_9 : f32 to vector<12x1xf32>
    %17 = arith.mulf %15, %16 : vector<12x1xf32>
    %cst_10 = arith.constant 1.000000e+05 : f32
    %18 = vector.broadcast %cst_10 : f32 to vector<12x1xf32>
    %19 = arith.minimumf %17, %18 : vector<12x1xf32>
    %20 = vector.broadcast %19 : vector<12x1xf32> to vector<12x32xf32>
    %21 = arith.mulf %7, %20 : vector<12x32xf32>
    %22 = arith.truncf %21 : vector<12x32xf32> to vector<12x32xbf16>
    %c0_11 = arith.constant 0 : index
    %c0_12 = arith.constant 0 : index
    %23 = vector.load %arg2[%c0_11, %c0_12] : memref<32x288xbf16, #tpu.memory_space<vmem>>, vector<32x288xbf16>
    %cst_13 = arith.constant dense<0.000000e+00> : vector<12x288xf32>
    %24 = tpu.matmul %22, %23, %cst_13 {dimension_numbers = #tpu.dot_dimension_numbers<[1], [0], [0], [1], [0, 0, 1, 1], [], []>} : vector<12x32xbf16>, vector<32x288xbf16>, vector<12x288xf32> -> vector<12x288xf32>
    %25 = vector.broadcast %19 : vector<12x1xf32> to vector<12x32xf32>
    %26 = arith.mulf %2, %25 : vector<12x32xf32>
    %27 = arith.truncf %26 : vector<12x32xf32> to vector<12x32xbf16>
    %c0_14 = arith.constant 0 : index
    %c0_15 = arith.constant 0 : index
    %28 = vector.load %arg3[%c0_14, %c0_15] : memref<32x288xbf16, #tpu.memory_space<vmem>>, vector<32x288xbf16>
    %cst_16 = arith.constant dense<0.000000e+00> : vector<12x288xf32>
    %29 = tpu.matmul %27, %28, %cst_16 {dimension_numbers = #tpu.dot_dimension_numbers<[1], [0], [0], [1], [0, 0, 1, 1], [], []>} : vector<12x32xbf16>, vector<32x288xbf16>, vector<12x288xf32> -> vector<12x288xf32>
    %30 = arith.addf %24, %29 : vector<12x288xf32>
    %c0_17 = arith.constant 0 : index
    %c0_18 = arith.constant 0 : index
    %31 = vector.load %arg4[%c0_17, %c0_18] : memref<1x288xf32, #tpu.memory_space<vmem>>, vector<1x288xf32>
    %32 = vector.shape_cast %31 : vector<1x288xf32> to vector<288xf32>
    %33 = vector.shape_cast %32 : vector<288xf32> to vector<1x288xf32>
    %34 = vector.broadcast %33 : vector<1x288xf32> to vector<12x288xf32>
    %35 = arith.addf %30, %34 : vector<12x288xf32>
    %36 = arith.negf %35 : vector<12x288xf32>
    %37 = math.exp %36 : vector<12x288xf32>
    %cst_19 = arith.constant 1.000000e+00 : f32
    %38 = vector.broadcast %cst_19 : f32 to vector<12x288xf32>
    %39 = arith.addf %38, %37 : vector<12x288xf32>
    %40 = arith.divf %38, %39 : vector<12x288xf32>
    %41 = arith.mulf %35, %40 : vector<12x288xf32>
    %cst_20 = arith.constant 0.000000e+00 : f32
    %42 = vector.broadcast %cst_20 : f32 to vector<8x288xf32>
    %c0_21 = arith.constant 0 : index
    %c0_22 = arith.constant 0 : index
    %43 = vector.load %arg11[%c0_21, %c0_22] : memref<28x288xf32, #tpu.memory_space<vmem>>, vector<8x288xf32>
    tpu.vector_store %arg11[%c0_21, %c0_22], %42 {strides = array<i32>} : memref<28x288xf32, #tpu.memory_space<vmem>>, vector<8x288xf32>,
    %c8 = arith.constant 8 : index
    %c0_23 = arith.constant 0 : index
    %44 = vector.load %arg11[%c8, %c0_23] : memref<28x288xf32, #tpu.memory_space<vmem>>, vector<12x288xf32>
    tpu.vector_store %arg11[%c8, %c0_23], %41 {strides = array<i32>} : memref<28x288xf32, #tpu.memory_space<vmem>>, vector<12x288xf32>,
    %cst_24 = arith.constant 0.000000e+00 : f32
    %45 = vector.broadcast %cst_24 : f32 to vector<8x288xf32>
    %c20 = arith.constant 20 : index
    %c0_25 = arith.constant 0 : index
    %46 = vector.load %arg11[%c20, %c0_25] : memref<28x288xf32, #tpu.memory_space<vmem>>, vector<8x288xf32>
    tpu.vector_store %arg11[%c20, %c0_25], %45 {strides = array<i32>} : memref<28x288xf32, #tpu.memory_space<vmem>>, vector<8x288xf32>,
    %c0_26 = arith.constant 0 : index
    %c0_27 = arith.constant 0 : index
    %47 = vector.load %arg11[%c0_26, %c0_27] : memref<28x288xf32, #tpu.memory_space<vmem>>, vector<12x288xf32>
    %c0_28 = arith.constant 0 : index
    %c0_29 = arith.constant 0 : index
    %48 = vector.load %arg5[%c0_28, %c0_29] : memref<17x288xf32, #tpu.memory_space<vmem>>, vector<1x288xf32>
    %49 = vector.shape_cast %48 : vector<1x288xf32> to vector<288xf32>
    %50 = vector.shape_cast %49 : vector<288xf32> to vector<1x288xf32>
    %51 = vector.broadcast %50 : vector<1x288xf32> to vector<12x288xf32>
    %52 = arith.mulf %47, %51 : vector<12x288xf32>
    %53 = arith.addf %41, %52 : vector<12x288xf32>
    %c1_30 = arith.constant 1 : index
    %c0_31 = arith.constant 0 : index
    %54 = vector.load %arg11[%c1_30, %c0_31] : memref<28x288xf32, #tpu.memory_space<vmem>>, vector<12x288xf32>
    %c1_32 = arith.constant 1 : index
    %c0_33 = arith.constant 0 : index
    %55 = vector.load %arg5[%c1_32, %c0_33] : memref<17x288xf32, #tpu.memory_space<vmem>>, vector<1x288xf32>
    %56 = vector.shape_cast %55 : vector<1x288xf32> to vector<288xf32>
    %57 = vector.shape_cast %56 : vector<288xf32> to vector<1x288xf32>
    %58 = vector.broadcast %57 : vector<1x288xf32> to vector<12x288xf32>
    %59 = arith.mulf %54, %58 : vector<12x288xf32>
    %60 = arith.addf %53, %59 : vector<12x288xf32>
    %c2 = arith.constant 2 : index
    %c0_34 = arith.constant 0 : index
    %61 = vector.load %arg11[%c2, %c0_34] : memref<28x288xf32, #tpu.memory_space<vmem>>, vector<12x288xf32>
    %c2_35 = arith.constant 2 : index
    %c0_36 = arith.constant 0 : index
    %62 = vector.load %arg5[%c2_35, %c0_36] : memref<17x288xf32, #tpu.memory_space<vmem>>, vector<1x288xf32>
    %63 = vector.shape_cast %62 : vector<1x288xf32> to vector<288xf32>
    %64 = vector.shape_cast %63 : vector<288xf32> to vector<1x288xf32>
    %65 = vector.broadcast %64 : vector<1x288xf32> to vector<12x288xf32>
    %66 = arith.mulf %61, %65 : vector<12x288xf32>
    %67 = arith.addf %60, %66 : vector<12x288xf32>
    %c3 = arith.constant 3 : index
    %c0_37 = arith.constant 0 : index
    %68 = vector.load %arg11[%c3, %c0_37] : memref<28x288xf32, #tpu.memory_space<vmem>>, vector<12x288xf32>
    %c3_38 = arith.constant 3 : index
    %c0_39 = arith.constant 0 : index
    %69 = vector.load %arg5[%c3_38, %c0_39] : memref<17x288xf32, #tpu.memory_space<vmem>>, vector<1x288xf32>
    %70 = vector.shape_cast %69 : vector<1x288xf32> to vector<288xf32>
    %71 = vector.shape_cast %70 : vector<288xf32> to vector<1x288xf32>
    %72 = vector.broadcast %71 : vector<1x288xf32> to vector<12x288xf32>
    %73 = arith.mulf %68, %72 : vector<12x288xf32>
    %74 = arith.addf %67, %73 : vector<12x288xf32>
    %c4 = arith.constant 4 : index
    %c0_40 = arith.constant 0 : index
    %75 = vector.load %arg11[%c4, %c0_40] : memref<28x288xf32, #tpu.memory_space<vmem>>, vector<12x288xf32>
    %c4_41 = arith.constant 4 : index
    %c0_42 = arith.constant 0 : index
    %76 = vector.load %arg5[%c4_41, %c0_42] : memref<17x288xf32, #tpu.memory_space<vmem>>, vector<1x288xf32>
    %77 = vector.shape_cast %76 : vector<1x288xf32> to vector<288xf32>
    %78 = vector.shape_cast %77 : vector<288xf32> to vector<1x288xf32>
    %79 = vector.broadcast %78 : vector<1x288xf32> to vector<12x288xf32>
    %80 = arith.mulf %75, %79 : vector<12x288xf32>
    %81 = arith.addf %74, %80 : vector<12x288xf32>
    %c5 = arith.constant 5 : index
    %c0_43 = arith.constant 0 : index
    %82 = vector.load %arg11[%c5, %c0_43] : memref<28x288xf32, #tpu.memory_space<vmem>>, vector<12x288xf32>
    %c5_44 = arith.constant 5 : index
    %c0_45 = arith.constant 0 : index
    %83 = vector.load %arg5[%c5_44, %c0_45] : memref<17x288xf32, #tpu.memory_space<vmem>>, vector<1x288xf32>
    %84 = vector.shape_cast %83 : vector<1x288xf32> to vector<288xf32>
    %85 = vector.shape_cast %84 : vector<288xf32> to vector<1x288xf32>
    %86 = vector.broadcast %85 : vector<1x288xf32> to vector<12x288xf32>
    %87 = arith.mulf %82, %86 : vector<12x288xf32>
    %88 = arith.addf %81, %87 : vector<12x288xf32>
    %c6 = arith.constant 6 : index
    %c0_46 = arith.constant 0 : index
    %89 = vector.load %arg11[%c6, %c0_46] : memref<28x288xf32, #tpu.memory_space<vmem>>, vector<12x288xf32>
    %c6_47 = arith.constant 6 : index
    %c0_48 = arith.constant 0 : index
    %90 = vector.load %arg5[%c6_47, %c0_48] : memref<17x288xf32, #tpu.memory_space<vmem>>, vector<1x288xf32>
    %91 = vector.shape_cast %90 : vector<1x288xf32> to vector<288xf32>
    %92 = vector.shape_cast %91 : vector<288xf32> to vector<1x288xf32>
    %93 = vector.broadcast %92 : vector<1x288xf32> to vector<12x288xf32>
    %94 = arith.mulf %89, %93 : vector<12x288xf32>
    %95 = arith.addf %88, %94 : vector<12x288xf32>
    %c7 = arith.constant 7 : index
    %c0_49 = arith.constant 0 : index
    %96 = vector.load %arg11[%c7, %c0_49] : memref<28x288xf32, #tpu.memory_space<vmem>>, vector<12x288xf32>
    %c7_50 = arith.constant 7 : index
    %c0_51 = arith.constant 0 : index
    %97 = vector.load %arg5[%c7_50, %c0_51] : memref<17x288xf32, #tpu.memory_space<vmem>>, vector<1x288xf32>
    %98 = vector.shape_cast %97 : vector<1x288xf32> to vector<288xf32>
    %99 = vector.shape_cast %98 : vector<288xf32> to vector<1x288xf32>
    %100 = vector.broadcast %99 : vector<1x288xf32> to vector<12x288xf32>
    %101 = arith.mulf %96, %100 : vector<12x288xf32>
    %102 = arith.addf %95, %101 : vector<12x288xf32>
    %c8_52 = arith.constant 8 : index
    %c0_53 = arith.constant 0 : index
    %103 = vector.load %arg11[%c8_52, %c0_53] : memref<28x288xf32, #tpu.memory_space<vmem>>, vector<12x288xf32>
    %c8_54 = arith.constant 8 : index
    %c0_55 = arith.constant 0 : index
    %104 = vector.load %arg5[%c8_54, %c0_55] : memref<17x288xf32, #tpu.memory_space<vmem>>, vector<1x288xf32>
    %105 = vector.shape_cast %104 : vector<1x288xf32> to vector<288xf32>
    %106 = vector.shape_cast %105 : vector<288xf32> to vector<1x288xf32>
    %107 = vector.broadcast %106 : vector<1x288xf32> to vector<12x288xf32>
    %108 = arith.mulf %103, %107 : vector<12x288xf32>
    %109 = arith.addf %102, %108 : vector<12x288xf32>
    %c9 = arith.constant 9 : index
    %c0_56 = arith.constant 0 : index
    %110 = vector.load %arg11[%c9, %c0_56] : memref<28x288xf32, #tpu.memory_space<vmem>>, vector<12x288xf32>
    %c9_57 = arith.constant 9 : index
    %c0_58 = arith.constant 0 : index
    %111 = vector.load %arg5[%c9_57, %c0_58] : memref<17x288xf32, #tpu.memory_space<vmem>>, vector<1x288xf32>
    %112 = vector.shape_cast %111 : vector<1x288xf32> to vector<288xf32>
    %113 = vector.shape_cast %112 : vector<288xf32> to vector<1x288xf32>
    %114 = vector.broadcast %113 : vector<1x288xf32> to vector<12x288xf32>
    %115 = arith.mulf %110, %114 : vector<12x288xf32>
    %116 = arith.addf %109, %115 : vector<12x288xf32>
    %c10 = arith.constant 10 : index
    %c0_59 = arith.constant 0 : index
    %117 = vector.load %arg11[%c10, %c0_59] : memref<28x288xf32, #tpu.memory_space<vmem>>, vector<12x288xf32>
    %c10_60 = arith.constant 10 : index
    %c0_61 = arith.constant 0 : index
    %118 = vector.load %arg5[%c10_60, %c0_61] : memref<17x288xf32, #tpu.memory_space<vmem>>, vector<1x288xf32>
    %119 = vector.shape_cast %118 : vector<1x288xf32> to vector<288xf32>
    %120 = vector.shape_cast %119 : vector<288xf32> to vector<1x288xf32>
    %121 = vector.broadcast %120 : vector<1x288xf32> to vector<12x288xf32>
    %122 = arith.mulf %117, %121 : vector<12x288xf32>
    %123 = arith.addf %116, %122 : vector<12x288xf32>
    %c11 = arith.constant 11 : index
    %c0_62 = arith.constant 0 : index
    %124 = vector.load %arg11[%c11, %c0_62] : memref<28x288xf32, #tpu.memory_space<vmem>>, vector<12x288xf32>
    %c11_63 = arith.constant 11 : index
    %c0_64 = arith.constant 0 : index
    %125 = vector.load %arg5[%c11_63, %c0_64] : memref<17x288xf32, #tpu.memory_space<vmem>>, vector<1x288xf32>
    %126 = vector.shape_cast %125 : vector<1x288xf32> to vector<288xf32>
    %127 = vector.shape_cast %126 : vector<288xf32> to vector<1x288xf32>
    %128 = vector.broadcast %127 : vector<1x288xf32> to vector<12x288xf32>
    %129 = arith.mulf %124, %128 : vector<12x288xf32>
    %130 = arith.addf %123, %129 : vector<12x288xf32>
    %c12 = arith.constant 12 : index
    %c0_65 = arith.constant 0 : index
    %131 = vector.load %arg11[%c12, %c0_65] : memref<28x288xf32, #tpu.memory_space<vmem>>, vector<12x288xf32>
    %c12_66 = arith.constant 12 : index
    %c0_67 = arith.constant 0 : index
    %132 = vector.load %arg5[%c12_66, %c0_67] : memref<17x288xf32, #tpu.memory_space<vmem>>, vector<1x288xf32>
    %133 = vector.shape_cast %132 : vector<1x288xf32> to vector<288xf32>
    %134 = vector.shape_cast %133 : vector<288xf32> to vector<1x288xf32>
    %135 = vector.broadcast %134 : vector<1x288xf32> to vector<12x288xf32>
    %136 = arith.mulf %131, %135 : vector<12x288xf32>
    %137 = arith.addf %130, %136 : vector<12x288xf32>
    %c13 = arith.constant 13 : index
    %c0_68 = arith.constant 0 : index
    %138 = vector.load %arg11[%c13, %c0_68] : memref<28x288xf32, #tpu.memory_space<vmem>>, vector<12x288xf32>
    %c13_69 = arith.constant 13 : index
    %c0_70 = arith.constant 0 : index
    %139 = vector.load %arg5[%c13_69, %c0_70] : memref<17x288xf32, #tpu.memory_space<vmem>>, vector<1x288xf32>
    %140 = vector.shape_cast %139 : vector<1x288xf32> to vector<288xf32>
    %141 = vector.shape_cast %140 : vector<288xf32> to vector<1x288xf32>
    %142 = vector.broadcast %141 : vector<1x288xf32> to vector<12x288xf32>
    %143 = arith.mulf %138, %142 : vector<12x288xf32>
    %144 = arith.addf %137, %143 : vector<12x288xf32>
    %c14 = arith.constant 14 : index
    %c0_71 = arith.constant 0 : index
    %145 = vector.load %arg11[%c14, %c0_71] : memref<28x288xf32, #tpu.memory_space<vmem>>, vector<12x288xf32>
    %c14_72 = arith.constant 14 : index
    %c0_73 = arith.constant 0 : index
    %146 = vector.load %arg5[%c14_72, %c0_73] : memref<17x288xf32, #tpu.memory_space<vmem>>, vector<1x288xf32>
    %147 = vector.shape_cast %146 : vector<1x288xf32> to vector<288xf32>
    %148 = vector.shape_cast %147 : vector<288xf32> to vector<1x288xf32>
    %149 = vector.broadcast %148 : vector<1x288xf32> to vector<12x288xf32>
    %150 = arith.mulf %145, %149 : vector<12x288xf32>
    %151 = arith.addf %144, %150 : vector<12x288xf32>
    %c15 = arith.constant 15 : index
    %c0_74 = arith.constant 0 : index
    %152 = vector.load %arg11[%c15, %c0_74] : memref<28x288xf32, #tpu.memory_space<vmem>>, vector<12x288xf32>
    %c15_75 = arith.constant 15 : index
    %c0_76 = arith.constant 0 : index
    %153 = vector.load %arg5[%c15_75, %c0_76] : memref<17x288xf32, #tpu.memory_space<vmem>>, vector<1x288xf32>
    %154 = vector.shape_cast %153 : vector<1x288xf32> to vector<288xf32>
    %155 = vector.shape_cast %154 : vector<288xf32> to vector<1x288xf32>
    %156 = vector.broadcast %155 : vector<1x288xf32> to vector<12x288xf32>
    %157 = arith.mulf %152, %156 : vector<12x288xf32>
    %158 = arith.addf %151, %157 : vector<12x288xf32>
    %c16 = arith.constant 16 : index
    %c0_77 = arith.constant 0 : index
    %159 = vector.load %arg11[%c16, %c0_77] : memref<28x288xf32, #tpu.memory_space<vmem>>, vector<12x288xf32>
    %c16_78 = arith.constant 16 : index
    %c0_79 = arith.constant 0 : index
    %160 = vector.load %arg5[%c16_78, %c0_79] : memref<17x288xf32, #tpu.memory_space<vmem>>, vector<1x288xf32>
    %161 = vector.shape_cast %160 : vector<1x288xf32> to vector<288xf32>
    %162 = vector.shape_cast %161 : vector<288xf32> to vector<1x288xf32>
    %163 = vector.broadcast %162 : vector<1x288xf32> to vector<12x288xf32>
    %164 = arith.mulf %159, %163 : vector<12x288xf32>
    %165 = arith.addf %158, %164 : vector<12x288xf32>
    %cst_80 = arith.constant 0.000000e+00 : bf16
    %166 = vector.broadcast %cst_80 : bf16 to vector<4x288xbf16>
    %c0_81 = arith.constant 0 : index
    %c12_82 = arith.constant 12 : index
    %c0_83 = arith.constant 0 : index
    %167 = vector.load %arg9[%c0_81, %c12_82, %c0_83] : memref<1x16x288xbf16, #tpu.memory_space<vmem>>, vector<1x4x288xbf16>
    %168 = vector.shape_cast %167 : vector<1x4x288xbf16> to vector<4x288xbf16>
    %169 = vector.shape_cast %166 : vector<4x288xbf16> to vector<1x4x288xbf16>
    tpu.vector_store %arg9[%c0_81, %c12_82, %c0_83], %169 {strides = array<i32>} : memref<1x16x288xbf16, #tpu.memory_space<vmem>>, vector<1x4x288xbf16>,
    %170 = arith.truncf %165 : vector<12x288xf32> to vector<12x288xbf16>
    %c0_84 = arith.constant 0 : index
    %c0_85 = arith.constant 0 : index
    %c0_86 = arith.constant 0 : index
    %171 = vector.load %arg9[%c0_84, %c0_85, %c0_86] : memref<1x16x288xbf16, #tpu.memory_space<vmem>>, vector<1x12x288xbf16>
    %172 = vector.shape_cast %171 : vector<1x12x288xbf16> to vector<12x288xbf16>
    %173 = vector.shape_cast %170 : vector<12x288xbf16> to vector<1x12x288xbf16>
    tpu.vector_store %arg9[%c0_84, %c0_85, %c0_86], %173 {strides = array<i32>} : memref<1x16x288xbf16, #tpu.memory_space<vmem>>, vector<1x12x288xbf16>,
    %174 = vector.extract_strided_slice %165 {offsets = [0, 256], sizes = [12, 32], strides = [1, 1]} : vector<12x288xf32> to vector<12x32xf32>
    %c3_87 = arith.constant 3 : index
    %c0_88 = arith.constant 0 : index
    %175 = vector.load %arg6[%c3_87, %c0_88] : memref<16x32xf32, #tpu.memory_space<vmem>>, vector<1x32xf32>
    %176 = vector.shape_cast %175 : vector<1x32xf32> to vector<32xf32>
    %177 = vector.shape_cast %176 : vector<32xf32> to vector<1x32xf32>
    %178 = vector.broadcast %177 : vector<1x32xf32> to vector<12x32xf32>
    %179 = arith.mulf %174, %178 : vector<12x32xf32>
    %c7_89 = arith.constant 7 : index
    %c0_90 = arith.constant 0 : index
    %180 = vector.load %arg6[%c7_89, %c0_90] : memref<16x32xf32, #tpu.memory_space<vmem>>, vector<1x32xf32>
    %181 = vector.shape_cast %180 : vector<1x32xf32> to vector<32xf32>
    %182 = vector.shape_cast %181 : vector<32xf32> to vector<1x32xf32>
    %183 = vector.broadcast %182 : vector<1x32xf32> to vector<12x32xf32>
    %184 = arith.addf %179, %183 : vector<12x32xf32>
    %c0_91 = arith.constant 0 : index
    %c0_92 = arith.constant 0 : index
    %185 = vector.load %arg7[%c0_91, %c0_92] : memref<16x64xf32, #tpu.memory_space<vmem>>, vector<12x64xf32>
    %186 = vector.extract_strided_slice %185 {offsets = [0, 0], sizes = [12, 32], strides = [1, 1]} : vector<12x64xf32> to vector<12x32xf32>
    %187 = vector.extract_strided_slice %185 {offsets = [0, 32], sizes = [12, 32], strides = [1, 1]} : vector<12x64xf32> to vector<12x32xf32>
    %188 = arith.mulf %184, %186 : vector<12x32xf32>
    %189 = arith.truncf %184 : vector<12x32xf32> to vector<12x32xbf16>
    %c0_93 = arith.constant 0 : index
    %c0_94 = arith.constant 0 : index
    %190 = vector.load %arg8[%c0_93, %c0_94] : memref<32x32xbf16, #tpu.memory_space<vmem>>, vector<32x32xbf16>
    %cst_95 = arith.constant dense<0.000000e+00> : vector<12x32xf32>
    %191 = tpu.matmul %189, %190, %cst_95 {dimension_numbers = #tpu.dot_dimension_numbers<[1], [0], [0], [1], [0, 0, 1, 1], [], []>} : vector<12x32xbf16>, vector<32x32xbf16>, vector<12x32xf32> -> vector<12x32xf32>
    %192 = arith.mulf %191, %187 : vector<12x32xf32>
    %193 = arith.addf %188, %192 : vector<12x32xf32>
    %194 = vector.extract_strided_slice %165 {offsets = [0, 0], sizes = [12, 256], strides = [1, 1]} : vector<12x288xf32> to vector<12x256xf32>
    %195 = arith.truncf %193 : vector<12x32xf32> to vector<12x32xbf16>
    %196 = arith.truncf %194 : vector<12x256xf32> to vector<12x256xbf16>
    %cst_96 = arith.constant dense<0.000000e+00> : vector<32x256xf32>
    %197 = tpu.matmul %195, %196, %cst_96 {dimension_numbers = #tpu.dot_dimension_numbers<[0], [0], [1], [1], [0, 1, 1, 1], [], []>} : vector<12x32xbf16>, vector<12x256xbf16>, vector<32x256xf32> -> vector<32x256xf32>
    %cst_97 = arith.constant 0.0833333358 : f32
    %198 = vector.broadcast %cst_97 : f32 to vector<32x256xf32>
    %199 = arith.mulf %197, %198 : vector<32x256xf32>
    %c0_98 = arith.constant 0 : index
    %c0_99 = arith.constant 0 : index
    %c0_100 = arith.constant 0 : index
    %200 = vector.load %arg10[%c0_98, %c0_99, %c0_100] : memref<1x32x256xf32, #tpu.memory_space<vmem>>, vector<1x32x256xf32>
    %201 = vector.shape_cast %200 : vector<1x32x256xf32> to vector<32x256xf32>
    %202 = vector.shape_cast %199 : vector<32x256xf32> to vector<1x32x256xf32>
    tpu.vector_store %arg10[%c0_98, %c0_99, %c0_100], %202 {strides = array<i32>} : memref<1x32x256xf32, #tpu.memory_space<vmem>>, vector<1x32x256xf32>,
    return
  }
  func.func @transform_0(%arg0: i32) -> (i32, i32, i32) {
    %c0_i32 = arith.constant 0 : i32
    %c0_i32_0 = arith.constant 0 : i32
    %c0_i32_1 = arith.constant 0 : i32
    return %arg0, %c0_i32, %c0_i32_0 : i32, i32, i32
  }
  func.func @transform_1(%arg0: i32) -> (i32, i32) {
    %c0_i32 = arith.constant 0 : i32
    %c0_i32_0 = arith.constant 0 : i32
    %c0_i32_1 = arith.constant 0 : i32
    return %c0_i32, %c0_i32_0 : i32, i32
  }
  func.func @transform_2(%arg0: i32) -> (i32, i32) {
    %c0_i32 = arith.constant 0 : i32
    %c0_i32_0 = arith.constant 0 : i32
    %c0_i32_1 = arith.constant 0 : i32
    return %c0_i32, %c0_i32_0 : i32, i32
  }
  func.func @transform_3(%arg0: i32) -> (i32, i32) {
    %c0_i32 = arith.constant 0 : i32
    %c0_i32_0 = arith.constant 0 : i32
    %c0_i32_1 = arith.constant 0 : i32
    return %c0_i32, %c0_i32_0 : i32, i32
  }
  func.func @transform_4(%arg0: i32) -> (i32, i32) {
    %c0_i32 = arith.constant 0 : i32
    %c0_i32_0 = arith.constant 0 : i32
    %c0_i32_1 = arith.constant 0 : i32
    return %c0_i32, %c0_i32_0 : i32, i32
  }
  func.func @transform_5(%arg0: i32) -> (i32, i32) {
    %c0_i32 = arith.constant 0 : i32
    %c0_i32_0 = arith.constant 0 : i32
    %c0_i32_1 = arith.constant 0 : i32
    return %c0_i32, %c0_i32_0 : i32, i32
  }
  func.func @transform_6(%arg0: i32) -> (i32, i32) {
    %c0_i32 = arith.constant 0 : i32
    %c0_i32_0 = arith.constant 0 : i32
    %c0_i32_1 = arith.constant 0 : i32
    return %c0_i32, %c0_i32_0 : i32, i32
  }
  func.func @transform_7(%arg0: i32) -> (i32, i32) {
    %c0_i32 = arith.constant 0 : i32
    %c0_i32_0 = arith.constant 0 : i32
    %c0_i32_1 = arith.constant 0 : i32
    return %c0_i32, %c0_i32_0 : i32, i32
  }
  func.func @transform_8(%arg0: i32) -> (i32, i32, i32) {
    %c0_i32 = arith.constant 0 : i32
    %c0_i32_0 = arith.constant 0 : i32
    %c0_i32_1 = arith.constant 0 : i32
    return %arg0, %c0_i32, %c0_i32_0 : i32, i32, i32
  }
  func.func @transform_9(%arg0: i32) -> (i32, i32, i32) {
    %c0_i32 = arith.constant 0 : i32
    %c0_i32_0 = arith.constant 0 : i32
    %c0_i32_1 = arith.constant 0 : i32
    return %arg0, %c0_i32, %c0_i32_0 : i32, i32, i32
  }
}

</mosaic_0001>

<llo_original>
// kernel: mossformer_m2_forward.13
$region0: #{mossformer_m2_forward.13}
  #allocation0 [shape = 'u32[]', space=smem, size = 0x4, offset = 0x4, fixed_abs, tag = 'smem constant byte address 0x4 - core index']
  #allocation1 [shape = 'u32[144,128]{1,0:T(1,128)}', space=vmem, size = 0x12000, scoped, tag = 'internal scratch']
  %s0 = inlined_call_operand.vmem [shape: f32[2,12,64], index: 0, kind: input, shape index: {}]
  %s1 = inlined_call_operand.vmem [shape: f32[1,64], index: 1, kind: input, shape index: {}]
  %s2 = inlined_call_operand.vmem [shape: f32[1,64], index: 2, kind: input, shape index: {}]
  %s3 = inlined_call_operand.vmem [shape: f32[2,12,64], index: 3, kind: output, shape index: {}]
  %s4 = sld [smem:[#allocation0]]
  $region45: #{mossformer_m2_forward.13} parent=0
    _
  %s6 = ssub.s32 1, %s4
  %s7 = scalar_select 0, %s6, %s4
  loop: start=0, step=1, limit=4
  $region2: #{mossformer_m2_forward.13} parent=0 // loop_pre_header
    _
  $region3: #{mossformer_m2_forward.13} parent=0 // loop_header
    %s9 = sphi 0, %s13
    %p10 = scmp.ge.s32.totalorder %s9, 4
    %s19 = sphi 0, %s21
    %s22 = sphi 0, %s19
    %s23 = sphi 0, %s22
    %s39 = sphi 0, %s23
    %s43 = sphi 0, %s43
    %s45 = sphi 0, %s43
    %s46 = sphi 0, %s45
    %s60 = sphi 0, %s46
    %s64 = sphi 0, %s64
    %s66 = sphi 0, %s64
    %s67 = sphi 0, %s66
    %s81 = sphi 0, %s67
    %s87 = sphi 0, %s89
    %s90 = sphi 0, %s87
    %s91 = sphi 0, %s90
    %s107 = sphi 0, %s91
  $region4: #{mossformer_m2_forward.13} parent=0 // loop_header_branch
    %12 = sbr.rel (%p10) target = $region8
  $region5: #{mossformer_m2_forward.13} parent=0 // loop_body
    %s14 = ssub.s32 %s9, 1
    %s15 = ssub.s32 %s9, 2
    %s16 = sadd.s32 %s9, 1
    %s17 = ssub.s32 %s9, %s16
    %p18 = scmp.eq.s32.totalorder %s17, 0
    %s20 = sadd.s32 %s19, 1
    %s21 = scalar_select %p18, %s19, %s20
    %p24 = pneg %p18
    %p25 = scmp.eq.s32.totalorder %s9, 1
    %p26 = por %p24, %p25
    %p27 = scmp.ne.s32.totalorder %s19, %s22
    %p28 = scmp.eq.s32.totalorder %s9, 0
    %p29 = por %p27, %p28
    %p30 = scmp.ne.s32.totalorder %s19, %s22
    %p31 = scmp.eq.s32.totalorder %s14, 1
    %p32 = por %p30, %p31
    %p33 = scmp.ne.s32.totalorder %s22, %s23
    %p34 = scmp.eq.s32.totalorder %s14, 0
    %p35 = por %p33, %p34
    %p36 = scmp.ne.s32.totalorder %s22, %s23
    %p37 = scmp.eq.s32.totalorder %s15, 1
    %p38 = por %p36, %p37
    %p40 = scmp.ne.s32.totalorder %s23, %s39
    %p41 = scmp.eq.s32.totalorder %s15, 0
    %p42 = por %p40, %p41
    %s44 = sadd.s32 %s43, 1
    %p47 = scmp.eq.s32.totalorder %s9, 1
    %p48 = scmp.ne.s32.totalorder %s43, %s45
    %p49 = scmp.eq.s32.totalorder %s9, 0
    %p50 = por %p48, %p49
    %p51 = scmp.ne.s32.totalorder %s43, %s45
    %p52 = scmp.eq.s32.totalorder %s14, 1
    %p53 = por %p51, %p52
    %p54 = scmp.ne.s32.totalorder %s45, %s46
    %p55 = scmp.eq.s32.totalorder %s14, 0
    %p56 = por %p54, %p55
    %p57 = scmp.ne.s32.totalorder %s45, %s46
    %p58 = scmp.eq.s32.totalorder %s15, 1
    %p59 = por %p57, %p58
    %p61 = scmp.ne.s32.totalorder %s46, %s60
    %p62 = scmp.eq.s32.totalorder %s15, 0
    %p63 = por %p61, %p62
    %s65 = sadd.s32 %s64, 1
    %p68 = scmp.eq.s32.totalorder %s9, 1
    %p69 = scmp.ne.s32.totalorder %s64, %s66
    %p70 = scmp.eq.s32.totalorder %s9, 0
    %p71 = por %p69, %p70
    %p72 = scmp.ne.s32.totalorder %s64, %s66
    %p73 = scmp.eq.s32.totalorder %s14, 1
    %p74 = por %p72, %p73
    %p75 = scmp.ne.s32.totalorder %s66, %s67
    %p76 = scmp.eq.s32.totalorder %s14, 0
    %p77 = por %p75, %p76
    %p78 = scmp.ne.s32.totalorder %s66, %s67
    %p79 = scmp.eq.s32.totalorder %s15, 1
    %p80 = por %p78, %p79
    %p82 = scmp.ne.s32.totalorder %s67, %s81
    %p83 = scmp.eq.s32.totalorder %s15, 0
    %p84 = por %p82, %p83
    %s85 = ssub.s32 %s9, %s16
    %p86 = scmp.eq.s32.totalorder %s85, 0
    %s88 = sadd.s32 %s87, 1
    %s89 = scalar_select %p86, %s87, %s88
    %p92 = pneg %p86
    %p93 = scmp.eq.s32.totalorder %s9, 1
    %p94 = por %p92, %p93
    %p95 = scmp.ne.s32.totalorder %s87, %s90
    %p96 = scmp.eq.s32.totalorder %s9, 0
    %p97 = por %p95, %p96
    %p98 = scmp.ne.s32.totalorder %s87, %s90
    %p99 = scmp.eq.s32.totalorder %s14, 1
    %p100 = por %p98, %p99
    %p101 = scmp.ne.s32.totalorder %s90, %s91
    %p102 = scmp.eq.s32.totalorder %s14, 0
    %p103 = por %p101, %p102
    %p104 = scmp.ne.s32.totalorder %s90, %s91
    %p105 = scmp.eq.s32.totalorder %s15, 1
    %p106 = por %p104, %p105
    %p108 = scmp.ne.s32.totalorder %s91, %s107
    %p109 = scmp.eq.s32.totalorder %s15, 0
    %p110 = por %p108, %p109
    %p111 = scmp.le.s32.totalorder 1, %s9
    %p112 = scmp.lt.s32.totalorder %s9, 3
    %p113 = pnand %p111, %p112
    %p114 = pneg %p113
    // Predicated region
    $region9: #{mossformer_m2_forward.13} parent=5 // pred_check
      _
    $region10: #{mossformer_m2_forward.13} parent=5 // pred_check_branch
      %116 = sbr.rel (%p113) target = $region12
    $region11: #{mossformer_m2_forward.13} parent=5 // pred_region
      %s117 = ssub.s32 %s9, 1
      // Predicated region
      $region13: #{mossformer_m2_forward.13} parent=11 // pred_check
        %p118 = pneg %p56
      $region14: #{mossformer_m2_forward.13} parent=11 // pred_check_branch
        %120 = sbr.rel (%p118) target = $region16
      $region15: #{mossformer_m2_forward.13} parent=11 // pred_region
        _
      $region16: #{mossformer_m2_forward.13} parent=11 // pred_fallthru
        _
      // Predicated region
      $region17: #{mossformer_m2_forward.13} parent=11 // pred_check
        %p121 = pneg %p77
      $region18: #{mossformer_m2_forward.13} parent=11 // pred_check_branch
        %123 = sbr.rel (%p121) target = $region20
      $region19: #{mossformer_m2_forward.13} parent=11 // pred_region
        _
      $region20: #{mossformer_m2_forward.13} parent=11 // pred_fallthru
        _
    $region12: #{mossformer_m2_forward.13} parent=5 // pred_fallthru
      _
    %p124 = scmp.lt.s32.totalorder %s9, 2
    // Predicated region
    $region21: #{mossformer_m2_forward.13} parent=5 // pred_check
      %p125 = pneg %p124
    $region22: #{mossformer_m2_forward.13} parent=5 // pred_check_branch
      %127 = sbr.rel (%p125) target = $region24
    $region23: #{mossformer_m2_forward.13} parent=5 // pred_region
      // Predicated region
      $region25: #{mossformer_m2_forward.13} parent=23 // pred_check
        %p128 = pneg %p29
      $region26: #{mossformer_m2_forward.13} parent=23 // pred_check_branch
        %130 = sbr.rel (%p128) target = $region28
      $region27: #{mossformer_m2_forward.13} parent=23 // pred_region
        %p131 = scmp.lt.s32.totalorder %s9, 1
        %s132 = scalar_select %p131, %s9, 1
        %s133 = smul.addr %s132, 2
        %s134 = smul.addr %s133, 8
        %s135 = scalar_lea.vmem %s0, %s134
      $region28: #{mossformer_m2_forward.13} parent=23 // pred_fallthru
        _
    $region24: #{mossformer_m2_forward.13} parent=5 // pred_fallthru
      _
    %p136 = scmp.le.s32.totalorder 1, %s9
    %p137 = scmp.lt.s32.totalorder %s9, 3
    %p138 = pnand %p136, %p137
    %p139 = pneg %p138
    // Predicated region
    $region29: #{mossformer_m2_forward.13} parent=5 // pred_check
      _
    $region30: #{mossformer_m2_forward.13} parent=5 // pred_check_branch
      %141 = sbr.rel (%p138) target = $region32
    $region31: #{mossformer_m2_forward.13} parent=5 // pred_region
      %s142 = ssub.s32 %s9, 1
      %p143 = scmp.lt.s32.totalorder %s14, 1
      %s144 = scalar_select %p143, %s14, 1
      %s145 = smul.addr %s144, 2
      %s146 = smul.addr %s145, 8
      %s147 = scalar_lea.vmem %s0, %s146
      %p148 = pneg %p35
      %p149 = pneg %p32
      %p150 = pneg %p56
      %p151 = pneg %p53
      %p152 = pneg %p77
      %p153 = pneg %p74
      %p154 = pneg %p103
      %p155 = pneg %p100
      %p156 = scmp.lt.s32.totalorder %s14, 1
      %s157 = scalar_select %p156, %s14, 1
      %s158 = smul.addr %s157, 2
      %s159 = smul.addr %s158, 8
      %s160 = scalar_lea.vmem %s3, %s159
      %p161 = scmp.lt.s32.totalorder %s14, 1
      %s162 = scalar_select %p161, %s14, 1
      %s163 = smul.addr %s162, 2
      %s164 = smul.addr %s163, 8
      %s165 = scalar_lea.vmem %s0, %s164
      %p166 = scmp.lt.s32.totalorder %s14, 1
      %s167 = scalar_select %p166, %s14, 1
      %s168 = smul.addr %s167, 2
      %s169 = smul.addr %s168, 8
      %s170 = scalar_lea.vmem %s3, %s169
      %v171 = vld [vmem:[%s165] sm:$0xff]
      %v172 = vld [vmem:[%s165 + $0x8] sm:$0xf]
      %vm173 = vcmask 523264
      %v174 = vsel %vm173, %v171, 0.0
      %175 = vadd.xlane.f32.xlu0 %v174
      %v176 = vpop.xlane.xlu0 %175
      %vm177 = vcmask 519168
      %v178 = vsel %vm177, %v172, 0.0
      %179 = vadd.xlane.f32.xlu0 %v178
      %v180 = vpop.xlane.xlu0 %179
      %v181 = vrcp.pop 64.0
      %v182 = vmul.f32 %v176, %v181
      %v183 = vmul.f32 %v180, %v181
      %v184 = vsub.f32 %v171, %v182
      %v185 = vsub.f32 %v172, %v183
      %v186 = vmul.f32 %v184, %v184
      %v187 = vmul.f32 %v185, %v185
      %v188 = vsel %vm173, %v186, 0.0
      %189 = vadd.xlane.f32.xlu0 %v188
      %v190 = vpop.xlane.xlu0 %189
      %v191 = vsel %vm177, %v187, 0.0
      %192 = vadd.xlane.f32.xlu0 %v191
      %v193 = vpop.xlane.xlu0 %192
      %v194 = vmul.f32 %v190, %v181
      %v195 = vmul.f32 %v193, %v181
      %v196 = vadd.f32 %v194, 1e-06
      %v197 = vadd.f32 %v195, 1e-06
      %v198 = vrsqrt.pop %v196
      %v199 = vrsqrt.pop %v197
      %v200 = vmul.f32 %v184, %v198
      %v201 = vmul.f32 %v185, %v199
      %v202 = vld [vmem:[%s1] sm:$0x1]
      %v204 = vlaneseq
      %v205 = vshrl.u32 %v204, 7
      %v206 = vsub.s32 0, %v205
      %v207 = vrot.slane %v202, %v206
      %v209 = vmul.f32 %v200, %v207
      %v210 = vmul.f32 %v201, %v207
      %v211 = vld [vmem:[%s2] sm:$0x1]
      %v213 = vlaneseq
      %v214 = vshrl.u32 %v213, 7
      %v215 = vsub.s32 0, %v214
      %v216 = vrot.slane %v211, %v215
      %v218 = vadd.f32 %v209, %v216
      %v219 = vadd.f32 %v210, %v216
      %220 = vst.msk [vmem:[%s170] sm:$0xff] %vm173, %v218
      %221 = vst.msk [vmem:[%s170 + $0x8] sm:$0xf] %vm177, %v219
      %p222 = scmp.lt.s32.totalorder %s14, 1
      %s223 = scalar_select %p222, %s14, 1
      %s224 = smul.addr %s223, 2
      %s225 = smul.addr %s224, 8
      %s226 = scalar_lea.vmem %s3, %s225
      // Predicated region
      $region33: #{mossformer_m2_forward.13} parent=31 // pred_check
        %p227 = pneg %p100
      $region34: #{mossformer_m2_forward.13} parent=31 // pred_check_branch
        %229 = sbr.rel (%p227) target = $region36
      $region35: #{mossformer_m2_forward.13} parent=31 // pred_region
        _
      $region36: #{mossformer_m2_forward.13} parent=31 // pred_fallthru
        _
    $region32: #{mossformer_m2_forward.13} parent=5 // pred_fallthru
      _
    %p230 = scmp.le.s32.totalorder 2, %s9
    // Predicated region
    $region37: #{mossformer_m2_forward.13} parent=5 // pred_check
      %p231 = pneg %p230
    $region38: #{mossformer_m2_forward.13} parent=5 // pred_check_branch
      %233 = sbr.rel (%p231) target = $region40
    $region39: #{mossformer_m2_forward.13} parent=5 // pred_region
      %s234 = ssub.s32 %s9, 2
      // Predicated region
      $region41: #{mossformer_m2_forward.13} parent=39 // pred_check
        %p235 = pneg %p106
      $region42: #{mossformer_m2_forward.13} parent=39 // pred_check_branch
        %237 = sbr.rel (%p235) target = $region44
      $region43: #{mossformer_m2_forward.13} parent=39 // pred_region
        %p238 = scmp.lt.s32.totalorder %s15, 1
        %s239 = scalar_select %p238, %s15, 1
        %s240 = smul.addr %s239, 2
        %s241 = smul.addr %s240, 8
        %s242 = scalar_lea.vmem %s3, %s241
      $region44: #{mossformer_m2_forward.13} parent=39 // pred_fallthru
        _
    $region40: #{mossformer_m2_forward.13} parent=5 // pred_fallthru
      _
  $region6: #{mossformer_m2_forward.13} parent=0 // loop_footer
    %s13 = sadd.s32 1, %s9
  $region7: #{mossformer_m2_forward.13} parent=0 // loop_footer_branch
    %8 = sbr.rel target = $region3
  $region8: #{mossformer_m2_forward.13} parent=0 // loop_exit
    _

// kernel: mossformer_m2_forward.9
$region0: #{mossformer_m2_forward.9}
  #allocation0 [shape = 'u32[]', space=smem, size = 0x4, offset = 0x4, fixed_abs, tag = 'smem constant byte address 0x4 - core index']
  #allocation1 [shape = 'u32[144,128]{1,0:T(1,128)}', space=vmem, size = 0x12000, scoped, tag = 'internal scratch']
  #allocation2 [shape = 'f32[28,64]{1,0:T(8,128)}', space=vmem, size = 0x4000, scoped, tag = 'scratch operand']
  %s0 = inlined_call_operand.vmem [shape: bf16[2,16,128], index: 0, kind: input, shape index: {}]
  %s1 = inlined_call_operand.vmem [shape: f32[2,12,64], index: 1, kind: input, shape index: {}]
  %s2 = inlined_call_operand.vmem [shape: bf16[128,64], index: 2, kind: input, shape index: {}]
  %s3 = inlined_call_operand.vmem [shape: f32[1,64], index: 3, kind: input, shape index: {}]
  %s4 = inlined_call_operand.vmem [shape: f32[17,64], index: 4, kind: input, shape index: {}]
  %s5 = inlined_call_operand.vmem [shape: f32[2,12,64], index: 5, kind: output, shape index: {}]
  %s6 = sld [smem:[#allocation0]]
  $region53: #{mossformer_m2_forward.9} parent=0
    _
  %s8 = ssub.s32 1, %s6
  %s9 = scalar_select 0, %s8, %s6
  loop: start=0, step=1, limit=4
  $region2: #{mossformer_m2_forward.9} parent=0 // loop_pre_header
    _
  $region3: #{mossformer_m2_forward.9} parent=0 // loop_header
    %s11 = sphi 0, %s15
    %p12 = scmp.ge.s32.totalorder %s11, 4
    %s21 = sphi 0, %s23
    %s24 = sphi 0, %s21
    %s25 = sphi 0, %s24
    %s41 = sphi 0, %s25
    %s47 = sphi 0, %s49
    %s50 = sphi 0, %s47
    %s51 = sphi 0, %s50
    %s67 = sphi 0, %s51
    %s71 = sphi 0, %s71
    %s73 = sphi 0, %s71
    %s74 = sphi 0, %s73
    %s88 = sphi 0, %s74
    %s92 = sphi 0, %s92
    %s94 = sphi 0, %s92
    %s95 = sphi 0, %s94
    %s109 = sphi 0, %s95
    %s113 = sphi 0, %s113
    %s115 = sphi 0, %s113
    %s116 = sphi 0, %s115
    %s130 = sphi 0, %s116
    %s136 = sphi 0, %s138
    %s139 = sphi 0, %s136
    %s140 = sphi 0, %s139
    %s156 = sphi 0, %s140
  $region4: #{mossformer_m2_forward.9} parent=0 // loop_header_branch
    %14 = sbr.rel (%p12) target = $region8
  $region5: #{mossformer_m2_forward.9} parent=0 // loop_body
    %s16 = ssub.s32 %s11, 1
    %s17 = ssub.s32 %s11, 2
    %s18 = sadd.s32 %s11, 1
    %s19 = ssub.s32 %s11, %s18
    %p20 = scmp.eq.s32.totalorder %s19, 0
    %s22 = sadd.s32 %s21, 1
    %s23 = scalar_select %p20, %s21, %s22
    %p26 = pneg %p20
    %p27 = scmp.eq.s32.totalorder %s11, 1
    %p28 = por %p26, %p27
    %p29 = scmp.ne.s32.totalorder %s21, %s24
    %p30 = scmp.eq.s32.totalorder %s11, 0
    %p31 = por %p29, %p30
    %p32 = scmp.ne.s32.totalorder %s21, %s24
    %p33 = scmp.eq.s32.totalorder %s16, 1
    %p34 = por %p32, %p33
    %p35 = scmp.ne.s32.totalorder %s24, %s25
    %p36 = scmp.eq.s32.totalorder %s16, 0
    %p37 = por %p35, %p36
    %p38 = scmp.ne.s32.totalorder %s24, %s25
    %p39 = scmp.eq.s32.totalorder %s17, 1
    %p40 = por %p38, %p39
    %p42 = scmp.ne.s32.totalorder %s25, %s41
    %p43 = scmp.eq.s32.totalorder %s17, 0
    %p44 = por %p42, %p43
    %s45 = ssub.s32 %s11, %s18
    %p46 = scmp.eq.s32.totalorder %s45, 0
    %s48 = sadd.s32 %s47, 1
    %s49 = scalar_select %p46, %s47, %s48
    %p52 = pneg %p46
    %p53 = scmp.eq.s32.totalorder %s11, 1
    %p54 = por %p52, %p53
    %p55 = scmp.ne.s32.totalorder %s47, %s50
    %p56 = scmp.eq.s32.totalorder %s11, 0
    %p57 = por %p55, %p56
    %p58 = scmp.ne.s32.totalorder %s47, %s50
    %p59 = scmp.eq.s32.totalorder %s16, 1
    %p60 = por %p58, %p59
    %p61 = scmp.ne.s32.totalorder %s50, %s51
    %p62 = scmp.eq.s32.totalorder %s16, 0
    %p63 = por %p61, %p62
    %p64 = scmp.ne.s32.totalorder %s50, %s51
    %p65 = scmp.eq.s32.totalorder %s17, 1
    %p66 = por %p64, %p65
    %p68 = scmp.ne.s32.totalorder %s51, %s67
    %p69 = scmp.eq.s32.totalorder %s17, 0
    %p70 = por %p68, %p69
    %s72 = sadd.s32 %s71, 1
    %p75 = scmp.eq.s32.totalorder %s11, 1
    %p76 = scmp.ne.s32.totalorder %s71, %s73
    %p77 = scmp.eq.s32.totalorder %s11, 0
    %p78 = por %p76, %p77
    %p79 = scmp.ne.s32.totalorder %s71, %s73
    %p80 = scmp.eq.s32.totalorder %s16, 1
    %p81 = por %p79, %p80
    %p82 = scmp.ne.s32.totalorder %s73, %s74
    %p83 = scmp.eq.s32.totalorder %s16, 0
    %p84 = por %p82, %p83
    %p85 = scmp.ne.s32.totalorder %s73, %s74
    %p86 = scmp.eq.s32.totalorder %s17, 1
    %p87 = por %p85, %p86
    %p89 = scmp.ne.s32.totalorder %s74, %s88
    %p90 = scmp.eq.s32.totalorder %s17, 0
    %p91 = por %p89, %p90
    %s93 = sadd.s32 %s92, 1
    %p96 = scmp.eq.s32.totalorder %s11, 1
    %p97 = scmp.ne.s32.totalorder %s92, %s94
    %p98 = scmp.eq.s32.totalorder %s11, 0
    %p99 = por %p97, %p98
    %p100 = scmp.ne.s32.totalorder %s92, %s94
    %p101 = scmp.eq.s32.totalorder %s16, 1
    %p102 = por %p100, %p101
    %p103 = scmp.ne.s32.totalorder %s94, %s95
    %p104 = scmp.eq.s32.totalorder %s16, 0
    %p105 = por %p103, %p104
    %p106 = scmp.ne.s32.totalorder %s94, %s95
    %p107 = scmp.eq.s32.totalorder %s17, 1
    %p108 = por %p106, %p107
    %p110 = scmp.ne.s32.totalorder %s95, %s109
    %p111 = scmp.eq.s32.totalorder %s17, 0
    %p112 = por %p110, %p111
    %s114 = sadd.s32 %s113, 1
    %p117 = scmp.eq.s32.totalorder %s11, 1
    %p118 = scmp.ne.s32.totalorder %s113, %s115
    %p119 = scmp.eq.s32.totalorder %s11, 0
    %p120 = por %p118, %p119
    %p121 = scmp.ne.s32.totalorder %s113, %s115
    %p122 = scmp.eq.s32.totalorder %s16, 1
    %p123 = por %p121, %p122
    %p124 = scmp.ne.s32.totalorder %s115, %s116
    %p125 = scmp.eq.s32.totalorder %s16, 0
    %p126 = por %p124, %p125
    %p127 = scmp.ne.s32.totalorder %s115, %s116
    %p128 = scmp.eq.s32.totalorder %s17, 1
    %p129 = por %p127, %p128
    %p131 = scmp.ne.s32.totalorder %s116, %s130
    %p132 = scmp.eq.s32.totalorder %s17, 0
    %p133 = por %p131, %p132
    %s134 = ssub.s32 %s11, %s18
    %p135 = scmp.eq.s32.totalorder %s134, 0
    %s137 = sadd.s32 %s136, 1
    %s138 = scalar_select %p135, %s136, %s137
    %p141 = pneg %p135
    %p142 = scmp.eq.s32.totalorder %s11, 1
    %p143 = por %p141, %p142
    %p144 = scmp.ne.s32.totalorder %s136, %s139
    %p145 = scmp.eq.s32.totalorder %s11, 0
    %p146 = por %p144, %p145
    %p147 = scmp.ne.s32.totalorder %s136, %s139
    %p148 = scmp.eq.s32.totalorder %s16, 1
    %p149 = por %p147, %p148
    %p150 = scmp.ne.s32.totalorder %s139, %s140
    %p151 = scmp.eq.s32.totalorder %s16, 0
    %p152 = por %p150, %p151
    %p153 = scmp.ne.s32.totalorder %s139, %s140
    %p154 = scmp.eq.s32.totalorder %s17, 1
    %p155 = por %p153, %p154
    %p157 = scmp.ne.s32.totalorder %s140, %s156
    %p158 = scmp.eq.s32.totalorder %s17, 0
    %p159 = por %p157, %p158
    %p160 = scmp.le.s32.totalorder 1, %s11
    %p161 = scmp.lt.s32.totalorder %s11, 3
    %p162 = pnand %p160, %p161
    %p163 = pneg %p162
    // Predicated region
    $region9: #{mossformer_m2_forward.9} parent=5 // pred_check
      _
    $region10: #{mossformer_m2_forward.9} parent=5 // pred_check_branch
      %165 = sbr.rel (%p162) target = $region12
    $region11: #{mossformer_m2_forward.9} parent=5 // pred_region
      %s166 = ssub.s32 %s11, 1
      // Predicated region
      $region13: #{mossformer_m2_forward.9} parent=11 // pred_check
        %p167 = pneg %p84
      $region14: #{mossformer_m2_forward.9} parent=11 // pred_check_branch
        %169 = sbr.rel (%p167) target = $region16
      $region15: #{mossformer_m2_forward.9} parent=11 // pred_region
        _
      $region16: #{mossformer_m2_forward.9} parent=11 // pred_fallthru
        _
      // Predicated region
      $region17: #{mossformer_m2_forward.9} parent=11 // pred_check
        %p170 = pneg %p105
      $region18: #{mossformer_m2_forward.9} parent=11 // pred_check_branch
        %172 = sbr.rel (%p170) target = $region20
      $region19: #{mossformer_m2_forward.9} parent=11 // pred_region
        _
      $region20: #{mossformer_m2_forward.9} parent=11 // pred_fallthru
        _
      // Predicated region
      $region21: #{mossformer_m2_forward.9} parent=11 // pred_check
        %p173 = pneg %p126
      $region22: #{mossformer_m2_forward.9} parent=11 // pred_check_branch
        %175 = sbr.rel (%p173) target = $region24
      $region23: #{mossformer_m2_forward.9} parent=11 // pred_region
        _
      $region24: #{mossformer_m2_forward.9} parent=11 // pred_fallthru
        _
    $region12: #{mossformer_m2_forward.9} parent=5 // pred_fallthru
      _
    %p176 = scmp.lt.s32.totalorder %s11, 2
    // Predicated region
    $region25: #{mossformer_m2_forward.9} parent=5 // pred_check
      %p177 = pneg %p176
    $region26: #{mossformer_m2_forward.9} parent=5 // pred_check_branch
      %179 = sbr.rel (%p177) target = $region28
    $region27: #{mossformer_m2_forward.9} parent=5 // pred_region
      // Predicated region
      $region29: #{mossformer_m2_forward.9} parent=27 // pred_check
        %p180 = pneg %p31
      $region30: #{mossformer_m2_forward.9} parent=27 // pred_check_branch
        %182 = sbr.rel (%p180) target = $region32
      $region31: #{mossformer_m2_forward.9} parent=27 // pred_region
        %p183 = scmp.lt.s32.totalorder %s11, 1
        %s184 = scalar_select %p183, %s11, 1
        %s185 = smul.addr %s184, 2
        %s186 = smul.addr %s185, 4
        %s187 = scalar_lea.vmem %s0, %s186
      $region32: #{mossformer_m2_forward.9} parent=27 // pred_fallthru
        _
      // Predicated region
      $region33: #{mossformer_m2_forward.9} parent=27 // pred_check
        %p188 = pneg %p57
      $region34: #{mossformer_m2_forward.9} parent=27 // pred_check_branch
        %190 = sbr.rel (%p188) target = $region36
      $region35: #{mossformer_m2_forward.9} parent=27 // pred_region
        %p191 = scmp.lt.s32.totalorder %s11, 1
        %s192 = scalar_select %p191, %s11, 1
        %s193 = smul.addr %s192, 2
        %s194 = smul.addr %s193, 8
        %s195 = scalar_lea.vmem %s1, %s194
      $region36: #{mossformer_m2_forward.9} parent=27 // pred_fallthru
        _
    $region28: #{mossformer_m2_forward.9} parent=5 // pred_fallthru
      _
    %p196 = scmp.le.s32.totalorder 1, %s11
    %p197 = scmp.lt.s32.totalorder %s11, 3
    %p198 = pnand %p196, %p197
    %p199 = pneg %p198
    // Predicated region
    $region37: #{mossformer_m2_forward.9} parent=5 // pred_check
      _
    $region38: #{mossformer_m2_forward.9} parent=5 // pred_check_branch
      %201 = sbr.rel (%p198) target = $region40
    $region39: #{mossformer_m2_forward.9} parent=5 // pred_region
      %s202 = ssub.s32 %s11, 1
      %p203 = scmp.lt.s32.totalorder %s16, 1
      %s204 = scalar_select %p203, %s16, 1
      %s205 = smul.addr %s204, 2
      %s206 = smul.addr %s205, 4
      %s207 = scalar_lea.vmem %s0, %s206
      %p208 = pneg %p37
      %p209 = pneg %p34
      %p210 = scmp.lt.s32.totalorder %s16, 1
      %s211 = scalar_select %p210, %s16, 1
      %s212 = smul.addr %s211, 2
      %s213 = smul.addr %s212, 8
      %s214 = scalar_lea.vmem %s1, %s213
      %p215 = pneg %p63
      %p216 = pneg %p60
      %p217 = pneg %p84
      %p218 = pneg %p81
      %p219 = pneg %p105
      %p220 = pneg %p102
      %p221 = pneg %p126
      %p222 = pneg %p123
      %p223 = pneg %p152
      %p224 = pneg %p149
      %p225 = scmp.lt.s32.totalorder %s16, 1
      %s226 = scalar_select %p225, %s16, 1
      %s227 = smul.addr %s226, 2
      %s228 = smul.addr %s227, 8
      %s229 = scalar_lea.vmem %s5, %s228
      %p230 = scmp.lt.s32.totalorder %s16, 1
      %s231 = scalar_select %p230, %s16, 1
      %s232 = smul.addr %s231, 2
      %s233 = smul.addr %s232, 4
      %s234 = scalar_lea.vmem %s0, %s233
      %p235 = scmp.lt.s32.totalorder %s16, 1
      %s236 = scalar_select %p235, %s16, 1
      %s237 = smul.addr %s236, 2
      %s238 = smul.addr %s237, 8
      %s239 = scalar_lea.vmem %s1, %s238
      %p240 = scmp.lt.s32.totalorder %s16, 1
      %s241 = scalar_select %p240, %s16, 1
      %s242 = smul.addr %s241, 2
      %s243 = smul.addr %s242, 8
      %s244 = scalar_lea.vmem %s5, %s243
      %v246 = vld [vmem:[%s234] sm:$0xf]
      %v247 = vld [vmem:[%s234 + $0x4] sm:$0x3]
      %v248 = vunpack.c.l.bf16 %v246
      %v249 = vunpack.c.l.bf16 %v247
      %v250 = vmul.f32 %v248, %v248
      %v251 = vmul.f32 %v249, %v249
      %252 = vadd.xlane.f32.xlu0 %v250
      %v253 = vpop.xlane.xlu0 %252
      %vm254 = vcmask 1043456
      %v255 = vsel %vm254, %v251, 0.0
      %256 = vadd.xlane.f32.xlu0 %v255
      %v257 = vpop.xlane.xlu0 %256
      %v258 = vrsqrt.pop %v253
      %v259 = vrsqrt.pop %v257
      %v260 = vmul.f32 %v258, 11.313708
      %v261 = vmul.f32 %v259, 11.313708
      %v262 = vmin.f32 %v260, 100000.0
      %v263 = vmin.f32 %v261, 100000.0
      %v264 = vmul.f32 %v248, %v262
      %v265 = vmul.f32 %v249, %v263
      %v266 = vpack.c.bf16 %v265, %v264
      %v267 = vld [vmem:[%s2] sm:$0xf]
      %v268 = vld [vmem:[%s2 + $0x4] sm:$0xf]
      %v269 = vld [vmem:[%s2 + $0x8] sm:$0xf]
      %v270 = vld [vmem:[%s2 + $0xc] sm:$0xf]
      %v271 = vld [vmem:[%s2 + $0x10] sm:$0xf]
      %v272 = vld [vmem:[%s2 + $0x14] sm:$0xf]
      %v273 = vld [vmem:[%s2 + $0x18] sm:$0xf]
      %v274 = vld [vmem:[%s2 + $0x1c] sm:$0xf]
      %v275 = vld [vmem:[%s2 + $0x20] sm:$0xf]
      %v276 = vld [vmem:[%s2 + $0x24] sm:$0xf]
      %v277 = vld [vmem:[%s2 + $0x28] sm:$0xf]
      %v278 = vld [vmem:[%s2 + $0x2c] sm:$0xf]
      %v279 = vld [vmem:[%s2 + $0x30] sm:$0xf]
      %v280 = vld [vmem:[%s2 + $0x34] sm:$0xf]
      %v281 = vld [vmem:[%s2 + $0x38] sm:$0xf]
      %v282 = vld [vmem:[%s2 + $0x3c] sm:$0xf]
      %v283 = vld [vmem:[%s3] sm:$0x1]
      %v285 = vlaneseq
      %v286 = vshrl.u32 %v285, 7
      %v287 = vsub.s32 0, %v286
      %v288 = vrot.slane %v283, %v287
      %v306 = vunpack.c.l.b16 %v267
      %v307 = vunpack.c.l.b16 %v268
      %v308 = vunpack.c.l.b16 %v269
      %v309 = vunpack.c.l.b16 %v270
      %v310 = vunpack.c.l.b16 %v271
      %v311 = vunpack.c.l.b16 %v272
      %v312 = vunpack.c.l.b16 %v273
      %v313 = vunpack.c.l.b16 %v274
      %v314 = vunpack.c.l.b16 %v275
      %v315 = vunpack.c.l.b16 %v276
      %v316 = vunpack.c.l.b16 %v277
      %v317 = vunpack.c.l.b16 %v278
      %v318 = vunpack.c.l.b16 %v279
      %v319 = vunpack.c.l.b16 %v280
      %v320 = vunpack.c.l.b16 %v281
      %v321 = vunpack.c.l.b16 %v282
      %v322 = vpack.c.b16 %v307, %v306
      %v323 = vpack.c.b16 %v309, %v308
      %v324 = vpack.c.b16 %v311, %v310
      %v325 = vpack.c.b16 %v313, %v312
      %v326 = vpack.c.b16 %v315, %v314
      %v327 = vpack.c.b16 %v317, %v316
      %v328 = vpack.c.b16 %v319, %v318
      %v329 = vpack.c.b16 %v321, %v320
      %338 = vmatprep.subr.bf16.mxu0 0
      %339 = vmatpush1.bf16.msra.mxu0 %v322
      %340 = vmatprep.subr.bf16.mxu0 0
      %341 = vmatpush1.bf16.msra.mxu0 %v323
      %342 = vmatprep.subr.bf16.mxu0 0
      %343 = vmatpush1.bf16.msra.mxu0 %v324
      %344 = vmatprep.subr.bf16.mxu0 0
      %345 = vmatpush1.bf16.msra.mxu0 %v325
      %346 = vmatprep.subr.bf16.mxu0 0
      %347 = vmatpush1.bf16.msra.mxu0 %v326
      %348 = vmatprep.subr.bf16.mxu0 0
      %349 = vmatpush1.bf16.msra.mxu0 %v327
      %350 = vmatprep.subr.bf16.mxu0 0
      %351 = vmatpush1.bf16.msra.mxu0 %v328
      %352 = vmatprep.subr.bf16.mxu0 0
      %353 = vmatpush1.bf16.msra.mxu0 %v329
      %354 = vmatprep.subr.bf16.mxu0 0
      %355 = vmatpush1.bf16.msra.mxu0 0
      %356 = vmatprep.subr.bf16.mxu0 0
      %357 = vmatpush1.bf16.msra.mxu0 0
      %358 = vmatprep.subr.bf16.mxu0 0
      %359 = vmatpush1.bf16.msra.mxu0 0
      %360 = vmatprep.subr.bf16.mxu0 0
      %361 = vmatpush1.bf16.msra.mxu0 0
      %362 = vmatprep.subr.bf16.mxu0 0
      %363 = vmatpush1.bf16.msra.mxu0 0
      %364 = vmatprep.subr.bf16.mxu0 0
      %365 = vmatpush1.bf16.msra.mxu0 0
      %366 = vmatprep.subr.bf16.mxu0 0
      %367 = vmatpush1.bf16.msra.mxu0 0
      %368 = vmatprep.subr.bf16.mxu0 0
      %369 = vmatpush1.bf16.msra.mxu0 0
      %370 = vmatprep.mubr.bf16.mxu0 0
      %371 = vmatmul.mubr.bf16.gmra.mrb[0].mxu0 %v266
      %v372 = vpop.f32.mrb[0].mxu0
      %v373 = vadd.f32 %v288, %v372
      %v374 = vpop.f32.mrb[0].mxu0
      %v375 = vpop.f32.mrb[0].mxu0
      %v376 = vadd.f32 %v288, %v375
      %v377 = vpop.f32.mrb[0].mxu0
      %378 = vdwg.mxu0
      %v379 = vxor.u32 %v373, 2147483648
      %v380 = vxor.u32 %v376, 2147483648
      %v381 = vmul.f32 %v379, 1.442695
      %v382 = vpow.pop %v381
      %v383 = vmul.f32 %v380, 1.442695
      %v384 = vpow.pop %v383
      %v385 = vadd.f32 %v382, 1.0
      %v386 = vadd.f32 %v384, 1.0
      %v387 = vrcp.pop %v385
      %v388 = vmul.f32 1.0, %v387
      %v389 = vrcp.pop %v386
      %v390 = vmul.f32 1.0, %v389
      %v391 = vmul.f32 %v373, %v388
      %v392 = vmul.f32 %v376, %v390
      %vm393 = vcmask 523264
      %394 = vst.msk [vmem:[#allocation2] sm:$0xff] %vm393, 0.0
      %395 = vst.msk [vmem:[#allocation2 + $0x8] sm:$0xff] %vm393, %v391
      %vm396 = vcmask 519168
      %397 = vst.msk [vmem:[#allocation2 + $0x10] sm:$0xf] %vm396, %v392
      %398 = vst.msk [vmem:[#allocation2 + $0x14] sm:$0xff] %vm393, 0.0
      %v399 = vld [vmem:[#allocation2] sm:$0xff]
      %v400 = vld [vmem:[#allocation2 + $0x8] sm:$0xf]
      %v401 = vld [vmem:[%s4] sm:$0x1]
      %v402 = vlaneseq
      %v403 = vshrl.u32 %v402, 7
      %v404 = vsub.s32 0, %v403
      %v405 = vrot.slane %v401, %v404
      %v406 = vmul.f32 %v399, %v405
      %v407 = vmul.f32 %v400, %v405
      %v408 = vadd.f32 %v391, %v406
      %v409 = vadd.f32 %v392, %v407
      %v410 = vld [vmem:[#allocation2 + $0x1] sm:$0xff]
      %v411 = vld [vmem:[#allocation2 + $0x9] sm:$0xf]
      %v412 = vld [vmem:[%s4 + $0x1] sm:$0x1]
      %v413 = vlaneseq
      %v414 = vshrl.u32 %v413, 7
      %v415 = vsub.s32 0, %v414
      %v416 = vrot.slane %v412, %v415
      %v417 = vmul.f32 %v410, %v416
      %v418 = vmul.f32 %v411, %v416
      %v419 = vadd.f32 %v408, %v417
      %v420 = vadd.f32 %v409, %v418
      %v421 = vld [vmem:[#allocation2 + $0x2] sm:$0xff]
      %v422 = vld [vmem:[#allocation2 + $0xa] sm:$0xf]
      %v423 = vld [vmem:[%s4 + $0x2] sm:$0x1]
      %v424 = vlaneseq
      %v425 = vshrl.u32 %v424, 7
      %v426 = vsub.s32 0, %v425
      %v427 = vrot.slane %v423, %v426
      %v428 = vmul.f32 %v421, %v427
      %v429 = vmul.f32 %v422, %v427
      %v430 = vadd.f32 %v419, %v428
      %v431 = vadd.f32 %v420, %v429
      %v432 = vld [vmem:[#allocation2 + $0x3] sm:$0xff]
      %v433 = vld [vmem:[#allocation2 + $0xb] sm:$0xf]
      %v434 = vld [vmem:[%s4 + $0x3] sm:$0x1]
      %v435 = vlaneseq
      %v436 = vshrl.u32 %v435, 7
      %v437 = vsub.s32 0, %v436
      %v438 = vrot.slane %v434, %v437
      %v439 = vmul.f32 %v432, %v438
      %v440 = vmul.f32 %v433, %v438
      %v441 = vadd.f32 %v430, %v439
      %v442 = vadd.f32 %v431, %v440
      %v443 = vld [vmem:[#allocation2 + $0x4] sm:$0xff]
      %v444 = vld [vmem:[#allocation2 + $0xc] sm:$0xf]
      %v445 = vld [vmem:[%s4 + $0x4] sm:$0x1]
      %v446 = vlaneseq
      %v447 = vshrl.u32 %v446, 7
      %v448 = vsub.s32 0, %v447
      %v449 = vrot.slane %v445, %v448
      %v450 = vmul.f32 %v443, %v449
      %v451 = vmul.f32 %v444, %v449
      %v452 = vadd.f32 %v441, %v450
      %v453 = vadd.f32 %v442, %v451
      %v454 = vld [vmem:[#allocation2 + $0x5] sm:$0xff]
      %v455 = vld [vmem:[#allocation2 + $0xd] sm:$0xf]
      %v456 = vld [vmem:[%s4 + $0x5] sm:$0x1]
      %v457 = vlaneseq
      %v458 = vshrl.u32 %v457, 7
      %v459 = vsub.s32 0, %v458
      %v460 = vrot.slane %v456, %v459
      %v461 = vmul.f32 %v454, %v460
      %v462 = vmul.f32 %v455, %v460
      %v463 = vadd.f32 %v452, %v461
      %v464 = vadd.f32 %v453, %v462
      %v465 = vld [vmem:[#allocation2 + $0x6] sm:$0xff]
      %v466 = vld [vmem:[#allocation2 + $0xe] sm:$0xf]
      %v467 = vld [vmem:[%s4 + $0x6] sm:$0x1]
      %v468 = vlaneseq
      %v469 = vshrl.u32 %v468, 7
      %v470 = vsub.s32 0, %v469
      %v471 = vrot.slane %v467, %v470
      %v472 = vmul.f32 %v465, %v471
      %v473 = vmul.f32 %v466, %v471
      %v474 = vadd.f32 %v463, %v472
      %v475 = vadd.f32 %v464, %v473
      %v476 = vld [vmem:[#allocation2 + $0x7] sm:$0xff]
      %v477 = vld [vmem:[#allocation2 + $0xf] sm:$0xf]
      %v478 = vld [vmem:[%s4 + $0x7] sm:$0x1]
      %v479 = vlaneseq
      %v480 = vshrl.u32 %v479, 7
      %v481 = vsub.s32 0, %v480
      %v482 = vrot.slane %v478, %v481
      %v483 = vmul.f32 %v476, %v482
      %v484 = vmul.f32 %v477, %v482
      %v485 = vadd.f32 %v474, %v483
      %v486 = vadd.f32 %v475, %v484
      %v487 = vld [vmem:[#allocation2 + $0x8] sm:$0xff]
      %v488 = vld [vmem:[#allocation2 + $0x10] sm:$0xf]
      %v489 = vld [vmem:[%s4 + $0x8] sm:$0x1]
      %v490 = vlaneseq
      %v491 = vshrl.u32 %v490, 7
      %v492 = vsub.s32 0, %v491
      %v493 = vrot.slane %v489, %v492
      %v494 = vmul.f32 %v487, %v493
      %v495 = vmul.f32 %v488, %v493
      %v496 = vadd.f32 %v485, %v494
      %v497 = vadd.f32 %v486, %v495
      %v498 = vld [vmem:[#allocation2 + $0x9] sm:$0xff]
      %v499 = vld [vmem:[#allocation2 + $0x11] sm:$0xf]
      %v500 = vld [vmem:[%s4 + $0x9] sm:$0x1]
      %v501 = vlaneseq
      %v502 = vshrl.u32 %v501, 7
      %v503 = vsub.s32 0, %v502
      %v504 = vrot.slane %v500, %v503
      %v505 = vmul.f32 %v498, %v504
      %v506 = vmul.f32 %v499, %v504
      %v507 = vadd.f32 %v496, %v505
      %v508 = vadd.f32 %v497, %v506
      %v509 = vld [vmem:[#allocation2 + $0xa] sm:$0xff]
      %v510 = vld [vmem:[#allocation2 + $0x12] sm:$0xf]
      %v511 = vld [vmem:[%s4 + $0xa] sm:$0x1]
      %v512 = vlaneseq
      %v513 = vshrl.u32 %v512, 7
      %v514 = vsub.s32 0, %v513
      %v515 = vrot.slane %v511, %v514
      %v516 = vmul.f32 %v509, %v515
      %v517 = vmul.f32 %v510, %v515
      %v518 = vadd.f32 %v507, %v516
      %v519 = vadd.f32 %v508, %v517
      %v520 = vld [vmem:[#allocation2 + $0xb] sm:$0xff]
      %v521 = vld [vmem:[#allocation2 + $0x13] sm:$0xf]
      %v522 = vld [vmem:[%s4 + $0xb] sm:$0x1]
      %v523 = vlaneseq
      %v524 = vshrl.u32 %v523, 7
      %v525 = vsub.s32 0, %v524
      %v526 = vrot.slane %v522, %v525
      %v527 = vmul.f32 %v520, %v526
      %v528 = vmul.f32 %v521, %v526
      %v529 = vadd.f32 %v518, %v527
      %v530 = vadd.f32 %v519, %v528
      %v531 = vld [vmem:[#allocation2 + $0xc] sm:$0xff]
      %v532 = vld [vmem:[#allocation2 + $0x14] sm:$0xf]
      %v533 = vld [vmem:[%s4 + $0xc] sm:$0x1]
      %v534 = vlaneseq
      %v535 = vshrl.u32 %v534, 7
      %v536 = vsub.s32 0, %v535
      %v537 = vrot.slane %v533, %v536
      %v538 = vmul.f32 %v531, %v537
      %v539 = vmul.f32 %v532, %v537
      %v540 = vadd.f32 %v529, %v538
      %v541 = vadd.f32 %v530, %v539
      %v542 = vld [vmem:[#allocation2 + $0xd] sm:$0xff]
      %v543 = vld [vmem:[#allocation2 + $0x15] sm:$0xf]
      %v544 = vld [vmem:[%s4 + $0xd] sm:$0x1]
      %v545 = vlaneseq
      %v546 = vshrl.u32 %v545, 7
      %v547 = vsub.s32 0, %v546
      %v548 = vrot.slane %v544, %v547
      %v549 = vmul.f32 %v542, %v548
      %v550 = vmul.f32 %v543, %v548
      %v551 = vadd.f32 %v540, %v549
      %v552 = vadd.f32 %v541, %v550
      %v553 = vld [vmem:[#allocation2 + $0xe] sm:$0xff]
      %v554 = vld [vmem:[#allocation2 + $0x16] sm:$0xf]
      %v555 = vld [vmem:[%s4 + $0xe] sm:$0x1]
      %v556 = vlaneseq
      %v557 = vshrl.u32 %v556, 7
      %v558 = vsub.s32 0, %v557
      %v559 = vrot.slane %v555, %v558
      %v560 = vmul.f32 %v553, %v559
      %v561 = vmul.f32 %v554, %v559
      %v562 = vadd.f32 %v551, %v560
      %v563 = vadd.f32 %v552, %v561
      %v564 = vld [vmem:[#allocation2 + $0xf] sm:$0xff]
      %v565 = vld [vmem:[#allocation2 + $0x17] sm:$0xf]
      %v566 = vld [vmem:[%s4 + $0xf] sm:$0x1]
      %v567 = vlaneseq
      %v568 = vshrl.u32 %v567, 7
      %v569 = vsub.s32 0, %v568
      %v570 = vrot.slane %v566, %v569
      %v571 = vmul.f32 %v564, %v570
      %v572 = vmul.f32 %v565, %v570
      %v573 = vadd.f32 %v562, %v571
      %v574 = vadd.f32 %v563, %v572
      %v575 = vld [vmem:[#allocation2 + $0x10] sm:$0xff]
      %v576 = vld [vmem:[#allocation2 + $0x18] sm:$0xf]
      %v577 = vld [vmem:[%s4 + $0x10] sm:$0x1]
      %v578 = vlaneseq
      %v579 = vshrl.u32 %v578, 7
      %v580 = vsub.s32 0, %v579
      %v581 = vrot.slane %v577, %v580
      %v582 = vmul.f32 %v575, %v581
      %v583 = vmul.f32 %v576, %v581
      %v584 = vadd.f32 %v573, %v582
      %v585 = vadd.f32 %v574, %v583
      %v586 = vld [vmem:[%s239] sm:$0xff]
      %v587 = vld [vmem:[%s239 + $0x8] sm:$0xf]
      %v588 = vadd.f32 %v586, %v584
      %v589 = vadd.f32 %v587, %v585
      %590 = vst.msk [vmem:[%s244] sm:$0xff] %vm393, %v588
      %591 = vst.msk [vmem:[%s244 + $0x8] sm:$0xf] %vm396, %v589
      %p592 = scmp.lt.s32.totalorder %s16, 1
      %s593 = scalar_select %p592, %s16, 1
      %s594 = smul.addr %s593, 2
      %s595 = smul.addr %s594, 8
      %s596 = scalar_lea.vmem %s5, %s595
      // Predicated region
      $region41: #{mossformer_m2_forward.9} parent=39 // pred_check
        %p597 = pneg %p149
      $region42: #{mossformer_m2_forward.9} parent=39 // pred_check_branch
        %599 = sbr.rel (%p597) target = $region44
      $region43: #{mossformer_m2_forward.9} parent=39 // pred_region
        _
      $region44: #{mossformer_m2_forward.9} parent=39 // pred_fallthru
        _
    $region40: #{mossformer_m2_forward.9} parent=5 // pred_fallthru
      _
    %p600 = scmp.le.s32.totalorder 2, %s11
    // Predicated region
    $region45: #{mossformer_m2_forward.9} parent=5 // pred_check
      %p601 = pneg %p600
    $region46: #{mossformer_m2_forward.9} parent=5 // pred_check_branch
      %603 = sbr.rel (%p601) target = $region48
    $region47: #{mossformer_m2_forward.9} parent=5 // pred_region
      %s604 = ssub.s32 %s11, 2
      // Predicated region
      $region49: #{mossformer_m2_forward.9} parent=47 // pred_check
        %p605 = pneg %p155
      $region50: #{mossformer_m2_forward.9} parent=47 // pred_check_branch
        %607 = sbr.rel (%p605) target = $region52
      $region51: #{mossformer_m2_forward.9} parent=47 // pred_region
        %p608 = scmp.lt.s32.totalorder %s17, 1
        %s609 = scalar_select %p608, %s17, 1
        %s610 = smul.addr %s609, 2
        %s611 = smul.addr %s610, 8
        %s612 = scalar_lea.vmem %s5, %s611
      $region52: #{mossformer_m2_forward.9} parent=47 // pred_fallthru
        _
    $region48: #{mossformer_m2_forward.9} parent=5 // pred_fallthru
      _
  $region6: #{mossformer_m2_forward.9} parent=0 // loop_footer
    %s15 = sadd.s32 1, %s11
  $region7: #{mossformer_m2_forward.9} parent=0 // loop_footer_branch
    %10 = sbr.rel target = $region3
  $region8: #{mossformer_m2_forward.9} parent=0 // loop_exit
    _

// kernel: mossformer_m2_forward.8
$region0: #{mossformer_m2_forward.8}
  #allocation0 [shape = 'u32[]', space=smem, size = 0x4, offset = 0x4, fixed_abs, tag = 'smem constant byte address 0x4 - core index']
  #allocation1 [shape = 'u32[144,128]{1,0:T(1,128)}', space=vmem, size = 0x12000, scoped, tag = 'internal scratch']
  %s0 = inlined_call_operand.vmem [shape: bf16[2,16,288], index: 0, kind: input, shape index: {}]
  %s1 = inlined_call_operand.vmem [shape: f32[2,32,256], index: 1, kind: input, shape index: {}]
  %s2 = inlined_call_operand.vmem [shape: f32[16,32], index: 2, kind: input, shape index: {}]
  %s3 = inlined_call_operand.vmem [shape: f32[16,64], index: 3, kind: input, shape index: {}]
  %s4 = inlined_call_operand.vmem [shape: bf16[32,32], index: 4, kind: input, shape index: {}]
  %s5 = inlined_call_operand.vmem [shape: bf16[2,16,128], index: 5, kind: output, shape index: {}]
  %s6 = sld [smem:[#allocation0]]
  $region53: #{mossformer_m2_forward.8} parent=0
    _
  %s8 = ssub.s32 1, %s6
  %s9 = scalar_select 0, %s8, %s6
  loop: start=0, step=1, limit=4
  $region2: #{mossformer_m2_forward.8} parent=0 // loop_pre_header
    _
  $region3: #{mossformer_m2_forward.8} parent=0 // loop_header
    %s11 = sphi 0, %s15
    %p12 = scmp.ge.s32.totalorder %s11, 4
    %s18 = sphi 0, %s30
    %s19 = sphi 0, %s26
    %s20 = sphi 0, %s18
    %s21 = sphi 0, %s19
    %s22 = sphi 0, %s20
    %s23 = sphi 0, %s21
    %s35 = sphi 0, %s37
    %s38 = sphi 0, %s35
    %s39 = sphi 0, %s38
    %s55 = sphi 0, %s39
    %s61 = sphi 0, %s63
    %s64 = sphi 0, %s61
    %s65 = sphi 0, %s64
    %s81 = sphi 0, %s65
    %s85 = sphi 0, %s85
    %s87 = sphi 0, %s85
    %s88 = sphi 0, %s87
    %s102 = sphi 0, %s88
    %s108 = sphi 0, %s110
    %s111 = sphi 0, %s108
    %s112 = sphi 0, %s111
    %s128 = sphi 0, %s112
    %s132 = sphi 0, %s132
    %s134 = sphi 0, %s132
    %s135 = sphi 0, %s134
    %s149 = sphi 0, %s135
    %s157 = sphi 0, %s159
    %s160 = sphi 0, %s157
    %s161 = sphi 0, %s160
    %s177 = sphi 0, %s161
  $region4: #{mossformer_m2_forward.8} parent=0 // loop_header_branch
    %14 = sbr.rel (%p12) target = $region8
  $region5: #{mossformer_m2_forward.8} parent=0 // loop_body
    %s16 = ssub.s32 %s11, 1
    %s17 = ssub.s32 %s11, 2
    %s24 = sadd.s32 1, %s19
    %p25 = scmp.ge.s32.totalorder %s24, 1
    %s26 = scalar_select %p25, 0, %s24
    %s27 = sadd.s32 1, %s18
    %s28 = scalar_select %p25, %s27, %s18
    %p29 = scmp.ge.s32.totalorder %s28, 2
    %s30 = scalar_select %p29, 0, %s28
    %s31 = ssub.s32 %s18, %s30
    %s32 = ssub.s32 %s19, %s26
    %s33 = sor.u32 %s31, %s32
    %p34 = scmp.eq.s32.totalorder %s33, 0
    %s36 = sadd.s32 %s35, 1
    %s37 = scalar_select %p34, %s35, %s36
    %p40 = pneg %p34
    %p41 = scmp.eq.s32.totalorder %s11, 1
    %p42 = por %p40, %p41
    %p43 = scmp.ne.s32.totalorder %s35, %s38
    %p44 = scmp.eq.s32.totalorder %s11, 0
    %p45 = por %p43, %p44
    %p46 = scmp.ne.s32.totalorder %s35, %s38
    %p47 = scmp.eq.s32.totalorder %s16, 1
    %p48 = por %p46, %p47
    %p49 = scmp.ne.s32.totalorder %s38, %s39
    %p50 = scmp.eq.s32.totalorder %s16, 0
    %p51 = por %p49, %p50
    %p52 = scmp.ne.s32.totalorder %s38, %s39
    %p53 = scmp.eq.s32.totalorder %s17, 1
    %p54 = por %p52, %p53
    %p56 = scmp.ne.s32.totalorder %s39, %s55
    %p57 = scmp.eq.s32.totalorder %s17, 0
    %p58 = por %p56, %p57
    %s59 = ssub.s32 %s18, %s30
    %p60 = scmp.eq.s32.totalorder %s59, 0
    %s62 = sadd.s32 %s61, 1
    %s63 = scalar_select %p60, %s61, %s62
    %p66 = pneg %p60
    %p67 = scmp.eq.s32.totalorder %s11, 1
    %p68 = por %p66, %p67
    %p69 = scmp.ne.s32.totalorder %s61, %s64
    %p70 = scmp.eq.s32.totalorder %s11, 0
    %p71 = por %p69, %p70
    %p72 = scmp.ne.s32.totalorder %s61, %s64
    %p73 = scmp.eq.s32.totalorder %s16, 1
    %p74 = por %p72, %p73
    %p75 = scmp.ne.s32.totalorder %s64, %s65
    %p76 = scmp.eq.s32.totalorder %s16, 0
    %p77 = por %p75, %p76
    %p78 = scmp.ne.s32.totalorder %s64, %s65
    %p79 = scmp.eq.s32.totalorder %s17, 1
    %p80 = por %p78, %p79
    %p82 = scmp.ne.s32.totalorder %s65, %s81
    %p83 = scmp.eq.s32.totalorder %s17, 0
    %p84 = por %p82, %p83
    %s86 = sadd.s32 %s85, 1
    %p89 = scmp.eq.s32.totalorder %s11, 1
    %p90 = scmp.ne.s32.totalorder %s85, %s87
    %p91 = scmp.eq.s32.totalorder %s11, 0
    %p92 = por %p90, %p91
    %p93 = scmp.ne.s32.totalorder %s85, %s87
    %p94 = scmp.eq.s32.totalorder %s16, 1
    %p95 = por %p93, %p94
    %p96 = scmp.ne.s32.totalorder %s87, %s88
    %p97 = scmp.eq.s32.totalorder %s16, 0
    %p98 = por %p96, %p97
    %p99 = scmp.ne.s32.totalorder %s87, %s88
    %p100 = scmp.eq.s32.totalorder %s17, 1
    %p101 = por %p99, %p100
    %p103 = scmp.ne.s32.totalorder %s88, %s102
    %p104 = scmp.eq.s32.totalorder %s17, 0
    %p105 = por %p103, %p104
    %s106 = ssub.s32 %s19, %s26
    %p107 = scmp.eq.s32.totalorder %s106, 0
    %s109 = sadd.s32 %s108, 1
    %s110 = scalar_select %p107, %s108, %s109
    %p113 = pneg %p107
    %p114 = scmp.eq.s32.totalorder %s11, 1
    %p115 = por %p113, %p114
    %p116 = scmp.ne.s32.totalorder %s108, %s111
    %p117 = scmp.eq.s32.totalorder %s11, 0
    %p118 = por %p116, %p117
    %p119 = scmp.ne.s32.totalorder %s108, %s111
    %p120 = scmp.eq.s32.totalorder %s16, 1
    %p121 = por %p119, %p120
    %p122 = scmp.ne.s32.totalorder %s111, %s112
    %p123 = scmp.eq.s32.totalorder %s16, 0
    %p124 = por %p122, %p123
    %p125 = scmp.ne.s32.totalorder %s111, %s112
    %p126 = scmp.eq.s32.totalorder %s17, 1
    %p127 = por %p125, %p126
    %p129 = scmp.ne.s32.totalorder %s112, %s128
    %p130 = scmp.eq.s32.totalorder %s17, 0
    %p131 = por %p129, %p130
    %s133 = sadd.s32 %s132, 1
    %p136 = scmp.eq.s32.totalorder %s11, 1
    %p137 = scmp.ne.s32.totalorder %s132, %s134
    %p138 = scmp.eq.s32.totalorder %s11, 0
    %p139 = por %p137, %p138
    %p140 = scmp.ne.s32.totalorder %s132, %s134
    %p141 = scmp.eq.s32.totalorder %s16, 1
    %p142 = por %p140, %p141
    %p143 = scmp.ne.s32.totalorder %s134, %s135
    %p144 = scmp.eq.s32.totalorder %s16, 0
    %p145 = por %p143, %p144
    %p146 = scmp.ne.s32.totalorder %s134, %s135
    %p147 = scmp.eq.s32.totalorder %s17, 1
    %p148 = por %p146, %p147
    %p150 = scmp.ne.s32.totalorder %s135, %s149
    %p151 = scmp.eq.s32.totalorder %s17, 0
    %p152 = por %p150, %p151
    %s153 = ssub.s32 %s18, %s30
    %s154 = ssub.s32 %s19, %s26
    %s155 = sor.u32 %s153, %s154
    %p156 = scmp.eq.s32.totalorder %s155, 0
    %s158 = sadd.s32 %s157, 1
    %s159 = scalar_select %p156, %s157, %s158
    %p162 = pneg %p156
    %p163 = scmp.eq.s32.totalorder %s11, 1
    %p164 = por %p162, %p163
    %p165 = scmp.ne.s32.totalorder %s157, %s160
    %p166 = scmp.eq.s32.totalorder %s11, 0
    %p167 = por %p165, %p166
    %p168 = scmp.ne.s32.totalorder %s157, %s160
    %p169 = scmp.eq.s32.totalorder %s16, 1
    %p170 = por %p168, %p169
    %p171 = scmp.ne.s32.totalorder %s160, %s161
    %p172 = scmp.eq.s32.totalorder %s16, 0
    %p173 = por %p171, %p172
    %p174 = scmp.ne.s32.totalorder %s160, %s161
    %p175 = scmp.eq.s32.totalorder %s17, 1
    %p176 = por %p174, %p175
    %p178 = scmp.ne.s32.totalorder %s161, %s177
    %p179 = scmp.eq.s32.totalorder %s17, 0
    %p180 = por %p178, %p179
    %p181 = scmp.le.s32.totalorder 1, %s11
    %p182 = scmp.lt.s32.totalorder %s11, 3
    %p183 = pnand %p181, %p182
    %p184 = pneg %p183
    // Predicated region
    $region9: #{mossformer_m2_forward.8} parent=5 // pred_check
      _
    $region10: #{mossformer_m2_forward.8} parent=5 // pred_check_branch
      %186 = sbr.rel (%p183) target = $region12
    $region11: #{mossformer_m2_forward.8} parent=5 // pred_region
      %s187 = ssub.s32 %s11, 1
      // Predicated region
      $region13: #{mossformer_m2_forward.8} parent=11 // pred_check
        %p188 = pneg %p98
      $region14: #{mossformer_m2_forward.8} parent=11 // pred_check_branch
        %190 = sbr.rel (%p188) target = $region16
      $region15: #{mossformer_m2_forward.8} parent=11 // pred_region
        _
      $region16: #{mossformer_m2_forward.8} parent=11 // pred_fallthru
        _
      // Predicated region
      $region17: #{mossformer_m2_forward.8} parent=11 // pred_check
        %p191 = pneg %p124
      $region18: #{mossformer_m2_forward.8} parent=11 // pred_check_branch
        %193 = sbr.rel (%p191) target = $region20
      $region19: #{mossformer_m2_forward.8} parent=11 // pred_region
        %s194 = smul.u32 2, %s21
        %p195 = scmp.lt.s32.totalorder %s194, 1
        %s196 = scalar_select %p195, %s194, 1
        %s197 = smul.addr %s196, 8
        %s198 = scalar_lea.vmem %s3, %s197
        %s199 = smul.u32 2, %s21
      $region20: #{mossformer_m2_forward.8} parent=11 // pred_fallthru
        _
      // Predicated region
      $region21: #{mossformer_m2_forward.8} parent=11 // pred_check
        %p200 = pneg %p145
      $region22: #{mossformer_m2_forward.8} parent=11 // pred_check_branch
        %202 = sbr.rel (%p200) target = $region24
      $region23: #{mossformer_m2_forward.8} parent=11 // pred_region
        _
      $region24: #{mossformer_m2_forward.8} parent=11 // pred_fallthru
        _
    $region12: #{mossformer_m2_forward.8} parent=5 // pred_fallthru
      _
    %p203 = scmp.lt.s32.totalorder %s11, 2
    // Predicated region
    $region25: #{mossformer_m2_forward.8} parent=5 // pred_check
      %p204 = pneg %p203
    $region26: #{mossformer_m2_forward.8} parent=5 // pred_check_branch
      %206 = sbr.rel (%p204) target = $region28
    $region27: #{mossformer_m2_forward.8} parent=5 // pred_region
      // Predicated region
      $region29: #{mossformer_m2_forward.8} parent=27 // pred_check
        %p207 = pneg %p45
      $region30: #{mossformer_m2_forward.8} parent=27 // pred_check_branch
        %209 = sbr.rel (%p207) target = $region32
      $region31: #{mossformer_m2_forward.8} parent=27 // pred_region
        %s210 = smul.u32 2, %s19
        %p211 = scmp.lt.s32.totalorder %s18, 1
        %s212 = scalar_select %p211, %s18, 1
        %p213 = scmp.lt.s32.totalorder %s210, 1
        %s214 = scalar_select %p213, %s210, 1
        %s215 = smul.addr %s214, 3
        %s216 = smul.addr %s212, 6
        %s217 = sadd.s32 %s215, %s216
        %s218 = smul.addr %s217, 4
        %s219 = scalar_lea.vmem %s0, %s218
        %s220 = smul.u32 2, %s19
      $region32: #{mossformer_m2_forward.8} parent=27 // pred_fallthru
        _
      // Predicated region
      $region33: #{mossformer_m2_forward.8} parent=27 // pred_check
        %p221 = pneg %p71
      $region34: #{mossformer_m2_forward.8} parent=27 // pred_check_branch
        %223 = sbr.rel (%p221) target = $region36
      $region35: #{mossformer_m2_forward.8} parent=27 // pred_region
        %p224 = scmp.lt.s32.totalorder %s18, 1
        %s225 = scalar_select %p224, %s18, 1
        %s226 = smul.addr %s225, 8
        %s227 = smul.addr %s226, 8
        %s228 = scalar_lea.vmem %s1, %s227
      $region36: #{mossformer_m2_forward.8} parent=27 // pred_fallthru
        _
    $region28: #{mossformer_m2_forward.8} parent=5 // pred_fallthru
      _
    %p229 = scmp.le.s32.totalorder 1, %s11
    %p230 = scmp.lt.s32.totalorder %s11, 3
    %p231 = pnand %p229, %p230
    %p232 = pneg %p231
    // Predicated region
    $region37: #{mossformer_m2_forward.8} parent=5 // pred_check
      _
    $region38: #{mossformer_m2_forward.8} parent=5 // pred_check_branch
      %234 = sbr.rel (%p231) target = $region40
    $region39: #{mossformer_m2_forward.8} parent=5 // pred_region
      %s235 = ssub.s32 %s11, 1
      %s236 = smul.u32 2, %s21
      %p237 = scmp.lt.s32.totalorder %s20, 1
      %s238 = scalar_select %p237, %s20, 1
      %p239 = scmp.lt.s32.totalorder %s236, 1
      %s240 = scalar_select %p239, %s236, 1
      %s241 = smul.addr %s240, 3
      %s242 = smul.addr %s238, 6
      %s243 = sadd.s32 %s241, %s242
      %s244 = smul.addr %s243, 4
      %s245 = scalar_lea.vmem %s0, %s244
      %p246 = pneg %p51
      %p247 = pneg %p48
      %p248 = scmp.lt.s32.totalorder %s20, 1
      %s249 = scalar_select %p248, %s20, 1
      %s250 = smul.addr %s249, 8
      %s251 = smul.addr %s250, 8
      %s252 = scalar_lea.vmem %s1, %s251
      %p253 = pneg %p77
      %p254 = pneg %p74
      %p255 = pneg %p98
      %p256 = pneg %p95
      %s257 = smul.u32 2, %s21
      %p258 = scmp.lt.s32.totalorder %s257, 1
      %s259 = scalar_select %p258, %s257, 1
      %s260 = smul.addr %s259, 8
      %s261 = scalar_lea.vmem %s3, %s260
      %p262 = pneg %p124
      %p263 = pneg %p121
      %p264 = pneg %p145
      %p265 = pneg %p142
      %p266 = pneg %p173
      %p267 = pneg %p170
      %s268 = smul.u32 2, %s21
      %p269 = scmp.lt.s32.totalorder %s20, 1
      %s270 = scalar_select %p269, %s20, 1
      %p271 = scmp.lt.s32.totalorder %s268, 1
      %s272 = scalar_select %p271, %s268, 1
      %s273 = smul.addr %s270, 2
      %s274 = sadd.s32 %s272, %s273
      %s275 = smul.addr %s274, 4
      %s276 = scalar_lea.vmem %s5, %s275
      %s277 = smul.u32 2, %s21
      %p278 = scmp.lt.s32.totalorder %s20, 1
      %s279 = scalar_select %p278, %s20, 1
      %p280 = scmp.lt.s32.totalorder %s277, 1
      %s281 = scalar_select %p280, %s277, 1
      %s282 = smul.addr %s281, 3
      %s283 = smul.addr %s279, 6
      %s284 = sadd.s32 %s282, %s283
      %s285 = smul.addr %s284, 4
      %s286 = scalar_lea.vmem %s0, %s285
      %s287 = smul.u32 2, %s21
      %p288 = scmp.lt.s32.totalorder %s20, 1
      %s289 = scalar_select %p288, %s20, 1
      %s290 = smul.addr %s289, 8
      %s291 = smul.addr %s290, 8
      %s292 = scalar_lea.vmem %s1, %s291
      %s293 = smul.u32 2, %s21
      %p294 = scmp.lt.s32.totalorder %s293, 1
      %s295 = scalar_select %p294, %s293, 1
      %s296 = smul.addr %s295, 8
      %s297 = scalar_lea.vmem %s3, %s296
      %s298 = smul.u32 2, %s21
      %s299 = smul.u32 2, %s21
      %p300 = scmp.lt.s32.totalorder %s20, 1
      %s301 = scalar_select %p300, %s20, 1
      %p302 = scmp.lt.s32.totalorder %s299, 1
      %s303 = scalar_select %p302, %s299, 1
      %s304 = smul.addr %s301, 2
      %s305 = sadd.s32 %s303, %s304
      %s306 = smul.addr %s305, 4
      %s307 = scalar_lea.vmem %s5, %s306
      %s308 = smul.u32 2, %s21
      %v310 = vld [vmem:[%s286] sm:$0xff]
      %v311 = vld [vmem:[%s286 + $0x8] sm:$0xf]
      %v312 = vld [vmem:[%s286 + $0xc] sm:$0xff]
      %v313 = vld [vmem:[%s286 + $0x14] sm:$0xf]
      %v314 = vunpack.c.l.bf16 %v310
      %v315 = vunpack.c.h.bf16 %v310
      %v316 = vunpack.c.l.bf16 %v312
      %v317 = vunpack.c.h.bf16 %v312
      %v318 = vunpack.c.l.bf16 %v311
      %v319 = vunpack.c.l.bf16 %v313
      %v320 = vld [vmem:[%s297] sm:$0xff]
      %v321 = vld [vmem:[%s297 + $0x8] sm:$0xff]
      %v322 = vmul.f32 %v318, %v320
      %v323 = vmul.f32 %v319, %v321
      %v324 = vld [vmem:[%s4] sm:$0xf]
      %v325 = vld [vmem:[%s4 + $0x4] sm:$0xf]
      %v326 = vld [vmem:[%s4 + $0x8] sm:$0xf]
      %v327 = vld [vmem:[%s4 + $0xc] sm:$0xf]
      %v330 = vunpack.c.l.b16 %v311
      %v331 = vunpack.c.l.b16 %v313
      %v332 = vpack.c.b16 %v331, %v330
      %v337 = vunpack.c.l.b16 %v324
      %v338 = vunpack.c.l.b16 %v325
      %v339 = vunpack.c.l.b16 %v326
      %v340 = vunpack.c.l.b16 %v327
      %v341 = vpack.c.b16 %v338, %v337
      %v342 = vpack.c.b16 %v340, %v339
      %vm345 = vcmask 261120
      %v347 = vsel %vm345, %v332, 0
      %349 = vmatprep.subr.bf16.mxu0 0
      %350 = vmatpush1.bf16.msra.mxu0 %v341
      %351 = vmatprep.subr.bf16.mxu0 0
      %352 = vmatpush1.bf16.msra.mxu0 %v342
      %353 = vmatprep.subr.bf16.mxu0 0
      %354 = vmatpush1.bf16.msra.mxu0 0
      %355 = vmatprep.subr.bf16.mxu0 0
      %356 = vmatpush1.bf16.msra.mxu0 0
      %357 = vmatprep.subr.bf16.mxu0 0
      %358 = vmatpush1.bf16.msra.mxu0 0
      %359 = vmatprep.subr.bf16.mxu0 0
      %360 = vmatpush1.bf16.msra.mxu0 0
      %361 = vmatprep.subr.bf16.mxu0 0
      %362 = vmatpush1.bf16.msra.mxu0 0
      %363 = vmatprep.subr.bf16.mxu0 0
      %364 = vmatpush1.bf16.msra.mxu0 0
      %365 = vmatprep.subr.bf16.mxu0 0
      %366 = vmatpush1.bf16.msra.mxu0 0
      %367 = vmatprep.subr.bf16.mxu0 0
      %368 = vmatpush1.bf16.msra.mxu0 0
      %369 = vmatprep.subr.bf16.mxu0 0
      %370 = vmatpush1.bf16.msra.mxu0 0
      %371 = vmatprep.subr.bf16.mxu0 0
      %372 = vmatpush1.bf16.msra.mxu0 0
      %373 = vmatprep.subr.bf16.mxu0 0
      %374 = vmatpush1.bf16.msra.mxu0 0
      %375 = vmatprep.subr.bf16.mxu0 0
      %376 = vmatpush1.bf16.msra.mxu0 0
      %377 = vmatprep.subr.bf16.mxu0 0
      %378 = vmatpush1.bf16.msra.mxu0 0
      %379 = vmatprep.subr.bf16.mxu0 0
      %380 = vmatpush1.bf16.msra.mxu0 0
      %381 = vmatprep.mubr.bf16.mxu0 0
      %382 = vmatmul.mubr.bf16.gmra.mrb[0].mxu0 %v347
      %v383 = vpop.f32.mrb[0].mxu0
      %v384 = vadd.f32 0.0, %v383
      %v385 = vpop.f32.mrb[0].mxu0
      %v386 = vpop.f32.mrb[0].mxu0
      %v387 = vadd.f32 0.0, %v386
      %v388 = vpop.f32.mrb[0].mxu0
      %389 = vdwg.mxu0
      %392 = vrot.lane.b32.xlu0 %v320, 96
      %v393 = vpop.permute.xlu0 %392
      %394 = vrot.lane.b32.xlu0 %v321, 96
      %v395 = vpop.permute.xlu0 %394
      %v398 = vmul.f32 %v384, %v393
      %v399 = vmul.f32 %v387, %v395
      %v400 = vld [vmem:[%s2] sm:$0x1]
      %v401 = vlaneseq
      %v402 = vshrl.u32 %v401, 7
      %v403 = vsub.s32 0, %v402
      %v404 = vrot.slane %v400, %v403
      %v405 = vmul.f32 %v322, %v404
      %v406 = vmul.f32 %v323, %v404
      %v407 = vld [vmem:[%s2 + $0x4] sm:$0x1]
      %v408 = vlaneseq
      %v409 = vshrl.u32 %v408, 7
      %v410 = vsub.s32 0, %v409
      %v411 = vrot.slane %v407, %v410
      %v412 = vmul.f32 %v320, %v411
      %v413 = vmul.f32 %v321, %v411
      %v414 = vadd.f32 %v405, %v412
      %v415 = vadd.f32 %v406, %v413
      %v416 = vld [vmem:[%s2 + $0x8] sm:$0x1]
      %v417 = vlaneseq
      %v418 = vshrl.u32 %v417, 7
      %v419 = vsub.s32 0, %v418
      %v420 = vrot.slane %v416, %v419
      %v421 = vmul.f32 %v398, %v420
      %v422 = vmul.f32 %v399, %v420
      %v423 = vadd.f32 %v414, %v421
      %v424 = vadd.f32 %v415, %v422
      %v425 = vld [vmem:[%s2 + $0xc] sm:$0x1]
      %v426 = vlaneseq
      %v427 = vshrl.u32 %v426, 7
      %v428 = vsub.s32 0, %v427
      %v429 = vrot.slane %v425, %v428
      %431 = vrot.lane.b32.xlu0 %v429, 32
      %v432 = vpop.permute.xlu0 %431
      %v434 = vmul.f32 %v320, %v432
      %v435 = vmul.f32 %v321, %v432
      %438 = vrot.lane.b32.xlu0 %v434, 96
      %v439 = vpop.permute.xlu0 %438
      %440 = vrot.lane.b32.xlu0 %v435, 96
      %v441 = vpop.permute.xlu0 %440
      %v444 = vadd.f32 %v423, %v439
      %v445 = vadd.f32 %v424, %v441
      %v446 = vld [vmem:[%s2 + $0x1] sm:$0x1]
      %v447 = vlaneseq
      %v448 = vshrl.u32 %v447, 7
      %v449 = vsub.s32 0, %v448
      %v450 = vrot.slane %v446, %v449
      %v451 = vmul.f32 %v322, %v450
      %v452 = vmul.f32 %v323, %v450
      %v453 = vld [vmem:[%s2 + $0x5] sm:$0x1]
      %v454 = vlaneseq
      %v455 = vshrl.u32 %v454, 7
      %v456 = vsub.s32 0, %v455
      %v457 = vrot.slane %v453, %v456
      %v458 = vmul.f32 %v320, %v457
      %v459 = vmul.f32 %v321, %v457
      %v460 = vadd.f32 %v451, %v458
      %v461 = vadd.f32 %v452, %v459
      %v462 = vld [vmem:[%s2 + $0x9] sm:$0x1]
      %v463 = vlaneseq
      %v464 = vshrl.u32 %v463, 7
      %v465 = vsub.s32 0, %v464
      %v466 = vrot.slane %v462, %v465
      %v467 = vmul.f32 %v398, %v466
      %v468 = vmul.f32 %v399, %v466
      %v469 = vadd.f32 %v460, %v467
      %v470 = vadd.f32 %v461, %v468
      %v471 = vld [vmem:[%s2 + $0xd] sm:$0x1]
      %v472 = vlaneseq
      %v473 = vshrl.u32 %v472, 7
      %v474 = vsub.s32 0, %v473
      %v475 = vrot.slane %v471, %v474
      %477 = vrot.lane.b32.xlu0 %v475, 32
      %v478 = vpop.permute.xlu0 %477
      %v480 = vmul.f32 %v320, %v478
      %v481 = vmul.f32 %v321, %v478
      %484 = vrot.lane.b32.xlu0 %v480, 96
      %v485 = vpop.permute.xlu0 %484
      %486 = vrot.lane.b32.xlu0 %v481, 96
      %v487 = vpop.permute.xlu0 %486
      %v490 = vadd.f32 %v469, %v485
      %v491 = vadd.f32 %v470, %v487
      %v492 = vld [vmem:[%s2 + $0x2] sm:$0x1]
      %v493 = vlaneseq
      %v494 = vshrl.u32 %v493, 7
      %v495 = vsub.s32 0, %v494
      %v496 = vrot.slane %v492, %v495
      %v497 = vmul.f32 %v322, %v496
      %v498 = vmul.f32 %v323, %v496
      %v499 = vld [vmem:[%s2 + $0x6] sm:$0x1]
      %v500 = vlaneseq
      %v501 = vshrl.u32 %v500, 7
      %v502 = vsub.s32 0, %v501
      %v503 = vrot.slane %v499, %v502
      %v504 = vmul.f32 %v320, %v503
      %v505 = vmul.f32 %v321, %v503
      %v506 = vadd.f32 %v497, %v504
      %v507 = vadd.f32 %v498, %v505
      %v508 = vld [vmem:[%s2 + $0xa] sm:$0x1]
      %v509 = vlaneseq
      %v510 = vshrl.u32 %v509, 7
      %v511 = vsub.s32 0, %v510
      %v512 = vrot.slane %v508, %v511
      %v513 = vmul.f32 %v398, %v512
      %v514 = vmul.f32 %v399, %v512
      %v515 = vadd.f32 %v506, %v513
      %v516 = vadd.f32 %v507, %v514
      %v517 = vld [vmem:[%s2 + $0xe] sm:$0x1]
      %v518 = vlaneseq
      %v519 = vshrl.u32 %v518, 7
      %v520 = vsub.s32 0, %v519
      %v521 = vrot.slane %v517, %v520
      %523 = vrot.lane.b32.xlu0 %v521, 32
      %v524 = vpop.permute.xlu0 %523
      %v526 = vmul.f32 %v320, %v524
      %v527 = vmul.f32 %v321, %v524
      %530 = vrot.lane.b32.xlu0 %v526, 96
      %v531 = vpop.permute.xlu0 %530
      %532 = vrot.lane.b32.xlu0 %v527, 96
      %v533 = vpop.permute.xlu0 %532
      %v536 = vadd.f32 %v515, %v531
      %v537 = vadd.f32 %v516, %v533
      %v538 = vpack.c.bf16 %v444, %v444
      %v539 = vpack.c.bf16 %v445, %v445
      %v540 = vpack.c.bf16 %v536, %v536
      %v541 = vpack.c.bf16 %v537, %v537
      %v542 = vpack.c.bf16 %v314, %v314
      %v543 = vpack.c.bf16 %v315, %v315
      %v544 = vpack.c.bf16 %v316, %v316
      %v545 = vpack.c.bf16 %v317, %v317
      %v547 = vsel %vm345, %v538, 0
      %v550 = vsel %vm345, %v540, 0
      %552 = vmatprep.subr.bf16.mxu0 0
      %553 = vmatpush1.bf16.xpose.msra.mxu0 %v550
      %554 = vmatprep.subr.bf16.mxu0 0
      %555 = vmatpush1.bf16.xpose.msra.mxu0 0
      %556 = vmatprep.subr.bf16.mxu0 0
      %557 = vmatpush1.bf16.xpose.msra.mxu0 0
      %558 = vmatprep.subr.bf16.mxu0 0
      %559 = vmatpush1.bf16.xpose.msra.mxu0 0
      %560 = vmatprep.subr.bf16.mxu0 0
      %561 = vmatpush1.bf16.xpose.msra.mxu0 0
      %562 = vmatprep.subr.bf16.mxu0 0
      %563 = vmatpush1.bf16.xpose.msra.mxu0 0
      %564 = vmatprep.subr.bf16.mxu0 0
      %565 = vmatpush1.bf16.xpose.msra.mxu0 0
      %566 = vmatprep.subr.bf16.mxu0 0
      %567 = vmatpush1.bf16.xpose.msra.mxu0 0
      %568 = vmatprep.subr.bf16.mxu0 0
      %569 = vmatpush1.bf16.xpose.msra.mxu0 0
      %570 = vmatprep.subr.bf16.mxu0 0
      %571 = vmatpush1.bf16.xpose.msra.mxu0 0
      %572 = vmatprep.subr.bf16.mxu0 0
      %573 = vmatpush1.bf16.xpose.msra.mxu0 0
      %574 = vmatprep.subr.bf16.mxu0 0
      %575 = vmatpush1.bf16.xpose.msra.mxu0 0
      %576 = vmatprep.subr.bf16.mxu0 0
      %577 = vmatpush1.bf16.xpose.msra.mxu0 0
      %578 = vmatprep.subr.bf16.mxu0 0
      %579 = vmatpush1.bf16.xpose.msra.mxu0 0
      %580 = vmatprep.subr.bf16.mxu0 0
      %581 = vmatpush1.bf16.xpose.msra.mxu0 0
      %582 = vmatprep.subr.bf16.mxu0 0
      %583 = vmatpush1.bf16.xpose.msra.mxu0 0
      %584 = vmatprep.mubr.bf16.mxu0 0
      %585 = vmatmul.mubr.bf16.gmra.mrb[0].mxu0 %v547
      %v586 = vpop.f32.mrb[0].mxu0
      %v587 = vadd.f32 0.0, %v586
      %v588 = vpop.f32.mrb[0].mxu0
      %v589 = vpop.f32.mrb[0].mxu0
      %v590 = vpop.f32.mrb[0].mxu0
      %591 = vdwg.mxu0
      %v593 = vsel %vm345, %v539, 0
      %v596 = vsel %vm345, %v541, 0
      %598 = vmatprep.subr.bf16.mxu0 0
      %599 = vmatpush1.bf16.xpose.msra.mxu0 %v596
      %600 = vmatprep.subr.bf16.mxu0 0
      %601 = vmatpush1.bf16.xpose.msra.mxu0 0
      %602 = vmatprep.subr.bf16.mxu0 0
      %603 = vmatpush1.bf16.xpose.msra.mxu0 0
      %604 = vmatprep.subr.bf16.mxu0 0
      %605 = vmatpush1.bf16.xpose.msra.mxu0 0
      %606 = vmatprep.subr.bf16.mxu0 0
      %607 = vmatpush1.bf16.xpose.msra.mxu0 0
      %608 = vmatprep.subr.bf16.mxu0 0
      %609 = vmatpush1.bf16.xpose.msra.mxu0 0
      %610 = vmatprep.subr.bf16.mxu0 0
      %611 = vmatpush1.bf16.xpose.msra.mxu0 0
      %612 = vmatprep.subr.bf16.mxu0 0
      %613 = vmatpush1.bf16.xpose.msra.mxu0 0
      %614 = vmatprep.subr.bf16.mxu0 0
      %615 = vmatpush1.bf16.xpose.msra.mxu0 0
      %616 = vmatprep.subr.bf16.mxu0 0
      %617 = vmatpush1.bf16.xpose.msra.mxu0 0
      %618 = vmatprep.subr.bf16.mxu0 0
      %619 = vmatpush1.bf16.xpose.msra.mxu0 0
      %620 = vmatprep.subr.bf16.mxu0 0
      %621 = vmatpush1.bf16.xpose.msra.mxu0 0
      %622 = vmatprep.subr.bf16.mxu0 0
      %623 = vmatpush1.bf16.xpose.msra.mxu0 0
      %624 = vmatprep.subr.bf16.mxu0 0
      %625 = vmatpush1.bf16.xpose.msra.mxu0 0
      %626 = vmatprep.subr.bf16.mxu0 0
      %627 = vmatpush1.bf16.xpose.msra.mxu0 0
      %628 = vmatprep.subr.bf16.mxu0 0
      %629 = vmatpush1.bf16.xpose.msra.mxu0 0
      %630 = vmatprep.mubr.bf16.mxu0 0
      %631 = vmatmul.mubr.bf16.gmra.mrb[0].mxu0 %v593
      %v632 = vpop.f32.mrb[0].mxu0
      %v633 = vadd.f32 0.0, %v632
      %v634 = vpop.f32.mrb[0].mxu0
      %v635 = vpop.f32.mrb[0].mxu0
      %v636 = vpop.f32.mrb[0].mxu0
      %637 = vdwg.mxu0
      %v638 = vmul.f32 %v587, 0.125
      %v639 = vmul.f32 %v633, 0.125
      %v640 = vmax.f32 %v638, 0.0
      %v641 = vmax.f32 %v639, 0.0
      %v642 = vmul.f32 %v640, %v640
      %v643 = vmul.f32 %v641, %v641
      %v644 = vpack.c.bf16 %v642, %v642
      %v645 = vpack.c.bf16 %v643, %v643
      %vm646 = vcmask 64512
      %v648 = vsel %vm646, %v644, 0
      %vm650 = vcmask 1043456
      %v652 = vsel %vm650, %v542, 0
      %v655 = vsel %vm650, %v543, 0
      %657 = vmatprep.subr.bf16.mxu0 %v655
      %658 = vmatpush1.bf16.msra.mxu0 %v652
      %659 = vmatprep.subr.bf16.mxu0 0
      %660 = vmatpush1.bf16.msra.mxu0 0
      %661 = vmatprep.subr.bf16.mxu0 0
      %662 = vmatpush1.bf16.msra.mxu0 0
      %663 = vmatprep.subr.bf16.mxu0 0
      %664 = vmatpush1.bf16.msra.mxu0 0
      %665 = vmatprep.subr.bf16.mxu0 0
      %666 = vmatpush1.bf16.msra.mxu0 0
      %667 = vmatprep.subr.bf16.mxu0 0
      %668 = vmatpush1.bf16.msra.mxu0 0
      %669 = vmatprep.subr.bf16.mxu0 0
      %670 = vmatpush1.bf16.msra.mxu0 0
      %671 = vmatprep.subr.bf16.mxu0 0
      %672 = vmatpush1.bf16.msra.mxu0 0
      %673 = vmatprep.subr.bf16.mxu0 0
      %674 = vmatpush1.bf16.msra.mxu0 0
      %675 = vmatprep.subr.bf16.mxu0 0
      %676 = vmatpush1.bf16.msra.mxu0 0
      %677 = vmatprep.subr.bf16.mxu0 0
      %678 = vmatpush1.bf16.msra.mxu0 0
      %679 = vmatprep.subr.bf16.mxu0 0
      %680 = vmatpush1.bf16.msra.mxu0 0
      %681 = vmatprep.subr.bf16.mxu0 0
      %682 = vmatpush1.bf16.msra.mxu0 0
      %683 = vmatprep.subr.bf16.mxu0 0
      %684 = vmatpush1.bf16.msra.mxu0 0
      %685 = vmatprep.subr.bf16.mxu0 0
      %686 = vmatpush1.bf16.msra.mxu0 0
      %687 = vmatprep.subr.bf16.mxu0 0
      %688 = vmatpush1.bf16.msra.mxu0 0
      %689 = vmatprep.mubr.bf16.mxu0 0
      %690 = vmatmul.mubr.bf16.gmra.mrb[0].mxu0 %v648
      %v691 = vpop.f32.mrb[0].mxu0
      %v692 = vadd.f32 0.0, %v691
      %v693 = vpop.f32.mrb[0].mxu0
      %v694 = vadd.f32 0.0, %v693
      %v695 = vpop.f32.mrb[0].mxu0
      %v696 = vpop.f32.mrb[0].mxu0
      %697 = vdwg.mxu0
      %v699 = vsel %vm646, %v645, 0
      %v702 = vsel %vm650, %v544, 0
      %v705 = vsel %vm650, %v545, 0
      %707 = vmatprep.subr.bf16.mxu0 %v705
      %708 = vmatpush1.bf16.msra.mxu0 %v702
      %709 = vmatprep.subr.bf16.mxu0 0
      %710 = vmatpush1.bf16.msra.mxu0 0
      %711 = vmatprep.subr.bf16.mxu0 0
      %712 = vmatpush1.bf16.msra.mxu0 0
      %713 = vmatprep.subr.bf16.mxu0 0
      %714 = vmatpush1.bf16.msra.mxu0 0
      %715 = vmatprep.subr.bf16.mxu0 0
      %716 = vmatpush1.bf16.msra.mxu0 0
      %717 = vmatprep.subr.bf16.mxu0 0
      %718 = vmatpush1.bf16.msra.mxu0 0
      %719 = vmatprep.subr.bf16.mxu0 0
      %720 = vmatpush1.bf16.msra.mxu0 0
      %721 = vmatprep.subr.bf16.mxu0 0
      %722 = vmatpush1.bf16.msra.mxu0 0
      %723 = vmatprep.subr.bf16.mxu0 0
      %724 = vmatpush1.bf16.msra.mxu0 0
      %725 = vmatprep.subr.bf16.mxu0 0
      %726 = vmatpush1.bf16.msra.mxu0 0
      %727 = vmatprep.subr.bf16.mxu0 0
      %728 = vmatpush1.bf16.msra.mxu0 0
      %729 = vmatprep.subr.bf16.mxu0 0
      %730 = vmatpush1.bf16.msra.mxu0 0
      %731 = vmatprep.subr.bf16.mxu0 0
      %732 = vmatpush1.bf16.msra.mxu0 0
      %733 = vmatprep.subr.bf16.mxu0 0
      %734 = vmatpush1.bf16.msra.mxu0 0
      %735 = vmatprep.subr.bf16.mxu0 0
      %736 = vmatpush1.bf16.msra.mxu0 0
      %737 = vmatprep.subr.bf16.mxu0 0
      %738 = vmatpush1.bf16.msra.mxu0 0
      %739 = vmatprep.mubr.bf16.mxu0 0
      %740 = vmatmul.mubr.bf16.gmra.mrb[0].mxu0 %v699
      %v741 = vpop.f32.mrb[0].mxu0
      %v742 = vadd.f32 0.0, %v741
      %v743 = vpop.f32.mrb[0].mxu0
      %v744 = vadd.f32 0.0, %v743
      %v745 = vpop.f32.mrb[0].mxu0
      %v746 = vpop.f32.mrb[0].mxu0
      %747 = vdwg.mxu0
      %v748 = vpack.c.bf16 %v491, %v490
      %v749 = vld [vmem:[%s292] sm:$0xff]
      %v750 = vld [vmem:[%s292 + $0x8] sm:$0xff]
      %v751 = vld [vmem:[%s292 + $0x10] sm:$0xff]
      %v752 = vld [vmem:[%s292 + $0x18] sm:$0xff]
      %v753 = vld [vmem:[%s292 + $0x20] sm:$0xff]
      %v754 = vld [vmem:[%s292 + $0x28] sm:$0xff]
      %v755 = vld [vmem:[%s292 + $0x30] sm:$0xff]
      %v756 = vld [vmem:[%s292 + $0x38] sm:$0xff]
      %v757 = vpack.c.bf16 %v751, %v749
      %v758 = vpack.c.bf16 %v752, %v750
      %v759 = vpack.c.bf16 %v755, %v753
      %v760 = vpack.c.bf16 %v756, %v754
      %v762 = vsel %vm345, %v748, 0
      %764 = vmatprep.subr.bf16.mxu0 %v758
      %765 = vmatpush1.bf16.msra.mxu0 %v757
      %766 = vmatprep.subr.bf16.mxu0 %v760
      %767 = vmatpush1.bf16.msra.mxu0 %v759
      %768 = vmatprep.subr.bf16.mxu0 0
      %769 = vmatpush1.bf16.msra.mxu0 0
      %770 = vmatprep.subr.bf16.mxu0 0
      %771 = vmatpush1.bf16.msra.mxu0 0
      %772 = vmatprep.subr.bf16.mxu0 0
      %773 = vmatpush1.bf16.msra.mxu0 0
      %774 = vmatprep.subr.bf16.mxu0 0
      %775 = vmatpush1.bf16.msra.mxu0 0
      %776 = vmatprep.subr.bf16.mxu0 0
      %777 = vmatpush1.bf16.msra.mxu0 0
      %778 = vmatprep.subr.bf16.mxu0 0
      %779 = vmatpush1.bf16.msra.mxu0 0
      %780 = vmatprep.subr.bf16.mxu0 0
      %781 = vmatpush1.bf16.msra.mxu0 0
      %782 = vmatprep.subr.bf16.mxu0 0
      %783 = vmatpush1.bf16.msra.mxu0 0
      %784 = vmatprep.subr.bf16.mxu0 0
      %785 = vmatpush1.bf16.msra.mxu0 0
      %786 = vmatprep.subr.bf16.mxu0 0
      %787 = vmatpush1.bf16.msra.mxu0 0
      %788 = vmatprep.subr.bf16.mxu0 0
      %789 = vmatpush1.bf16.msra.mxu0 0
      %790 = vmatprep.subr.bf16.mxu0 0
      %791 = vmatpush1.bf16.msra.mxu0 0
      %792 = vmatprep.subr.bf16.mxu0 0
      %793 = vmatpush1.bf16.msra.mxu0 0
      %794 = vmatprep.subr.bf16.mxu0 0
      %795 = vmatpush1.bf16.msra.mxu0 0
      %796 = vmatprep.mubr.bf16.mxu0 0
      %797 = vmatmul.mubr.bf16.gmra.mrb[0].mxu0 %v762
      %v798 = vpop.f32.mrb[0].mxu0
      %v799 = vadd.f32 0.0, %v798
      %v800 = vpop.f32.mrb[0].mxu0
      %v801 = vadd.f32 0.0, %v800
      %v802 = vpop.f32.mrb[0].mxu0
      %v803 = vadd.f32 0.0, %v802
      %v804 = vpop.f32.mrb[0].mxu0
      %v805 = vadd.f32 0.0, %v804
      %806 = vdwg.mxu0
      %v807 = vadd.f32 %v692, %v799
      %v808 = vadd.f32 %v694, %v801
      %v809 = vadd.f32 %v742, %v803
      %v810 = vadd.f32 %v744, %v805
      %v811 = vmul.f32 %v808, %v314
      %v812 = vmul.f32 %v810, %v316
      %v813 = vmul.f32 %v807, %v315
      %v814 = vmul.f32 %v809, %v317
      %v815 = vxor.u32 %v813, 2147483648
      %v816 = vxor.u32 %v814, 2147483648
      %v817 = vmul.f32 %v815, 1.442695
      %v818 = vpow.pop %v817
      %v819 = vmul.f32 %v816, 1.442695
      %v820 = vpow.pop %v819
      %v821 = vadd.f32 %v818, 1.0
      %v822 = vadd.f32 %v820, 1.0
      %v823 = vrcp.pop %v821
      %v824 = vmul.f32 1.0, %v823
      %v825 = vrcp.pop %v822
      %v826 = vmul.f32 1.0, %v825
      %v827 = vmul.f32 %v811, %v824
      %v828 = vmul.f32 %v812, %v826
      %v829 = vpack.c.bf16 %v828, %v827
      %v831 = vunpack.c.l.b16 %v829
      %v832 = vunpack.c.h.b16 %v829
      %v833 = vpack.c.b16 %v831, %v831
      %v834 = vpack.c.b16 %v832, %v832
      %837 = vst [vmem:[%s307] sm:$0xf] %v833
      %838 = vst [vmem:[%s307 + $0x4] sm:$0xf] %v834
      %s839 = smul.u32 2, %s21
      %p840 = scmp.lt.s32.totalorder %s20, 1
      %s841 = scalar_select %p840, %s20, 1
      %p842 = scmp.lt.s32.totalorder %s839, 1
      %s843 = scalar_select %p842, %s839, 1
      %s844 = smul.addr %s841, 2
      %s845 = sadd.s32 %s843, %s844
      %s846 = smul.addr %s845, 4
      %s847 = scalar_lea.vmem %s5, %s846
      // Predicated region
      $region41: #{mossformer_m2_forward.8} parent=39 // pred_check
        %p848 = pneg %p170
      $region42: #{mossformer_m2_forward.8} parent=39 // pred_check_branch
        %850 = sbr.rel (%p848) target = $region44
      $region43: #{mossformer_m2_forward.8} parent=39 // pred_region
        %s851 = smul.u32 2, %s21
      $region44: #{mossformer_m2_forward.8} parent=39 // pred_fallthru
        _
    $region40: #{mossformer_m2_forward.8} parent=5 // pred_fallthru
      _
    %p852 = scmp.le.s32.totalorder 2, %s11
    // Predicated region
    $region45: #{mossformer_m2_forward.8} parent=5 // pred_check
      %p853 = pneg %p852
    $region46: #{mossformer_m2_forward.8} parent=5 // pred_check_branch
      %855 = sbr.rel (%p853) target = $region48
    $region47: #{mossformer_m2_forward.8} parent=5 // pred_region
      %s856 = ssub.s32 %s11, 2
      // Predicated region
      $region49: #{mossformer_m2_forward.8} parent=47 // pred_check
        %p857 = pneg %p176
      $region50: #{mossformer_m2_forward.8} parent=47 // pred_check_branch
        %859 = sbr.rel (%p857) target = $region52
      $region51: #{mossformer_m2_forward.8} parent=47 // pred_region
        %s860 = smul.u32 2, %s23
        %p861 = scmp.lt.s32.totalorder %s22, 1
        %s862 = scalar_select %p861, %s22, 1
        %p863 = scmp.lt.s32.totalorder %s860, 1
        %s864 = scalar_select %p863, %s860, 1
        %s865 = smul.addr %s862, 2
        %s866 = sadd.s32 %s864, %s865
        %s867 = smul.addr %s866, 4
        %s868 = scalar_lea.vmem %s5, %s867
      $region52: #{mossformer_m2_forward.8} parent=47 // pred_fallthru
        _
    $region48: #{mossformer_m2_forward.8} parent=5 // pred_fallthru
      _
  $region6: #{mossformer_m2_forward.8} parent=0 // loop_footer
    %s15 = sadd.s32 1, %s11
  $region7: #{mossformer_m2_forward.8} parent=0 // loop_footer_branch
    %10 = sbr.rel target = $region3
  $region8: #{mossformer_m2_forward.8} parent=0 // loop_exit
    _

// kernel: mossformer_m2_forward.7
$region0: #{mossformer_m2_forward.7}
  #allocation0 [shape = 'u32[]', space=smem, size = 0x4, offset = 0x4, fixed_abs, tag = 'smem constant byte address 0x4 - core index']
  #allocation1 [shape = 'u32[144,128]{1,0:T(1,128)}', space=vmem, size = 0x12000, scoped, tag = 'internal scratch']
  #allocation2 [shape = 'f32[28,288]{1,0:T(8,128)}', space=vmem, size = 0xc000, scoped, tag = 'scratch operand']
  %s0 = inlined_call_operand.vmem [shape: f32[2,12,64], index: 0, kind: input, shape index: {}]
  %s1 = inlined_call_operand.vmem [shape: bf16[32,288], index: 1, kind: input, shape index: {}]
  %s2 = inlined_call_operand.vmem [shape: bf16[32,288], index: 2, kind: input, shape index: {}]
  %s3 = inlined_call_operand.vmem [shape: f32[1,288], index: 3, kind: input, shape index: {}]
  %s4 = inlined_call_operand.vmem [shape: f32[17,288], index: 4, kind: input, shape index: {}]
  %s5 = inlined_call_operand.vmem [shape: f32[16,32], index: 5, kind: input, shape index: {}]
  %s6 = inlined_call_operand.vmem [shape: f32[16,64], index: 6, kind: input, shape index: {}]
  %s7 = inlined_call_operand.vmem [shape: bf16[32,32], index: 7, kind: input, shape index: {}]
  %s8 = inlined_call_operand.vmem [shape: bf16[2,16,288], index: 8, kind: output, shape index: {0}]
  %s9 = inlined_call_operand.vmem [shape: f32[2,32,256], index: 9, kind: output, shape index: {1}]
  %10 = xla_tuple %s8, %s9
  %s11 = sld [smem:[#allocation0]]
  $region73: #{mossformer_m2_forward.7} parent=0
    _
  %s13 = ssub.s32 1, %s11
  %s14 = scalar_select 0, %s13, %s11
  loop: start=0, step=1, limit=4
  $region2: #{mossformer_m2_forward.7} parent=0 // loop_pre_header
    _
  $region3: #{mossformer_m2_forward.7} parent=0 // loop_header
    %s16 = sphi 0, %s20
    %p17 = scmp.ge.s32.totalorder %s16, 4
    %s26 = sphi 0, %s28
    %s29 = sphi 0, %s26
    %s30 = sphi 0, %s29
    %s46 = sphi 0, %s30
    %s50 = sphi 0, %s50
    %s52 = sphi 0, %s50
    %s53 = sphi 0, %s52
    %s67 = sphi 0, %s53
    %s71 = sphi 0, %s71
    %s73 = sphi 0, %s71
    %s74 = sphi 0, %s73
    %s88 = sphi 0, %s74
    %s92 = sphi 0, %s92
    %s94 = sphi 0, %s92
    %s95 = sphi 0, %s94
    %s109 = sphi 0, %s95
    %s113 = sphi 0, %s113
    %s115 = sphi 0, %s113
    %s116 = sphi 0, %s115
    %s130 = sphi 0, %s116
    %s134 = sphi 0, %s134
    %s136 = sphi 0, %s134
    %s137 = sphi 0, %s136
    %s151 = sphi 0, %s137
    %s155 = sphi 0, %s155
    %s157 = sphi 0, %s155
    %s158 = sphi 0, %s157
    %s172 = sphi 0, %s158
    %s176 = sphi 0, %s176
    %s178 = sphi 0, %s176
    %s179 = sphi 0, %s178
    %s193 = sphi 0, %s179
    %s199 = sphi 0, %s201
    %s202 = sphi 0, %s199
    %s203 = sphi 0, %s202
    %s219 = sphi 0, %s203
    %s225 = sphi 0, %s227
    %s228 = sphi 0, %s225
    %s229 = sphi 0, %s228
    %s245 = sphi 0, %s229
  $region4: #{mossformer_m2_forward.7} parent=0 // loop_header_branch
    %19 = sbr.rel (%p17) target = $region8
  $region5: #{mossformer_m2_forward.7} parent=0 // loop_body
    %s21 = ssub.s32 %s16, 1
    %s22 = ssub.s32 %s16, 2
    %s23 = sadd.s32 %s16, 1
    %s24 = ssub.s32 %s16, %s23
    %p25 = scmp.eq.s32.totalorder %s24, 0
    %s27 = sadd.s32 %s26, 1
    %s28 = scalar_select %p25, %s26, %s27
    %p31 = pneg %p25
    %p32 = scmp.eq.s32.totalorder %s16, 1
    %p33 = por %p31, %p32
    %p34 = scmp.ne.s32.totalorder %s26, %s29
    %p35 = scmp.eq.s32.totalorder %s16, 0
    %p36 = por %p34, %p35
    %p37 = scmp.ne.s32.totalorder %s26, %s29
    %p38 = scmp.eq.s32.totalorder %s21, 1
    %p39 = por %p37, %p38
    %p40 = scmp.ne.s32.totalorder %s29, %s30
    %p41 = scmp.eq.s32.totalorder %s21, 0
    %p42 = por %p40, %p41
    %p43 = scmp.ne.s32.totalorder %s29, %s30
    %p44 = scmp.eq.s32.totalorder %s22, 1
    %p45 = por %p43, %p44
    %p47 = scmp.ne.s32.totalorder %s30, %s46
    %p48 = scmp.eq.s32.totalorder %s22, 0
    %p49 = por %p47, %p48
    %s51 = sadd.s32 %s50, 1
    %p54 = scmp.eq.s32.totalorder %s16, 1
    %p55 = scmp.ne.s32.totalorder %s50, %s52
    %p56 = scmp.eq.s32.totalorder %s16, 0
    %p57 = por %p55, %p56
    %p58 = scmp.ne.s32.totalorder %s50, %s52
    %p59 = scmp.eq.s32.totalorder %s21, 1
    %p60 = por %p58, %p59
    %p61 = scmp.ne.s32.totalorder %s52, %s53
    %p62 = scmp.eq.s32.totalorder %s21, 0
    %p63 = por %p61, %p62
    %p64 = scmp.ne.s32.totalorder %s52, %s53
    %p65 = scmp.eq.s32.totalorder %s22, 1
    %p66 = por %p64, %p65
    %p68 = scmp.ne.s32.totalorder %s53, %s67
    %p69 = scmp.eq.s32.totalorder %s22, 0
    %p70 = por %p68, %p69
    %s72 = sadd.s32 %s71, 1
    %p75 = scmp.eq.s32.totalorder %s16, 1
    %p76 = scmp.ne.s32.totalorder %s71, %s73
    %p77 = scmp.eq.s32.totalorder %s16, 0
    %p78 = por %p76, %p77
    %p79 = scmp.ne.s32.totalorder %s71, %s73
    %p80 = scmp.eq.s32.totalorder %s21, 1
    %p81 = por %p79, %p80
    %p82 = scmp.ne.s32.totalorder %s73, %s74
    %p83 = scmp.eq.s32.totalorder %s21, 0
    %p84 = por %p82, %p83
    %p85 = scmp.ne.s32.totalorder %s73, %s74
    %p86 = scmp.eq.s32.totalorder %s22, 1
    %p87 = por %p85, %p86
    %p89 = scmp.ne.s32.totalorder %s74, %s88
    %p90 = scmp.eq.s32.totalorder %s22, 0
    %p91 = por %p89, %p90
    %s93 = sadd.s32 %s92, 1
    %p96 = scmp.eq.s32.totalorder %s16, 1
    %p97 = scmp.ne.s32.totalorder %s92, %s94
    %p98 = scmp.eq.s32.totalorder %s16, 0
    %p99 = por %p97, %p98
    %p100 = scmp.ne.s32.totalorder %s92, %s94
    %p101 = scmp.eq.s32.totalorder %s21, 1
    %p102 = por %p100, %p101
    %p103 = scmp.ne.s32.totalorder %s94, %s95
    %p104 = scmp.eq.s32.totalorder %s21, 0
    %p105 = por %p103, %p104
    %p106 = scmp.ne.s32.totalorder %s94, %s95
    %p107 = scmp.eq.s32.totalorder %s22, 1
    %p108 = por %p106, %p107
    %p110 = scmp.ne.s32.totalorder %s95, %s109
    %p111 = scmp.eq.s32.totalorder %s22, 0
    %p112 = por %p110, %p111
    %s114 = sadd.s32 %s113, 1
    %p117 = scmp.eq.s32.totalorder %s16, 1
    %p118 = scmp.ne.s32.totalorder %s113, %s115
    %p119 = scmp.eq.s32.totalorder %s16, 0
    %p120 = por %p118, %p119
    %p121 = scmp.ne.s32.totalorder %s113, %s115
    %p122 = scmp.eq.s32.totalorder %s21, 1
    %p123 = por %p121, %p122
    %p124 = scmp.ne.s32.totalorder %s115, %s116
    %p125 = scmp.eq.s32.totalorder %s21, 0
    %p126 = por %p124, %p125
    %p127 = scmp.ne.s32.totalorder %s115, %s116
    %p128 = scmp.eq.s32.totalorder %s22, 1
    %p129 = por %p127, %p128
    %p131 = scmp.ne.s32.totalorder %s116, %s130
    %p132 = scmp.eq.s32.totalorder %s22, 0
    %p133 = por %p131, %p132
    %s135 = sadd.s32 %s134, 1
    %p138 = scmp.eq.s32.totalorder %s16, 1
    %p139 = scmp.ne.s32.totalorder %s134, %s136
    %p140 = scmp.eq.s32.totalorder %s16, 0
    %p141 = por %p139, %p140
    %p142 = scmp.ne.s32.totalorder %s134, %s136
    %p143 = scmp.eq.s32.totalorder %s21, 1
    %p144 = por %p142, %p143
    %p145 = scmp.ne.s32.totalorder %s136, %s137
    %p146 = scmp.eq.s32.totalorder %s21, 0
    %p147 = por %p145, %p146
    %p148 = scmp.ne.s32.totalorder %s136, %s137
    %p149 = scmp.eq.s32.totalorder %s22, 1
    %p150 = por %p148, %p149
    %p152 = scmp.ne.s32.totalorder %s137, %s151
    %p153 = scmp.eq.s32.totalorder %s22, 0
    %p154 = por %p152, %p153
    %s156 = sadd.s32 %s155, 1
    %p159 = scmp.eq.s32.totalorder %s16, 1
    %p160 = scmp.ne.s32.totalorder %s155, %s157
    %p161 = scmp.eq.s32.totalorder %s16, 0
    %p162 = por %p160, %p161
    %p163 = scmp.ne.s32.totalorder %s155, %s157
    %p164 = scmp.eq.s32.totalorder %s21, 1
    %p165 = por %p163, %p164
    %p166 = scmp.ne.s32.totalorder %s157, %s158
    %p167 = scmp.eq.s32.totalorder %s21, 0
    %p168 = por %p166, %p167
    %p169 = scmp.ne.s32.totalorder %s157, %s158
    %p170 = scmp.eq.s32.totalorder %s22, 1
    %p171 = por %p169, %p170
    %p173 = scmp.ne.s32.totalorder %s158, %s172
    %p174 = scmp.eq.s32.totalorder %s22, 0
    %p175 = por %p173, %p174
    %s177 = sadd.s32 %s176, 1
    %p180 = scmp.eq.s32.totalorder %s16, 1
    %p181 = scmp.ne.s32.totalorder %s176, %s178
    %p182 = scmp.eq.s32.totalorder %s16, 0
    %p183 = por %p181, %p182
    %p184 = scmp.ne.s32.totalorder %s176, %s178
    %p185 = scmp.eq.s32.totalorder %s21, 1
    %p186 = por %p184, %p185
    %p187 = scmp.ne.s32.totalorder %s178, %s179
    %p188 = scmp.eq.s32.totalorder %s21, 0
    %p189 = por %p187, %p188
    %p190 = scmp.ne.s32.totalorder %s178, %s179
    %p191 = scmp.eq.s32.totalorder %s22, 1
    %p192 = por %p190, %p191
    %p194 = scmp.ne.s32.totalorder %s179, %s193
    %p195 = scmp.eq.s32.totalorder %s22, 0
    %p196 = por %p194, %p195
    %s197 = ssub.s32 %s16, %s23
    %p198 = scmp.eq.s32.totalorder %s197, 0
    %s200 = sadd.s32 %s199, 1
    %s201 = scalar_select %p198, %s199, %s200
    %p204 = pneg %p198
    %p205 = scmp.eq.s32.totalorder %s16, 1
    %p206 = por %p204, %p205
    %p207 = scmp.ne.s32.totalorder %s199, %s202
    %p208 = scmp.eq.s32.totalorder %s16, 0
    %p209 = por %p207, %p208
    %p210 = scmp.ne.s32.totalorder %s199, %s202
    %p211 = scmp.eq.s32.totalorder %s21, 1
    %p212 = por %p210, %p211
    %p213 = scmp.ne.s32.totalorder %s202, %s203
    %p214 = scmp.eq.s32.totalorder %s21, 0
    %p215 = por %p213, %p214
    %p216 = scmp.ne.s32.totalorder %s202, %s203
    %p217 = scmp.eq.s32.totalorder %s22, 1
    %p218 = por %p216, %p217
    %p220 = scmp.ne.s32.totalorder %s203, %s219
    %p221 = scmp.eq.s32.totalorder %s22, 0
    %p222 = por %p220, %p221
    %s223 = ssub.s32 %s16, %s23
    %p224 = scmp.eq.s32.totalorder %s223, 0
    %s226 = sadd.s32 %s225, 1
    %s227 = scalar_select %p224, %s225, %s226
    %p230 = pneg %p224
    %p231 = scmp.eq.s32.totalorder %s16, 1
    %p232 = por %p230, %p231
    %p233 = scmp.ne.s32.totalorder %s225, %s228
    %p234 = scmp.eq.s32.totalorder %s16, 0
    %p235 = por %p233, %p234
    %p236 = scmp.ne.s32.totalorder %s225, %s228
    %p237 = scmp.eq.s32.totalorder %s21, 1
    %p238 = por %p236, %p237
    %p239 = scmp.ne.s32.totalorder %s228, %s229
    %p240 = scmp.eq.s32.totalorder %s21, 0
    %p241 = por %p239, %p240
    %p242 = scmp.ne.s32.totalorder %s228, %s229
    %p243 = scmp.eq.s32.totalorder %s22, 1
    %p244 = por %p242, %p243
    %p246 = scmp.ne.s32.totalorder %s229, %s245
    %p247 = scmp.eq.s32.totalorder %s22, 0
    %p248 = por %p246, %p247
    %p249 = scmp.le.s32.totalorder 1, %s16
    %p250 = scmp.lt.s32.totalorder %s16, 3
    %p251 = pnand %p249, %p250
    %p252 = pneg %p251
    // Predicated region
    $region9: #{mossformer_m2_forward.7} parent=5 // pred_check
      _
    $region10: #{mossformer_m2_forward.7} parent=5 // pred_check_branch
      %254 = sbr.rel (%p251) target = $region12
    $region11: #{mossformer_m2_forward.7} parent=5 // pred_region
      %s255 = ssub.s32 %s16, 1
      // Predicated region
      $region13: #{mossformer_m2_forward.7} parent=11 // pred_check
        %p256 = pneg %p63
      $region14: #{mossformer_m2_forward.7} parent=11 // pred_check_branch
        %258 = sbr.rel (%p256) target = $region16
      $region15: #{mossformer_m2_forward.7} parent=11 // pred_region
        _
      $region16: #{mossformer_m2_forward.7} parent=11 // pred_fallthru
        _
      // Predicated region
      $region17: #{mossformer_m2_forward.7} parent=11 // pred_check
        %p259 = pneg %p84
      $region18: #{mossformer_m2_forward.7} parent=11 // pred_check_branch
        %261 = sbr.rel (%p259) target = $region20
      $region19: #{mossformer_m2_forward.7} parent=11 // pred_region
        _
      $region20: #{mossformer_m2_forward.7} parent=11 // pred_fallthru
        _
      // Predicated region
      $region21: #{mossformer_m2_forward.7} parent=11 // pred_check
        %p262 = pneg %p105
      $region22: #{mossformer_m2_forward.7} parent=11 // pred_check_branch
        %264 = sbr.rel (%p262) target = $region24
      $region23: #{mossformer_m2_forward.7} parent=11 // pred_region
        _
      $region24: #{mossformer_m2_forward.7} parent=11 // pred_fallthru
        _
      // Predicated region
      $region25: #{mossformer_m2_forward.7} parent=11 // pred_check
        %p265 = pneg %p126
      $region26: #{mossformer_m2_forward.7} parent=11 // pred_check_branch
        %267 = sbr.rel (%p265) target = $region28
      $region27: #{mossformer_m2_forward.7} parent=11 // pred_region
        _
      $region28: #{mossformer_m2_forward.7} parent=11 // pred_fallthru
        _
      // Predicated region
      $region29: #{mossformer_m2_forward.7} parent=11 // pred_check
        %p268 = pneg %p147
      $region30: #{mossformer_m2_forward.7} parent=11 // pred_check_branch
        %270 = sbr.rel (%p268) target = $region32
      $region31: #{mossformer_m2_forward.7} parent=11 // pred_region
        _
      $region32: #{mossformer_m2_forward.7} parent=11 // pred_fallthru
        _
      // Predicated region
      $region33: #{mossformer_m2_forward.7} parent=11 // pred_check
        %p271 = pneg %p168
      $region34: #{mossformer_m2_forward.7} parent=11 // pred_check_branch
        %273 = sbr.rel (%p271) target = $region36
      $region35: #{mossformer_m2_forward.7} parent=11 // pred_region
        _
      $region36: #{mossformer_m2_forward.7} parent=11 // pred_fallthru
        _
      // Predicated region
      $region37: #{mossformer_m2_forward.7} parent=11 // pred_check
        %p274 = pneg %p189
      $region38: #{mossformer_m2_forward.7} parent=11 // pred_check_branch
        %276 = sbr.rel (%p274) target = $region40
      $region39: #{mossformer_m2_forward.7} parent=11 // pred_region
        _
      $region40: #{mossformer_m2_forward.7} parent=11 // pred_fallthru
        _
    $region12: #{mossformer_m2_forward.7} parent=5 // pred_fallthru
      _
    %p277 = scmp.lt.s32.totalorder %s16, 2
    // Predicated region
    $region41: #{mossformer_m2_forward.7} parent=5 // pred_check
      %p278 = pneg %p277
    $region42: #{mossformer_m2_forward.7} parent=5 // pred_check_branch
      %280 = sbr.rel (%p278) target = $region44
    $region43: #{mossformer_m2_forward.7} parent=5 // pred_region
      // Predicated region
      $region45: #{mossformer_m2_forward.7} parent=43 // pred_check
        %p281 = pneg %p36
      $region46: #{mossformer_m2_forward.7} parent=43 // pred_check_branch
        %283 = sbr.rel (%p281) target = $region48
      $region47: #{mossformer_m2_forward.7} parent=43 // pred_region
        %p284 = scmp.lt.s32.totalorder %s16, 1
        %s285 = scalar_select %p284, %s16, 1
        %s286 = smul.addr %s285, 2
        %s287 = smul.addr %s286, 8
        %s288 = scalar_lea.vmem %s0, %s287
      $region48: #{mossformer_m2_forward.7} parent=43 // pred_fallthru
        _
    $region44: #{mossformer_m2_forward.7} parent=5 // pred_fallthru
      _
    %p289 = scmp.le.s32.totalorder 1, %s16
    %p290 = scmp.lt.s32.totalorder %s16, 3
    %p291 = pnand %p289, %p290
    %p292 = pneg %p291
    // Predicated region
    $region49: #{mossformer_m2_forward.7} parent=5 // pred_check
      _
    $region50: #{mossformer_m2_forward.7} parent=5 // pred_check_branch
      %294 = sbr.rel (%p291) target = $region52
    $region51: #{mossformer_m2_forward.7} parent=5 // pred_region
      %s295 = ssub.s32 %s16, 1
      %p296 = scmp.lt.s32.totalorder %s21, 1
      %s297 = scalar_select %p296, %s21, 1
      %s298 = smul.addr %s297, 2
      %s299 = smul.addr %s298, 8
      %s300 = scalar_lea.vmem %s0, %s299
      %p301 = pneg %p42
      %p302 = pneg %p39
      %p303 = pneg %p63
      %p304 = pneg %p60
      %p305 = pneg %p84
      %p306 = pneg %p81
      %p307 = pneg %p105
      %p308 = pneg %p102
      %p309 = pneg %p126
      %p310 = pneg %p123
      %p311 = pneg %p147
      %p312 = pneg %p144
      %p313 = pneg %p168
      %p314 = pneg %p165
      %p315 = pneg %p189
      %p316 = pneg %p186
      %p317 = pneg %p215
      %p318 = pneg %p212
      %p319 = scmp.lt.s32.totalorder %s21, 1
      %s320 = scalar_select %p319, %s21, 1
      %s321 = smul.addr %s320, 6
      %s322 = smul.addr %s321, 4
      %s323 = scalar_lea.vmem %s8, %s322
      %p324 = pneg %p241
      %p325 = pneg %p238
      %p326 = scmp.lt.s32.totalorder %s21, 1
      %s327 = scalar_select %p326, %s21, 1
      %s328 = smul.addr %s327, 8
      %s329 = smul.addr %s328, 8
      %s330 = scalar_lea.vmem %s9, %s329
      %p331 = scmp.lt.s32.totalorder %s21, 1
      %s332 = scalar_select %p331, %s21, 1
      %s333 = smul.addr %s332, 2
      %s334 = smul.addr %s333, 8
      %s335 = scalar_lea.vmem %s0, %s334
      %p336 = scmp.lt.s32.totalorder %s21, 1
      %s337 = scalar_select %p336, %s21, 1
      %s338 = smul.addr %s337, 6
      %s339 = smul.addr %s338, 4
      %s340 = scalar_lea.vmem %s8, %s339
      %p341 = scmp.lt.s32.totalorder %s21, 1
      %s342 = scalar_select %p341, %s21, 1
      %s343 = smul.addr %s342, 8
      %s344 = smul.addr %s343, 8
      %s345 = scalar_lea.vmem %s9, %s344
      %v347 = vld [vmem:[%s335] sm:$0xff]
      %v348 = vld [vmem:[%s335 + $0x8] sm:$0xf]
      %vm349 = vcmask 253952
      %350 = vst.msk [vmem:[#allocation2] sm:$0x1] %vm349, 0.0
      %vm353 = vcmask 1040384
      %v354 = vrot.slane %v347, 7
      %v355 = vrot.slane %v348, 7
      %v356 = vsel %vm353, %v354, %v355
      %vm359 = vcmask 261121
      %360 = vst.msk [vmem:[#allocation2] sm:$0xfe] %vm359, %v354
      %vm361 = vcmask 258048
      %362 = vst.msk [vmem:[#allocation2 + $0x18] sm:$0x1f] %vm361, %v356
      %v363 = vld [vmem:[#allocation2] sm:$0xff]
      %v364 = vld [vmem:[#allocation2 + $0x18] sm:$0xf]
      %v365 = vmul.f32 %v363, %v363
      %v366 = vmul.f32 %v364, %v364
      %vm367 = vcmask 261120
      %v368 = vsel %vm367, %v365, 0.0
      %369 = vadd.xlane.f32.xlu0 %v368
      %v370 = vpop.xlane.xlu0 %369
      %vm371 = vcmask 257024
      %v372 = vsel %vm371, %v366, 0.0
      %373 = vadd.xlane.f32.xlu0 %v372
      %v374 = vpop.xlane.xlu0 %373
      %v375 = vmul.f32 %v347, %v347
      %v376 = vmul.f32 %v348, %v348
      %379 = vrot.lane.b32.xlu0 %v375, 96
      %v380 = vpop.permute.xlu0 %379
      %381 = vrot.lane.b32.xlu0 %v376, 96
      %v382 = vpop.permute.xlu0 %381
      %v385 = vsel %vm367, %v380, 0.0
      %386 = vadd.xlane.f32.xlu0 %v385
      %v387 = vpop.xlane.xlu0 %386
      %v388 = vsel %vm371, %v382, 0.0
      %389 = vadd.xlane.f32.xlu0 %v388
      %v390 = vpop.xlane.xlu0 %389
      %v391 = vadd.f32 %v370, %v387
      %v392 = vadd.f32 %v374, %v390
      %v393 = vrsqrt.pop %v391
      %v394 = vrsqrt.pop %v392
      %v395 = vmul.f32 %v393, 8.0
      %v396 = vmul.f32 %v394, 8.0
      %v397 = vmin.f32 %v395, 100000.0
      %v398 = vmin.f32 %v396, 100000.0
      %v399 = vmul.f32 %v363, %v397
      %v400 = vmul.f32 %v364, %v398
      %v401 = vpack.c.bf16 %v400, %v399
      %v402 = vld [vmem:[%s1] sm:$0xff]
      %v403 = vld [vmem:[%s1 + $0x8] sm:$0xf]
      %v404 = vld [vmem:[%s1 + $0xc] sm:$0xff]
      %v405 = vld [vmem:[%s1 + $0x14] sm:$0xf]
      %v406 = vld [vmem:[%s1 + $0x18] sm:$0xff]
      %v407 = vld [vmem:[%s1 + $0x20] sm:$0xf]
      %v408 = vld [vmem:[%s1 + $0x24] sm:$0xff]
      %v409 = vld [vmem:[%s1 + $0x2c] sm:$0xf]
      %v410 = vmul.f32 %v347, %v397
      %v411 = vmul.f32 %v348, %v398
      %v412 = vpack.c.bf16 %v411, %v410
      %v413 = vld [vmem:[%s2] sm:$0xff]
      %v414 = vld [vmem:[%s2 + $0x8] sm:$0xf]
      %v415 = vld [vmem:[%s2 + $0xc] sm:$0xff]
      %v416 = vld [vmem:[%s2 + $0x14] sm:$0xf]
      %v417 = vld [vmem:[%s2 + $0x18] sm:$0xff]
      %v418 = vld [vmem:[%s2 + $0x20] sm:$0xf]
      %v419 = vld [vmem:[%s2 + $0x24] sm:$0xff]
      %v420 = vld [vmem:[%s2 + $0x2c] sm:$0xf]
      %422 = vrot.lane.b32.xlu0 %v412, 96
      %v423 = vpop.permute.xlu0 %422
      %v432 = vunpack.c.l.b16 %v413
      %v433 = vunpack.c.h.b16 %v413
      %v434 = vunpack.c.l.b16 %v414
      %v435 = vunpack.c.l.b16 %v415
      %v436 = vunpack.c.h.b16 %v415
      %v437 = vunpack.c.l.b16 %v416
      %v438 = vunpack.c.l.b16 %v417
      %v439 = vunpack.c.h.b16 %v417
      %v440 = vunpack.c.l.b16 %v418
      %v441 = vunpack.c.l.b16 %v419
      %v442 = vunpack.c.h.b16 %v419
      %v443 = vunpack.c.l.b16 %v420
      %v444 = vpack.c.b16 %v435, %v432
      %v445 = vpack.c.b16 %v436, %v433
      %v446 = vpack.c.b16 %v437, %v434
      %v447 = vpack.c.b16 %v441, %v438
      %v448 = vpack.c.b16 %v442, %v439
      %v449 = vpack.c.b16 %v443, %v440
      %v457 = vsel %vm367, %v423, 0
      %459 = vmatprep.subr.bf16.mxu0 %v445
      %460 = vmatpush1.bf16.msra.mxu0 %v444
      %461 = vmatprep.subr.bf16.mxu0 %v448
      %462 = vmatpush1.bf16.msra.mxu0 %v447
      %463 = vmatprep.subr.bf16.mxu0 0
      %464 = vmatpush1.bf16.msra.mxu0 0
      %465 = vmatprep.subr.bf16.mxu0 0
      %466 = vmatpush1.bf16.msra.mxu0 0
      %467 = vmatprep.subr.bf16.mxu0 0
      %468 = vmatpush1.bf16.msra.mxu0 0
      %469 = vmatprep.subr.bf16.mxu0 0
      %470 = vmatpush1.bf16.msra.mxu0 0
      %471 = vmatprep.subr.bf16.mxu0 0
      %472 = vmatpush1.bf16.msra.mxu0 0
      %473 = vmatprep.subr.bf16.mxu0 0
      %474 = vmatpush1.bf16.msra.mxu0 0
      %475 = vmatprep.subr.bf16.mxu0 0
      %476 = vmatpush1.bf16.msra.mxu0 0
      %477 = vmatprep.subr.bf16.mxu0 0
      %478 = vmatpush1.bf16.msra.mxu0 0
      %479 = vmatprep.subr.bf16.mxu0 0
      %480 = vmatpush1.bf16.msra.mxu0 0
      %481 = vmatprep.subr.bf16.mxu0 0
      %482 = vmatpush1.bf16.msra.mxu0 0
      %483 = vmatprep.subr.bf16.mxu0 0
      %484 = vmatpush1.bf16.msra.mxu0 0
      %485 = vmatprep.subr.bf16.mxu0 0
      %486 = vmatpush1.bf16.msra.mxu0 0
      %487 = vmatprep.subr.bf16.mxu0 0
      %488 = vmatpush1.bf16.msra.mxu0 0
      %489 = vmatprep.subr.bf16.mxu0 0
      %490 = vmatpush1.bf16.msra.mxu0 0
      %491 = vmatprep.mubr.bf16.mxu0 0
      %492 = vmatmul.mubr.bf16.gmra.mrb[0].mxu0 %v457
      %v493 = vpop.f32.mrb[0].mxu0
      %v494 = vadd.f32 0.0, %v493
      %v495 = vpop.f32.mrb[0].mxu0
      %v496 = vadd.f32 0.0, %v495
      %v497 = vpop.f32.mrb[0].mxu0
      %v498 = vadd.f32 0.0, %v497
      %v499 = vpop.f32.mrb[0].mxu0
      %v500 = vadd.f32 0.0, %v499
      %501 = vdwg.mxu0
      %502 = vmatprep.subr.bf16.mxu0 0
      %503 = vmatpush1.bf16.msra.mxu0 %v446
      %504 = vmatprep.subr.bf16.mxu0 0
      %505 = vmatpush1.bf16.msra.mxu0 %v449
      %506 = vmatprep.subr.bf16.mxu0 0
      %507 = vmatpush1.bf16.msra.mxu0 0
      %508 = vmatprep.subr.bf16.mxu0 0
      %509 = vmatpush1.bf16.msra.mxu0 0
      %510 = vmatprep.subr.bf16.mxu0 0
      %511 = vmatpush1.bf16.msra.mxu0 0
      %512 = vmatprep.subr.bf16.mxu0 0
      %513 = vmatpush1.bf16.msra.mxu0 0
      %514 = vmatprep.subr.bf16.mxu0 0
      %515 = vmatpush1.bf16.msra.mxu0 0
      %516 = vmatprep.subr.bf16.mxu0 0
      %517 = vmatpush1.bf16.msra.mxu0 0
      %518 = vmatprep.subr.bf16.mxu0 0
      %519 = vmatpush1.bf16.msra.mxu0 0
      %520 = vmatprep.subr.bf16.mxu0 0
      %521 = vmatpush1.bf16.msra.mxu0 0
      %522 = vmatprep.subr.bf16.mxu0 0
      %523 = vmatpush1.bf16.msra.mxu0 0
      %524 = vmatprep.subr.bf16.mxu0 0
      %525 = vmatpush1.bf16.msra.mxu0 0
      %526 = vmatprep.subr.bf16.mxu0 0
      %527 = vmatpush1.bf16.msra.mxu0 0
      %528 = vmatprep.subr.bf16.mxu0 0
      %529 = vmatpush1.bf16.msra.mxu0 0
      %530 = vmatprep.subr.bf16.mxu0 0
      %531 = vmatpush1.bf16.msra.mxu0 0
      %532 = vmatprep.subr.bf16.mxu0 0
      %533 = vmatpush1.bf16.msra.mxu0 0
      %534 = vmatprep.mubr.bf16.mxu0 0
      %535 = vmatmul.mubr.bf16.gmra.mrb[0].mxu0 %v457
      %v536 = vpop.f32.mrb[0].mxu0
      %v537 = vadd.f32 0.0, %v536
      %v538 = vpop.f32.mrb[0].mxu0
      %v539 = vpop.f32.mrb[0].mxu0
      %v540 = vadd.f32 0.0, %v539
      %v541 = vpop.f32.mrb[0].mxu0
      %542 = vdwg.mxu0
      %v551 = vunpack.c.l.b16 %v402
      %v552 = vunpack.c.h.b16 %v402
      %v553 = vunpack.c.l.b16 %v403
      %v554 = vunpack.c.l.b16 %v404
      %v555 = vunpack.c.h.b16 %v404
      %v556 = vunpack.c.l.b16 %v405
      %v557 = vunpack.c.l.b16 %v406
      %v558 = vunpack.c.h.b16 %v406
      %v559 = vunpack.c.l.b16 %v407
      %v560 = vunpack.c.l.b16 %v408
      %v561 = vunpack.c.h.b16 %v408
      %v562 = vunpack.c.l.b16 %v409
      %v563 = vpack.c.b16 %v554, %v551
      %v564 = vpack.c.b16 %v555, %v552
      %v565 = vpack.c.b16 %v556, %v553
      %v566 = vpack.c.b16 %v560, %v557
      %v567 = vpack.c.b16 %v561, %v558
      %v568 = vpack.c.b16 %v562, %v559
      %v576 = vsel %vm367, %v401, 0
      %578 = vmatprep.subr.bf16.mxu0 %v564
      %579 = vmatpush1.bf16.msra.mxu0 %v563
      %580 = vmatprep.subr.bf16.mxu0 %v567
      %581 = vmatpush1.bf16.msra.mxu0 %v566
      %582 = vmatprep.subr.bf16.mxu0 0
      %583 = vmatpush1.bf16.msra.mxu0 0
      %584 = vmatprep.subr.bf16.mxu0 0
      %585 = vmatpush1.bf16.msra.mxu0 0
      %586 = vmatprep.subr.bf16.mxu0 0
      %587 = vmatpush1.bf16.msra.mxu0 0
      %588 = vmatprep.subr.bf16.mxu0 0
      %589 = vmatpush1.bf16.msra.mxu0 0
      %590 = vmatprep.subr.bf16.mxu0 0
      %591 = vmatpush1.bf16.msra.mxu0 0
      %592 = vmatprep.subr.bf16.mxu0 0
      %593 = vmatpush1.bf16.msra.mxu0 0
      %594 = vmatprep.subr.bf16.mxu0 0
      %595 = vmatpush1.bf16.msra.mxu0 0
      %596 = vmatprep.subr.bf16.mxu0 0
      %597 = vmatpush1.bf16.msra.mxu0 0
      %598 = vmatprep.subr.bf16.mxu0 0
      %599 = vmatpush1.bf16.msra.mxu0 0
      %600 = vmatprep.subr.bf16.mxu0 0
      %601 = vmatpush1.bf16.msra.mxu0 0
      %602 = vmatprep.subr.bf16.mxu0 0
      %603 = vmatpush1.bf16.msra.mxu0 0
      %604 = vmatprep.subr.bf16.mxu0 0
      %605 = vmatpush1.bf16.msra.mxu0 0
      %606 = vmatprep.subr.bf16.mxu0 0
      %607 = vmatpush1.bf16.msra.mxu0 0
      %608 = vmatprep.subr.bf16.mxu0 0
      %609 = vmatpush1.bf16.msra.mxu0 0
      %610 = vmatprep.mubr.bf16.mxu0 0
      %611 = vmatmul.mubr.bf16.gmra.mrb[0].mxu0 %v576
      %v612 = vpop.f32.mrb[0].mxu0
      %v613 = vadd.f32 %v494, %v612
      %v614 = vpop.f32.mrb[0].mxu0
      %v615 = vadd.f32 %v496, %v614
      %v616 = vpop.f32.mrb[0].mxu0
      %v617 = vadd.f32 %v498, %v616
      %v618 = vpop.f32.mrb[0].mxu0
      %v619 = vadd.f32 %v500, %v618
      %620 = vdwg.mxu0
      %621 = vmatprep.subr.bf16.mxu0 0
      %622 = vmatpush1.bf16.msra.mxu0 %v565
      %623 = vmatprep.subr.bf16.mxu0 0
      %624 = vmatpush1.bf16.msra.mxu0 %v568
      %625 = vmatprep.subr.bf16.mxu0 0
      %626 = vmatpush1.bf16.msra.mxu0 0
      %627 = vmatprep.subr.bf16.mxu0 0
      %628 = vmatpush1.bf16.msra.mxu0 0
      %629 = vmatprep.subr.bf16.mxu0 0
      %630 = vmatpush1.bf16.msra.mxu0 0
      %631 = vmatprep.subr.bf16.mxu0 0
      %632 = vmatpush1.bf16.msra.mxu0 0
      %633 = vmatprep.subr.bf16.mxu0 0
      %634 = vmatpush1.bf16.msra.mxu0 0
      %635 = vmatprep.subr.bf16.mxu0 0
      %636 = vmatpush1.bf16.msra.mxu0 0
      %637 = vmatprep.subr.bf16.mxu0 0
      %638 = vmatpush1.bf16.msra.mxu0 0
      %639 = vmatprep.subr.bf16.mxu0 0
      %640 = vmatpush1.bf16.msra.mxu0 0
      %641 = vmatprep.subr.bf16.mxu0 0
      %642 = vmatpush1.bf16.msra.mxu0 0
      %643 = vmatprep.subr.bf16.mxu0 0
      %644 = vmatpush1.bf16.msra.mxu0 0
      %645 = vmatprep.subr.bf16.mxu0 0
      %646 = vmatpush1.bf16.msra.mxu0 0
      %647 = vmatprep.subr.bf16.mxu0 0
      %648 = vmatpush1.bf16.msra.mxu0 0
      %649 = vmatprep.subr.bf16.mxu0 0
      %650 = vmatpush1.bf16.msra.mxu0 0
      %651 = vmatprep.subr.bf16.mxu0 0
      %652 = vmatpush1.bf16.msra.mxu0 0
      %653 = vmatprep.mubr.bf16.mxu0 0
      %654 = vmatmul.mubr.bf16.gmra.mrb[0].mxu0 %v576
      %v655 = vpop.f32.mrb[0].mxu0
      %v656 = vadd.f32 %v537, %v655
      %v657 = vpop.f32.mrb[0].mxu0
      %v658 = vpop.f32.mrb[0].mxu0
      %v659 = vadd.f32 %v540, %v658
      %v660 = vpop.f32.mrb[0].mxu0
      %661 = vdwg.mxu0
      %v662 = vld [vmem:[%s3] sm:$0x7]
      %v664 = vlaneseq
      %v665 = vshrl.u32 %v664, 7
      %v666 = vsub.s32 0, %v665
      %v667 = vrot.slane %v662, %v666
      %v668 = vlaneseq
      %v669 = vshrl.u32 %v668, 7
      %v670 = vsub.s32 1, %v669
      %v671 = vrot.slane %v662, %v670
      %v672 = vlaneseq
      %v673 = vshrl.u32 %v672, 7
      %v674 = vsub.s32 2, %v673
      %v675 = vrot.slane %v662, %v674
      %v679 = vadd.f32 %v613, %v667
      %v680 = vadd.f32 %v615, %v671
      %v681 = vadd.f32 %v656, %v675
      %v682 = vadd.f32 %v617, %v667
      %v683 = vadd.f32 %v619, %v671
      %v684 = vadd.f32 %v659, %v675
      %v685 = vxor.u32 %v679, 2147483648
      %v686 = vxor.u32 %v680, 2147483648
      %v687 = vxor.u32 %v681, 2147483648
      %v688 = vxor.u32 %v682, 2147483648
      %v689 = vxor.u32 %v683, 2147483648
      %v690 = vxor.u32 %v684, 2147483648
      %v691 = vmul.f32 %v685, 1.442695
      %v692 = vpow.pop %v691
      %v693 = vmul.f32 %v686, 1.442695
      %v694 = vpow.pop %v693
      %v695 = vmul.f32 %v687, 1.442695
      %v696 = vpow.pop %v695
      %v697 = vmul.f32 %v688, 1.442695
      %v698 = vpow.pop %v697
      %v699 = vmul.f32 %v689, 1.442695
      %v700 = vpow.pop %v699
      %v701 = vmul.f32 %v690, 1.442695
      %v702 = vpow.pop %v701
      %v703 = vadd.f32 %v692, 1.0
      %v704 = vadd.f32 %v694, 1.0
      %v705 = vadd.f32 %v696, 1.0
      %v706 = vadd.f32 %v698, 1.0
      %v707 = vadd.f32 %v700, 1.0
      %v708 = vadd.f32 %v702, 1.0
      %v709 = vrcp.pop %v703
      %v710 = vmul.f32 1.0, %v709
      %v711 = vrcp.pop %v704
      %v712 = vmul.f32 1.0, %v711
      %v713 = vrcp.pop %v705
      %v714 = vmul.f32 1.0, %v713
      %v715 = vrcp.pop %v706
      %v716 = vmul.f32 1.0, %v715
      %v717 = vrcp.pop %v707
      %v718 = vmul.f32 1.0, %v717
      %v719 = vrcp.pop %v708
      %v720 = vmul.f32 1.0, %v719
      %v721 = vmul.f32 %v679, %v710
      %v722 = vmul.f32 %v680, %v712
      %v723 = vmul.f32 %v681, %v714
      %v724 = vmul.f32 %v682, %v716
      %v725 = vmul.f32 %v683, %v718
      %v726 = vmul.f32 %v684, %v720
      %727 = vst [vmem:[#allocation2] sm:$0xff] 0.0
      %728 = vst [vmem:[#allocation2 + $0x8] sm:$0xff] 0.0
      %729 = vst.msk [vmem:[#allocation2 + $0x10] sm:$0xff] %vm367, 0.0
      %730 = vst [vmem:[#allocation2 + $0x18] sm:$0xff] %v721
      %731 = vst [vmem:[#allocation2 + $0x20] sm:$0xff] %v722
      %732 = vst.msk [vmem:[#allocation2 + $0x28] sm:$0xff] %vm367, %v723
      %733 = vst [vmem:[#allocation2 + $0x30] sm:$0xf] %v724
      %734 = vst [vmem:[#allocation2 + $0x38] sm:$0xf] %v725
      %735 = vst.msk [vmem:[#allocation2 + $0x40] sm:$0xf] %vm371, %v726
      %736 = vst [vmem:[#allocation2 + $0x30] sm:$0xf0] 0.0
      %737 = vst [vmem:[#allocation2 + $0x38] sm:$0xf0] 0.0
      %vm738 = vcmask 261124
      %739 = vst.msk [vmem:[#allocation2 + $0x40] sm:$0xf0] %vm738, 0.0
      %740 = vst [vmem:[#allocation2 + $0x48] sm:$0xf] 0.0
      %741 = vst [vmem:[#allocation2 + $0x50] sm:$0xf] 0.0
      %742 = vst.msk [vmem:[#allocation2 + $0x58] sm:$0xf] %vm371, 0.0
      %v743 = vld [vmem:[#allocation2] sm:$0xff]
      %v744 = vld [vmem:[#allocation2 + $0x8] sm:$0xff]
      %v745 = vld [vmem:[#allocation2 + $0x10] sm:$0xff]
      %v746 = vld [vmem:[#allocation2 + $0x18] sm:$0xf]
      %v747 = vld [vmem:[#allocation2 + $0x20] sm:$0xf]
      %v748 = vld [vmem:[#allocation2 + $0x28] sm:$0xf]
      %v749 = vld [vmem:[%s4] ss:$8 sm:$0x7]
      %v751 = vlaneseq
      %v752 = vshrl.u32 %v751, 7
      %v753 = vsub.s32 0, %v752
      %v754 = vrot.slane %v749, %v753
      %v755 = vlaneseq
      %v756 = vshrl.u32 %v755, 7
      %v757 = vsub.s32 1, %v756
      %v758 = vrot.slane %v749, %v757
      %v759 = vlaneseq
      %v760 = vshrl.u32 %v759, 7
      %v761 = vsub.s32 2, %v760
      %v762 = vrot.slane %v749, %v761
      %v766 = vmul.f32 %v743, %v754
      %v767 = vmul.f32 %v744, %v758
      %v768 = vmul.f32 %v745, %v762
      %v769 = vmul.f32 %v746, %v754
      %v770 = vmul.f32 %v747, %v758
      %v771 = vmul.f32 %v748, %v762
      %v772 = vadd.f32 %v721, %v766
      %v773 = vadd.f32 %v722, %v767
      %v774 = vadd.f32 %v723, %v768
      %v775 = vadd.f32 %v724, %v769
      %v776 = vadd.f32 %v725, %v770
      %v777 = vadd.f32 %v726, %v771
      %v778 = vld [vmem:[#allocation2] sm:$0xfe]
      %v779 = vld [vmem:[#allocation2 + $0x8] sm:$0xfe]
      %v780 = vld [vmem:[#allocation2 + $0x10] sm:$0xfe]
      %v781 = vld [vmem:[#allocation2 + $0x18] sm:$0x1f]
      %v782 = vld [vmem:[#allocation2 + $0x20] sm:$0x1f]
      %v783 = vld [vmem:[#allocation2 + $0x28] sm:$0x1f]
      %s784 = scalar_lea.vmem %s4, 1
      %v785 = vld [vmem:[%s784] ss:$8 sm:$0x7]
      %v787 = vlaneseq
      %v788 = vshrl.u32 %v787, 7
      %v789 = vsub.s32 0, %v788
      %v790 = vrot.slane %v785, %v789
      %v791 = vlaneseq
      %v792 = vshrl.u32 %v791, 7
      %v793 = vsub.s32 1, %v792
      %v794 = vrot.slane %v785, %v793
      %v795 = vlaneseq
      %v796 = vshrl.u32 %v795, 7
      %v797 = vsub.s32 2, %v796
      %v798 = vrot.slane %v785, %v797
      %v802 = vmul.f32 %v778, %v790
      %v803 = vmul.f32 %v779, %v794
      %v804 = vmul.f32 %v780, %v798
      %v805 = vmul.f32 %v781, %v790
      %v806 = vmul.f32 %v782, %v794
      %v807 = vmul.f32 %v783, %v798
      %vm814 = vcmask 1046528
      %v815 = vrot.slane %v802, 1
      %v816 = vrot.slane %v805, 1
      %v817 = vsel %vm814, %v815, %v816
      %v818 = vrot.slane %v803, 1
      %v819 = vrot.slane %v806, 1
      %v820 = vsel %vm814, %v818, %v819
      %v821 = vrot.slane %v804, 1
      %v822 = vrot.slane %v807, 1
      %v823 = vsel %vm814, %v821, %v822
      %v830 = vadd.f32 %v772, %v817
      %v831 = vadd.f32 %v773, %v820
      %v832 = vadd.f32 %v774, %v823
      %v833 = vadd.f32 %v775, %v816
      %v834 = vadd.f32 %v776, %v819
      %v835 = vadd.f32 %v777, %v822
      %v836 = vld [vmem:[#allocation2] sm:$0xfc]
      %v837 = vld [vmem:[#allocation2 + $0x8] sm:$0xfc]
      %v838 = vld [vmem:[#allocation2 + $0x10] sm:$0xfc]
      %v839 = vld [vmem:[#allocation2 + $0x18] sm:$0x3f]
      %v840 = vld [vmem:[#allocation2 + $0x20] sm:$0x3f]
      %v841 = vld [vmem:[#allocation2 + $0x28] sm:$0x3f]
      %s842 = scalar_lea.vmem %s4, 2
      %v843 = vld [vmem:[%s842] ss:$8 sm:$0x7]
      %v845 = vlaneseq
      %v846 = vshrl.u32 %v845, 7
      %v847 = vsub.s32 0, %v846
      %v848 = vrot.slane %v843, %v847
      %v849 = vlaneseq
      %v850 = vshrl.u32 %v849, 7
      %v851 = vsub.s32 1, %v850
      %v852 = vrot.slane %v843, %v851
      %v853 = vlaneseq
      %v854 = vshrl.u32 %v853, 7
      %v855 = vsub.s32 2, %v854
      %v856 = vrot.slane %v843, %v855
      %v860 = vmul.f32 %v836, %v848
      %v861 = vmul.f32 %v837, %v852
      %v862 = vmul.f32 %v838, %v856
      %v863 = vmul.f32 %v839, %v848
      %v864 = vmul.f32 %v840, %v852
      %v865 = vmul.f32 %v841, %v856
      %vm872 = vcmask 1045504
      %v873 = vrot.slane %v860, 2
      %v874 = vrot.slane %v863, 2
      %v875 = vsel %vm872, %v873, %v874
      %v876 = vrot.slane %v861, 2
      %v877 = vrot.slane %v864, 2
      %v878 = vsel %vm872, %v876, %v877
      %v879 = vrot.slane %v862, 2
      %v880 = vrot.slane %v865, 2
      %v881 = vsel %vm872, %v879, %v880
      %v888 = vadd.f32 %v830, %v875
      %v889 = vadd.f32 %v831, %v878
      %v890 = vadd.f32 %v832, %v881
      %v891 = vadd.f32 %v833, %v874
      %v892 = vadd.f32 %v834, %v877
      %v893 = vadd.f32 %v835, %v880
      %v894 = vld [vmem:[#allocation2] sm:$0xf8]
      %v895 = vld [vmem:[#allocation2 + $0x8] sm:$0xf8]
      %v896 = vld [vmem:[#allocation2 + $0x10] sm:$0xf8]
      %v897 = vld [vmem:[#allocation2 + $0x18] sm:$0x7f]
      %v898 = vld [vmem:[#allocation2 + $0x20] sm:$0x7f]
      %v899 = vld [vmem:[#allocation2 + $0x28] sm:$0x7f]
      %s900 = scalar_lea.vmem %s4, 3
      %v901 = vld [vmem:[%s900] ss:$8 sm:$0x7]
      %v903 = vlaneseq
      %v904 = vshrl.u32 %v903, 7
      %v905 = vsub.s32 0, %v904
      %v906 = vrot.slane %v901, %v905
      %v907 = vlaneseq
      %v908 = vshrl.u32 %v907, 7
      %v909 = vsub.s32 1, %v908
      %v910 = vrot.slane %v901, %v909
      %v911 = vlaneseq
      %v912 = vshrl.u32 %v911, 7
      %v913 = vsub.s32 2, %v912
      %v914 = vrot.slane %v901, %v913
      %v918 = vmul.f32 %v894, %v906
      %v919 = vmul.f32 %v895, %v910
      %v920 = vmul.f32 %v896, %v914
      %v921 = vmul.f32 %v897, %v906
      %v922 = vmul.f32 %v898, %v910
      %v923 = vmul.f32 %v899, %v914
      %vm930 = vcmask 1044480
      %v931 = vrot.slane %v918, 3
      %v932 = vrot.slane %v921, 3
      %v933 = vsel %vm930, %v931, %v932
      %v934 = vrot.slane %v919, 3
      %v935 = vrot.slane %v922, 3
      %v936 = vsel %vm930, %v934, %v935
      %v937 = vrot.slane %v920, 3
      %v938 = vrot.slane %v923, 3
      %v939 = vsel %vm930, %v937, %v938
      %v946 = vadd.f32 %v888, %v933
      %v947 = vadd.f32 %v889, %v936
      %v948 = vadd.f32 %v890, %v939
      %v949 = vadd.f32 %v891, %v932
      %v950 = vadd.f32 %v892, %v935
      %v951 = vadd.f32 %v893, %v938
      %v952 = vld [vmem:[#allocation2] sm:$0xf0]
      %v953 = vld [vmem:[#allocation2 + $0x8] sm:$0xf0]
      %v954 = vld [vmem:[#allocation2 + $0x10] sm:$0xf0]
      %v955 = vld [vmem:[#allocation2 + $0x18] sm:$0xff]
      %v956 = vld [vmem:[#allocation2 + $0x20] sm:$0xff]
      %v957 = vld [vmem:[#allocation2 + $0x28] sm:$0xff]
      %s958 = scalar_lea.vmem %s4, 4
      %v959 = vld [vmem:[%s958] ss:$8 sm:$0x7]
      %v961 = vlaneseq
      %v962 = vshrl.u32 %v961, 7
      %v963 = vsub.s32 0, %v962
      %v964 = vrot.slane %v959, %v963
      %v965 = vlaneseq
      %v966 = vshrl.u32 %v965, 7
      %v967 = vsub.s32 1, %v966
      %v968 = vrot.slane %v959, %v967
      %v969 = vlaneseq
      %v970 = vshrl.u32 %v969, 7
      %v971 = vsub.s32 2, %v970
      %v972 = vrot.slane %v959, %v971
      %v976 = vmul.f32 %v952, %v964
      %v977 = vmul.f32 %v953, %v968
      %v978 = vmul.f32 %v954, %v972
      %v979 = vmul.f32 %v955, %v964
      %v980 = vmul.f32 %v956, %v968
      %v981 = vmul.f32 %v957, %v972
      %vm988 = vcmask 1043456
      %v989 = vrot.slane %v976, 4
      %v990 = vrot.slane %v979, 4
      %v991 = vsel %vm988, %v989, %v990
      %v992 = vrot.slane %v977, 4
      %v993 = vrot.slane %v980, 4
      %v994 = vsel %vm988, %v992, %v993
      %v995 = vrot.slane %v978, 4
      %v996 = vrot.slane %v981, 4
      %v997 = vsel %vm988, %v995, %v996
      %v1004 = vadd.f32 %v946, %v991
      %v1005 = vadd.f32 %v947, %v994
      %v1006 = vadd.f32 %v948, %v997
      %v1007 = vadd.f32 %v949, %v990
      %v1008 = vadd.f32 %v950, %v993
      %v1009 = vadd.f32 %v951, %v996
      %v1010 = vld [vmem:[#allocation2] sm:$0xe0]
      %v1011 = vld [vmem:[#allocation2 + $0x8] sm:$0xe0]
      %v1012 = vld [vmem:[#allocation2 + $0x10] sm:$0xe0]
      %v1013 = vld [vmem:[#allocation2 + $0x30] sm:$0x1]
      %v1014 = vld [vmem:[#allocation2 + $0x38] sm:$0x1]
      %v1015 = vld [vmem:[#allocation2 + $0x40] sm:$0x1]
      %s1016 = scalar_lea.vmem %s4, 5
      %v1017 = vld [vmem:[%s1016] ss:$8 sm:$0x7]
      %v1019 = vlaneseq
      %v1020 = vshrl.u32 %v1019, 7
      %v1021 = vsub.s32 0, %v1020
      %v1022 = vrot.slane %v1017, %v1021
      %v1023 = vlaneseq
      %v1024 = vshrl.u32 %v1023, 7
      %v1025 = vsub.s32 1, %v1024
      %v1026 = vrot.slane %v1017, %v1025
      %v1027 = vlaneseq
      %v1028 = vshrl.u32 %v1027, 7
      %v1029 = vsub.s32 2, %v1028
      %v1030 = vrot.slane %v1017, %v1029
      %v1034 = vmul.f32 %v1010, %v1022
      %v1035 = vmul.f32 %v1011, %v1026
      %v1036 = vmul.f32 %v1012, %v1030
      %v1037 = vmul.f32 %v955, %v1022
      %v1038 = vmul.f32 %v956, %v1026
      %v1039 = vmul.f32 %v957, %v1030
      %v1040 = vmul.f32 %v1013, %v1022
      %v1041 = vmul.f32 %v1014, %v1026
      %v1042 = vmul.f32 %v1015, %v1030
      %vm1052 = vcmask 1042432
      %v1053 = vrot.slane %v1034, 5
      %v1054 = vrot.slane %v1037, 5
      %v1055 = vsel %vm1052, %v1053, %v1054
      %v1056 = vrot.slane %v1035, 5
      %v1057 = vrot.slane %v1038, 5
      %v1058 = vsel %vm1052, %v1056, %v1057
      %v1059 = vrot.slane %v1036, 5
      %v1060 = vrot.slane %v1039, 5
      %v1061 = vsel %vm1052, %v1059, %v1060
      %v1062 = vrot.slane %v1040, 5
      %v1063 = vsel %vm1052, %v1054, %v1062
      %v1064 = vrot.slane %v1041, 5
      %v1065 = vsel %vm1052, %v1057, %v1064
      %v1066 = vrot.slane %v1042, 5
      %v1067 = vsel %vm1052, %v1060, %v1066
      %v1074 = vadd.f32 %v1004, %v1055
      %v1075 = vadd.f32 %v1005, %v1058
      %v1076 = vadd.f32 %v1006, %v1061
      %v1077 = vadd.f32 %v1007, %v1063
      %v1078 = vadd.f32 %v1008, %v1065
      %v1079 = vadd.f32 %v1009, %v1067
      %v1080 = vld [vmem:[#allocation2] sm:$0xc0]
      %v1081 = vld [vmem:[#allocation2 + $0x8] sm:$0xc0]
      %v1082 = vld [vmem:[#allocation2 + $0x10] sm:$0xc0]
      %v1083 = vld [vmem:[#allocation2 + $0x30] sm:$0x3]
      %v1084 = vld [vmem:[#allocation2 + $0x38] sm:$0x3]
      %v1085 = vld [vmem:[#allocation2 + $0x40] sm:$0x3]
      %s1086 = scalar_lea.vmem %s4, 6
      %v1087 = vld [vmem:[%s1086] ss:$8 sm:$0x7]
      %v1089 = vlaneseq
      %v1090 = vshrl.u32 %v1089, 7
      %v1091 = vsub.s32 0, %v1090
      %v1092 = vrot.slane %v1087, %v1091
      %v1093 = vlaneseq
      %v1094 = vshrl.u32 %v1093, 7
      %v1095 = vsub.s32 1, %v1094
      %v1096 = vrot.slane %v1087, %v1095
      %v1097 = vlaneseq
      %v1098 = vshrl.u32 %v1097, 7
      %v1099 = vsub.s32 2, %v1098
      %v1100 = vrot.slane %v1087, %v1099
      %v1104 = vmul.f32 %v1080, %v1092
      %v1105 = vmul.f32 %v1081, %v1096
      %v1106 = vmul.f32 %v1082, %v1100
      %v1107 = vmul.f32 %v955, %v1092
      %v1108 = vmul.f32 %v956, %v1096
      %v1109 = vmul.f32 %v957, %v1100
      %v1110 = vmul.f32 %v1083, %v1092
      %v1111 = vmul.f32 %v1084, %v1096
      %v1112 = vmul.f32 %v1085, %v1100
      %vm1122 = vcmask 1041408
      %v1123 = vrot.slane %v1104, 6
      %v1124 = vrot.slane %v1107, 6
      %v1125 = vsel %vm1122, %v1123, %v1124
      %v1126 = vrot.slane %v1105, 6
      %v1127 = vrot.slane %v1108, 6
      %v1128 = vsel %vm1122, %v1126, %v1127
      %v1129 = vrot.slane %v1106, 6
      %v1130 = vrot.slane %v1109, 6
      %v1131 = vsel %vm1122, %v1129, %v1130
      %v1132 = vrot.slane %v1110, 6
      %v1133 = vsel %vm1122, %v1124, %v1132
      %v1134 = vrot.slane %v1111, 6
      %v1135 = vsel %vm1122, %v1127, %v1134
      %v1136 = vrot.slane %v1112, 6
      %v1137 = vsel %vm1122, %v1130, %v1136
      %v1144 = vadd.f32 %v1074, %v1125
      %v1145 = vadd.f32 %v1075, %v1128
      %v1146 = vadd.f32 %v1076, %v1131
      %v1147 = vadd.f32 %v1077, %v1133
      %v1148 = vadd.f32 %v1078, %v1135
      %v1149 = vadd.f32 %v1079, %v1137
      %v1150 = vld [vmem:[#allocation2] sm:$0x80]
      %v1151 = vld [vmem:[#allocation2 + $0x8] sm:$0x80]
      %v1152 = vld [vmem:[#allocation2 + $0x10] sm:$0x80]
      %v1153 = vld [vmem:[#allocation2 + $0x30] sm:$0x7]
      %v1154 = vld [vmem:[#allocation2 + $0x38] sm:$0x7]
      %v1155 = vld [vmem:[#allocation2 + $0x40] sm:$0x7]
      %s1156 = scalar_lea.vmem %s4, 7
      %v1157 = vld [vmem:[%s1156] ss:$8 sm:$0x7]
      %v1159 = vlaneseq
      %v1160 = vshrl.u32 %v1159, 7
      %v1161 = vsub.s32 0, %v1160
      %v1162 = vrot.slane %v1157, %v1161
      %v1163 = vlaneseq
      %v1164 = vshrl.u32 %v1163, 7
      %v1165 = vsub.s32 1, %v1164
      %v1166 = vrot.slane %v1157, %v1165
      %v1167 = vlaneseq
      %v1168 = vshrl.u32 %v1167, 7
      %v1169 = vsub.s32 2, %v1168
      %v1170 = vrot.slane %v1157, %v1169
      %v1174 = vmul.f32 %v1150, %v1162
      %v1175 = vmul.f32 %v1151, %v1166
      %v1176 = vmul.f32 %v1152, %v1170
      %v1177 = vmul.f32 %v955, %v1162
      %v1178 = vmul.f32 %v956, %v1166
      %v1179 = vmul.f32 %v957, %v1170
      %v1180 = vmul.f32 %v1153, %v1162
      %v1181 = vmul.f32 %v1154, %v1166
      %v1182 = vmul.f32 %v1155, %v1170
      %v1192 = vrot.slane %v1174, 7
      %v1193 = vrot.slane %v1177, 7
      %v1194 = vsel %vm353, %v1192, %v1193
      %v1195 = vrot.slane %v1175, 7
      %v1196 = vrot.slane %v1178, 7
      %v1197 = vsel %vm353, %v1195, %v1196
      %v1198 = vrot.slane %v1176, 7
      %v1199 = vrot.slane %v1179, 7
      %v1200 = vsel %vm353, %v1198, %v1199
      %v1201 = vrot.slane %v1180, 7
      %v1202 = vsel %vm353, %v1193, %v1201
      %v1203 = vrot.slane %v1181, 7
      %v1204 = vsel %vm353, %v1196, %v1203
      %v1205 = vrot.slane %v1182, 7
      %v1206 = vsel %vm353, %v1199, %v1205
      %v1213 = vadd.f32 %v1144, %v1194
      %v1214 = vadd.f32 %v1145, %v1197
      %v1215 = vadd.f32 %v1146, %v1200
      %v1216 = vadd.f32 %v1147, %v1202
      %v1217 = vadd.f32 %v1148, %v1204
      %v1218 = vadd.f32 %v1149, %v1206
      %v1219 = vld [vmem:[#allocation2 + $0x30] sm:$0xf]
      %v1220 = vld [vmem:[#allocation2 + $0x38] sm:$0xf]
      %v1221 = vld [vmem:[#allocation2 + $0x40] sm:$0xf]
      %s1222 = scalar_lea.vmem %s4, 24
      %v1223 = vld [vmem:[%s1222] ss:$8 sm:$0x7]
      %v1225 = vlaneseq
      %v1226 = vshrl.u32 %v1225, 7
      %v1227 = vsub.s32 0, %v1226
      %v1228 = vrot.slane %v1223, %v1227
      %v1229 = vlaneseq
      %v1230 = vshrl.u32 %v1229, 7
      %v1231 = vsub.s32 1, %v1230
      %v1232 = vrot.slane %v1223, %v1231
      %v1233 = vlaneseq
      %v1234 = vshrl.u32 %v1233, 7
      %v1235 = vsub.s32 2, %v1234
      %v1236 = vrot.slane %v1223, %v1235
      %v1240 = vmul.f32 %v955, %v1228
      %v1241 = vmul.f32 %v956, %v1232
      %v1242 = vmul.f32 %v957, %v1236
      %v1243 = vmul.f32 %v1219, %v1228
      %v1244 = vmul.f32 %v1220, %v1232
      %v1245 = vmul.f32 %v1221, %v1236
      %v1246 = vadd.f32 %v1213, %v1240
      %v1247 = vadd.f32 %v1214, %v1241
      %v1248 = vadd.f32 %v1215, %v1242
      %v1249 = vadd.f32 %v1216, %v1243
      %v1250 = vadd.f32 %v1217, %v1244
      %v1251 = vadd.f32 %v1218, %v1245
      %v1252 = vld [vmem:[#allocation2 + $0x18] sm:$0xfe]
      %v1253 = vld [vmem:[#allocation2 + $0x20] sm:$0xfe]
      %v1254 = vld [vmem:[#allocation2 + $0x28] sm:$0xfe]
      %v1255 = vld [vmem:[#allocation2 + $0x30] sm:$0x1f]
      %v1256 = vld [vmem:[#allocation2 + $0x38] sm:$0x1f]
      %v1257 = vld [vmem:[#allocation2 + $0x40] sm:$0x1f]
      %s1258 = scalar_lea.vmem %s4, 25
      %v1259 = vld [vmem:[%s1258] ss:$8 sm:$0x7]
      %v1261 = vlaneseq
      %v1262 = vshrl.u32 %v1261, 7
      %v1263 = vsub.s32 0, %v1262
      %v1264 = vrot.slane %v1259, %v1263
      %v1265 = vlaneseq
      %v1266 = vshrl.u32 %v1265, 7
      %v1267 = vsub.s32 1, %v1266
      %v1268 = vrot.slane %v1259, %v1267
      %v1269 = vlaneseq
      %v1270 = vshrl.u32 %v1269, 7
      %v1271 = vsub.s32 2, %v1270
      %v1272 = vrot.slane %v1259, %v1271
      %v1276 = vmul.f32 %v1252, %v1264
      %v1277 = vmul.f32 %v1253, %v1268
      %v1278 = vmul.f32 %v1254, %v1272
      %v1279 = vmul.f32 %v1255, %v1264
      %v1280 = vmul.f32 %v1256, %v1268
      %v1281 = vmul.f32 %v1257, %v1272
      %v1288 = vrot.slane %v1276, 1
      %v1289 = vrot.slane %v1279, 1
      %v1290 = vsel %vm814, %v1288, %v1289
      %v1291 = vrot.slane %v1277, 1
      %v1292 = vrot.slane %v1280, 1
      %v1293 = vsel %vm814, %v1291, %v1292
      %v1294 = vrot.slane %v1278, 1
      %v1295 = vrot.slane %v1281, 1
      %v1296 = vsel %vm814, %v1294, %v1295
      %v1303 = vadd.f32 %v1246, %v1290
      %v1304 = vadd.f32 %v1247, %v1293
      %v1305 = vadd.f32 %v1248, %v1296
      %v1306 = vadd.f32 %v1249, %v1289
      %v1307 = vadd.f32 %v1250, %v1292
      %v1308 = vadd.f32 %v1251, %v1295
      %v1309 = vld [vmem:[#allocation2 + $0x18] sm:$0xfc]
      %v1310 = vld [vmem:[#allocation2 + $0x20] sm:$0xfc]
      %v1311 = vld [vmem:[#allocation2 + $0x28] sm:$0xfc]
      %v1312 = vld [vmem:[#allocation2 + $0x30] sm:$0x3f]
      %v1313 = vld [vmem:[#allocation2 + $0x38] sm:$0x3f]
      %v1314 = vld [vmem:[#allocation2 + $0x40] sm:$0x3f]
      %s1315 = scalar_lea.vmem %s4, 26
      %v1316 = vld [vmem:[%s1315] ss:$8 sm:$0x7]
      %v1318 = vlaneseq
      %v1319 = vshrl.u32 %v1318, 7
      %v1320 = vsub.s32 0, %v1319
      %v1321 = vrot.slane %v1316, %v1320
      %v1322 = vlaneseq
      %v1323 = vshrl.u32 %v1322, 7
      %v1324 = vsub.s32 1, %v1323
      %v1325 = vrot.slane %v1316, %v1324
      %v1326 = vlaneseq
      %v1327 = vshrl.u32 %v1326, 7
      %v1328 = vsub.s32 2, %v1327
      %v1329 = vrot.slane %v1316, %v1328
      %v1333 = vmul.f32 %v1309, %v1321
      %v1334 = vmul.f32 %v1310, %v1325
      %v1335 = vmul.f32 %v1311, %v1329
      %v1336 = vmul.f32 %v1312, %v1321
      %v1337 = vmul.f32 %v1313, %v1325
      %v1338 = vmul.f32 %v1314, %v1329
      %v1345 = vrot.slane %v1333, 2
      %v1346 = vrot.slane %v1336, 2
      %v1347 = vsel %vm872, %v1345, %v1346
      %v1348 = vrot.slane %v1334, 2
      %v1349 = vrot.slane %v1337, 2
      %v1350 = vsel %vm872, %v1348, %v1349
      %v1351 = vrot.slane %v1335, 2
      %v1352 = vrot.slane %v1338, 2
      %v1353 = vsel %vm872, %v1351, %v1352
      %v1360 = vadd.f32 %v1303, %v1347
      %v1361 = vadd.f32 %v1304, %v1350
      %v1362 = vadd.f32 %v1305, %v1353
      %v1363 = vadd.f32 %v1306, %v1346
      %v1364 = vadd.f32 %v1307, %v1349
      %v1365 = vadd.f32 %v1308, %v1352
      %v1366 = vld [vmem:[#allocation2 + $0x18] sm:$0xf8]
      %v1367 = vld [vmem:[#allocation2 + $0x20] sm:$0xf8]
      %v1368 = vld [vmem:[#allocation2 + $0x28] sm:$0xf8]
      %v1369 = vld [vmem:[#allocation2 + $0x30] sm:$0x7f]
      %v1370 = vld [vmem:[#allocation2 + $0x38] sm:$0x7f]
      %v1371 = vld [vmem:[#allocation2 + $0x40] sm:$0x7f]
      %s1372 = scalar_lea.vmem %s4, 27
      %v1373 = vld [vmem:[%s1372] ss:$8 sm:$0x7]
      %v1375 = vlaneseq
      %v1376 = vshrl.u32 %v1375, 7
      %v1377 = vsub.s32 0, %v1376
      %v1378 = vrot.slane %v1373, %v1377
      %v1379 = vlaneseq
      %v1380 = vshrl.u32 %v1379, 7
      %v1381 = vsub.s32 1, %v1380
      %v1382 = vrot.slane %v1373, %v1381
      %v1383 = vlaneseq
      %v1384 = vshrl.u32 %v1383, 7
      %v1385 = vsub.s32 2, %v1384
      %v1386 = vrot.slane %v1373, %v1385
      %v1390 = vmul.f32 %v1366, %v1378
      %v1391 = vmul.f32 %v1367, %v1382
      %v1392 = vmul.f32 %v1368, %v1386
      %v1393 = vmul.f32 %v1369, %v1378
      %v1394 = vmul.f32 %v1370, %v1382
      %v1395 = vmul.f32 %v1371, %v1386
      %v1402 = vrot.slane %v1390, 3
      %v1403 = vrot.slane %v1393, 3
      %v1404 = vsel %vm930, %v1402, %v1403
      %v1405 = vrot.slane %v1391, 3
      %v1406 = vrot.slane %v1394, 3
      %v1407 = vsel %vm930, %v1405, %v1406
      %v1408 = vrot.slane %v1392, 3
      %v1409 = vrot.slane %v1395, 3
      %v1410 = vsel %vm930, %v1408, %v1409
      %v1417 = vadd.f32 %v1360, %v1404
      %v1418 = vadd.f32 %v1361, %v1407
      %v1419 = vadd.f32 %v1362, %v1410
      %v1420 = vadd.f32 %v1363, %v1403
      %v1421 = vadd.f32 %v1364, %v1406
      %v1422 = vadd.f32 %v1365, %v1409
      %v1423 = vld [vmem:[#allocation2 + $0x18] sm:$0xf0]
      %v1424 = vld [vmem:[#allocation2 + $0x20] sm:$0xf0]
      %v1425 = vld [vmem:[#allocation2 + $0x28] sm:$0xf0]
      %v1426 = vld [vmem:[#allocation2 + $0x30] sm:$0xff]
      %v1427 = vld [vmem:[#allocation2 + $0x38] sm:$0xff]
      %v1428 = vld [vmem:[#allocation2 + $0x40] sm:$0xff]
      %s1429 = scalar_lea.vmem %s4, 28
      %v1430 = vld [vmem:[%s1429] ss:$8 sm:$0x7]
      %v1432 = vlaneseq
      %v1433 = vshrl.u32 %v1432, 7
      %v1434 = vsub.s32 0, %v1433
      %v1435 = vrot.slane %v1430, %v1434
      %v1436 = vlaneseq
      %v1437 = vshrl.u32 %v1436, 7
      %v1438 = vsub.s32 1, %v1437
      %v1439 = vrot.slane %v1430, %v1438
      %v1440 = vlaneseq
      %v1441 = vshrl.u32 %v1440, 7
      %v1442 = vsub.s32 2, %v1441
      %v1443 = vrot.slane %v1430, %v1442
      %v1447 = vmul.f32 %v1423, %v1435
      %v1448 = vmul.f32 %v1424, %v1439
      %v1449 = vmul.f32 %v1425, %v1443
      %v1450 = vmul.f32 %v1426, %v1435
      %v1451 = vmul.f32 %v1427, %v1439
      %v1452 = vmul.f32 %v1428, %v1443
      %v1459 = vrot.slane %v1447, 4
      %v1460 = vrot.slane %v1450, 4
      %v1461 = vsel %vm988, %v1459, %v1460
      %v1462 = vrot.slane %v1448, 4
      %v1463 = vrot.slane %v1451, 4
      %v1464 = vsel %vm988, %v1462, %v1463
      %v1465 = vrot.slane %v1449, 4
      %v1466 = vrot.slane %v1452, 4
      %v1467 = vsel %vm988, %v1465, %v1466
      %v1474 = vadd.f32 %v1417, %v1461
      %v1475 = vadd.f32 %v1418, %v1464
      %v1476 = vadd.f32 %v1419, %v1467
      %v1477 = vadd.f32 %v1420, %v1460
      %v1478 = vadd.f32 %v1421, %v1463
      %v1479 = vadd.f32 %v1422, %v1466
      %v1480 = vld [vmem:[#allocation2 + $0x18] sm:$0xe0]
      %v1481 = vld [vmem:[#allocation2 + $0x20] sm:$0xe0]
      %v1482 = vld [vmem:[#allocation2 + $0x28] sm:$0xe0]
      %v1483 = vld [vmem:[#allocation2 + $0x48] sm:$0x1]
      %v1484 = vld [vmem:[#allocation2 + $0x50] sm:$0x1]
      %v1485 = vld [vmem:[#allocation2 + $0x58] sm:$0x1]
      %s1486 = scalar_lea.vmem %s4, 29
      %v1487 = vld [vmem:[%s1486] ss:$8 sm:$0x7]
      %v1489 = vlaneseq
      %v1490 = vshrl.u32 %v1489, 7
      %v1491 = vsub.s32 0, %v1490
      %v1492 = vrot.slane %v1487, %v1491
      %v1493 = vlaneseq
      %v1494 = vshrl.u32 %v1493, 7
      %v1495 = vsub.s32 1, %v1494
      %v1496 = vrot.slane %v1487, %v1495
      %v1497 = vlaneseq
      %v1498 = vshrl.u32 %v1497, 7
      %v1499 = vsub.s32 2, %v1498
      %v1500 = vrot.slane %v1487, %v1499
      %v1504 = vmul.f32 %v1480, %v1492
      %v1505 = vmul.f32 %v1481, %v1496
      %v1506 = vmul.f32 %v1482, %v1500
      %v1507 = vmul.f32 %v1426, %v1492
      %v1508 = vmul.f32 %v1427, %v1496
      %v1509 = vmul.f32 %v1428, %v1500
      %v1510 = vmul.f32 %v1483, %v1492
      %v1511 = vmul.f32 %v1484, %v1496
      %v1512 = vmul.f32 %v1485, %v1500
      %v1522 = vrot.slane %v1504, 5
      %v1523 = vrot.slane %v1507, 5
      %v1524 = vsel %vm1052, %v1522, %v1523
      %v1525 = vrot.slane %v1505, 5
      %v1526 = vrot.slane %v1508, 5
      %v1527 = vsel %vm1052, %v1525, %v1526
      %v1528 = vrot.slane %v1506, 5
      %v1529 = vrot.slane %v1509, 5
      %v1530 = vsel %vm1052, %v1528, %v1529
      %v1531 = vrot.slane %v1510, 5
      %v1532 = vsel %vm1052, %v1523, %v1531
      %v1533 = vrot.slane %v1511, 5
      %v1534 = vsel %vm1052, %v1526, %v1533
      %v1535 = vrot.slane %v1512, 5
      %v1536 = vsel %vm1052, %v1529, %v1535
      %v1543 = vadd.f32 %v1474, %v1524
      %v1544 = vadd.f32 %v1475, %v1527
      %v1545 = vadd.f32 %v1476, %v1530
      %v1546 = vadd.f32 %v1477, %v1532
      %v1547 = vadd.f32 %v1478, %v1534
      %v1548 = vadd.f32 %v1479, %v1536
      %v1549 = vld [vmem:[#allocation2 + $0x18] sm:$0xc0]
      %v1550 = vld [vmem:[#allocation2 + $0x20] sm:$0xc0]
      %v1551 = vld [vmem:[#allocation2 + $0x28] sm:$0xc0]
      %v1552 = vld [vmem:[#allocation2 + $0x48] sm:$0x3]
      %v1553 = vld [vmem:[#allocation2 + $0x50] sm:$0x3]
      %v1554 = vld [vmem:[#allocation2 + $0x58] sm:$0x3]
      %s1555 = scalar_lea.vmem %s4, 30
      %v1556 = vld [vmem:[%s1555] ss:$8 sm:$0x7]
      %v1558 = vlaneseq
      %v1559 = vshrl.u32 %v1558, 7
      %v1560 = vsub.s32 0, %v1559
      %v1561 = vrot.slane %v1556, %v1560
      %v1562 = vlaneseq
      %v1563 = vshrl.u32 %v1562, 7
      %v1564 = vsub.s32 1, %v1563
      %v1565 = vrot.slane %v1556, %v1564
      %v1566 = vlaneseq
      %v1567 = vshrl.u32 %v1566, 7
      %v1568 = vsub.s32 2, %v1567
      %v1569 = vrot.slane %v1556, %v1568
      %v1573 = vmul.f32 %v1549, %v1561
      %v1574 = vmul.f32 %v1550, %v1565
      %v1575 = vmul.f32 %v1551, %v1569
      %v1576 = vmul.f32 %v1426, %v1561
      %v1577 = vmul.f32 %v1427, %v1565
      %v1578 = vmul.f32 %v1428, %v1569
      %v1579 = vmul.f32 %v1552, %v1561
      %v1580 = vmul.f32 %v1553, %v1565
      %v1581 = vmul.f32 %v1554, %v1569
      %v1591 = vrot.slane %v1573, 6
      %v1592 = vrot.slane %v1576, 6
      %v1593 = vsel %vm1122, %v1591, %v1592
      %v1594 = vrot.slane %v1574, 6
      %v1595 = vrot.slane %v1577, 6
      %v1596 = vsel %vm1122, %v1594, %v1595
      %v1597 = vrot.slane %v1575, 6
      %v1598 = vrot.slane %v1578, 6
      %v1599 = vsel %vm1122, %v1597, %v1598
      %v1600 = vrot.slane %v1579, 6
      %v1601 = vsel %vm1122, %v1592, %v1600
      %v1602 = vrot.slane %v1580, 6
      %v1603 = vsel %vm1122, %v1595, %v1602
      %v1604 = vrot.slane %v1581, 6
      %v1605 = vsel %vm1122, %v1598, %v1604
      %v1612 = vadd.f32 %v1543, %v1593
      %v1613 = vadd.f32 %v1544, %v1596
      %v1614 = vadd.f32 %v1545, %v1599
      %v1615 = vadd.f32 %v1546, %v1601
      %v1616 = vadd.f32 %v1547, %v1603
      %v1617 = vadd.f32 %v1548, %v1605
      %v1618 = vld [vmem:[#allocation2 + $0x18] sm:$0x80]
      %v1619 = vld [vmem:[#allocation2 + $0x20] sm:$0x80]
      %v1620 = vld [vmem:[#allocation2 + $0x28] sm:$0x80]
      %v1621 = vld [vmem:[#allocation2 + $0x48] sm:$0x7]
      %v1622 = vld [vmem:[#allocation2 + $0x50] sm:$0x7]
      %v1623 = vld [vmem:[#allocation2 + $0x58] sm:$0x7]
      %s1624 = scalar_lea.vmem %s4, 31
      %v1625 = vld [vmem:[%s1624] ss:$8 sm:$0x7]
      %v1627 = vlaneseq
      %v1628 = vshrl.u32 %v1627, 7
      %v1629 = vsub.s32 0, %v1628
      %v1630 = vrot.slane %v1625, %v1629
      %v1631 = vlaneseq
      %v1632 = vshrl.u32 %v1631, 7
      %v1633 = vsub.s32 1, %v1632
      %v1634 = vrot.slane %v1625, %v1633
      %v1635 = vlaneseq
      %v1636 = vshrl.u32 %v1635, 7
      %v1637 = vsub.s32 2, %v1636
      %v1638 = vrot.slane %v1625, %v1637
      %v1642 = vmul.f32 %v1618, %v1630
      %v1643 = vmul.f32 %v1619, %v1634
      %v1644 = vmul.f32 %v1620, %v1638
      %v1645 = vmul.f32 %v1426, %v1630
      %v1646 = vmul.f32 %v1427, %v1634
      %v1647 = vmul.f32 %v1428, %v1638
      %v1648 = vmul.f32 %v1621, %v1630
      %v1649 = vmul.f32 %v1622, %v1634
      %v1650 = vmul.f32 %v1623, %v1638
      %v1660 = vrot.slane %v1642, 7
      %v1661 = vrot.slane %v1645, 7
      %v1662 = vsel %vm353, %v1660, %v1661
      %v1663 = vrot.slane %v1643, 7
      %v1664 = vrot.slane %v1646, 7
      %v1665 = vsel %vm353, %v1663, %v1664
      %v1666 = vrot.slane %v1644, 7
      %v1667 = vrot.slane %v1647, 7
      %v1668 = vsel %vm353, %v1666, %v1667
      %v1669 = vrot.slane %v1648, 7
      %v1670 = vsel %vm353, %v1661, %v1669
      %v1671 = vrot.slane %v1649, 7
      %v1672 = vsel %vm353, %v1664, %v1671
      %v1673 = vrot.slane %v1650, 7
      %v1674 = vsel %vm353, %v1667, %v1673
      %v1681 = vadd.f32 %v1612, %v1662
      %v1682 = vadd.f32 %v1613, %v1665
      %v1683 = vadd.f32 %v1614, %v1668
      %v1684 = vadd.f32 %v1615, %v1670
      %v1685 = vadd.f32 %v1616, %v1672
      %v1686 = vadd.f32 %v1617, %v1674
      %v1687 = vld [vmem:[#allocation2 + $0x48] sm:$0xf]
      %v1688 = vld [vmem:[#allocation2 + $0x50] sm:$0xf]
      %v1689 = vld [vmem:[#allocation2 + $0x58] sm:$0xf]
      %s1690 = scalar_lea.vmem %s4, 48
      %v1691 = vld [vmem:[%s1690] ss:$8 sm:$0x7]
      %v1693 = vlaneseq
      %v1694 = vshrl.u32 %v1693, 7
      %v1695 = vsub.s32 0, %v1694
      %v1696 = vrot.slane %v1691, %v1695
      %v1697 = vlaneseq
      %v1698 = vshrl.u32 %v1697, 7
      %v1699 = vsub.s32 1, %v1698
      %v1700 = vrot.slane %v1691, %v1699
      %v1701 = vlaneseq
      %v1702 = vshrl.u32 %v1701, 7
      %v1703 = vsub.s32 2, %v1702
      %v1704 = vrot.slane %v1691, %v1703
      %v1708 = vmul.f32 %v1426, %v1696
      %v1709 = vmul.f32 %v1427, %v1700
      %v1710 = vmul.f32 %v1428, %v1704
      %v1711 = vmul.f32 %v1687, %v1696
      %v1712 = vmul.f32 %v1688, %v1700
      %v1713 = vmul.f32 %v1689, %v1704
      %v1714 = vadd.f32 %v1681, %v1708
      %v1715 = vadd.f32 %v1682, %v1709
      %v1716 = vadd.f32 %v1683, %v1710
      %v1717 = vadd.f32 %v1684, %v1711
      %v1718 = vadd.f32 %v1685, %v1712
      %v1719 = vadd.f32 %v1686, %v1713
      %1720 = vst [vmem:[%s340 + $0xc] sm:$0xcc] 0
      %vm1721 = vcmask 257026
      %1722 = vst.msk [vmem:[%s340 + $0x14] sm:$0xc] %vm1721, 0
      %v1723 = vpack.c.bf16 %v1717, %v1714
      %v1724 = vpack.c.bf16 %v1718, %v1715
      %v1725 = vpack.c.bf16 %v1719, %v1716
      %v1729 = vunpack.c.l.b16 %v1723
      %v1730 = vunpack.c.l.b16 %v1724
      %v1731 = vunpack.c.l.b16 %v1725
      %v1732 = vunpack.c.h.b16 %v1723
      %v1733 = vunpack.c.h.b16 %v1724
      %v1734 = vunpack.c.h.b16 %v1725
      %v1735 = vpack.c.b16 %v1730, %v1729
      %v1736 = vpack.c.b16 %v1731, %v1731
      %v1737 = vpack.c.b16 %v1733, %v1732
      %v1738 = vpack.c.b16 %v1734, %v1734
      %1743 = vst [vmem:[%s340] sm:$0xff] %v1735
      %1744 = vst.msk [vmem:[%s340 + $0x8] sm:$0xf] %vm371, %v1736
      %1745 = vst [vmem:[%s340 + $0xc] sm:$0x33] %v1737
      %vm1746 = vcmask 254976
      %1747 = vst.msk [vmem:[%s340 + $0x14] sm:$0x3] %vm1746, %v1738
      %v1748 = vld [vmem:[%s5 + $0x3] sm:$0x1]
      %v1749 = vlaneseq
      %v1750 = vshrl.u32 %v1749, 7
      %v1751 = vsub.s32 0, %v1750
      %v1752 = vrot.slane %v1748, %v1751
      %v1753 = vmul.f32 %v1716, %v1752
      %v1754 = vmul.f32 %v1719, %v1752
      %v1755 = vld [vmem:[%s5 + $0x7] sm:$0x1]
      %v1756 = vlaneseq
      %v1757 = vshrl.u32 %v1756, 7
      %v1758 = vsub.s32 0, %v1757
      %v1759 = vrot.slane %v1755, %v1758
      %v1760 = vadd.f32 %v1753, %v1759
      %v1761 = vadd.f32 %v1754, %v1759
      %v1762 = vld [vmem:[%s6] sm:$0xff]
      %v1763 = vld [vmem:[%s6 + $0x8] sm:$0xf]
      %v1764 = vmul.f32 %v1760, %v1762
      %v1765 = vmul.f32 %v1761, %v1763
      %v1766 = vpack.c.bf16 %v1761, %v1760
      %v1767 = vld [vmem:[%s7] sm:$0xf]
      %v1768 = vld [vmem:[%s7 + $0x4] sm:$0xf]
      %v1769 = vld [vmem:[%s7 + $0x8] sm:$0xf]
      %v1770 = vld [vmem:[%s7 + $0xc] sm:$0xf]
      %v1775 = vunpack.c.l.b16 %v1767
      %v1776 = vunpack.c.l.b16 %v1768
      %v1777 = vunpack.c.l.b16 %v1769
      %v1778 = vunpack.c.l.b16 %v1770
      %v1779 = vpack.c.b16 %v1776, %v1775
      %v1780 = vpack.c.b16 %v1778, %v1777
      %v1784 = vsel %vm367, %v1766, 0
      %1786 = vmatprep.subr.bf16.mxu0 0
      %1787 = vmatpush1.bf16.msra.mxu0 %v1779
      %1788 = vmatprep.subr.bf16.mxu0 0
      %1789 = vmatpush1.bf16.msra.mxu0 %v1780
      %1790 = vmatprep.subr.bf16.mxu0 0
      %1791 = vmatpush1.bf16.msra.mxu0 0
      %1792 = vmatprep.subr.bf16.mxu0 0
      %1793 = vmatpush1.bf16.msra.mxu0 0
      %1794 = vmatprep.subr.bf16.mxu0 0
      %1795 = vmatpush1.bf16.msra.mxu0 0
      %1796 = vmatprep.subr.bf16.mxu0 0
      %1797 = vmatpush1.bf16.msra.mxu0 0
      %1798 = vmatprep.subr.bf16.mxu0 0
      %1799 = vmatpush1.bf16.msra.mxu0 0
      %1800 = vmatprep.subr.bf16.mxu0 0
      %1801 = vmatpush1.bf16.msra.mxu0 0
      %1802 = vmatprep.subr.bf16.mxu0 0
      %1803 = vmatpush1.bf16.msra.mxu0 0
      %1804 = vmatprep.subr.bf16.mxu0 0
      %1805 = vmatpush1.bf16.msra.mxu0 0
      %1806 = vmatprep.subr.bf16.mxu0 0
      %1807 = vmatpush1.bf16.msra.mxu0 0
      %1808 = vmatprep.subr.bf16.mxu0 0
      %1809 = vmatpush1.bf16.msra.mxu0 0
      %1810 = vmatprep.subr.bf16.mxu0 0
      %1811 = vmatpush1.bf16.msra.mxu0 0
      %1812 = vmatprep.subr.bf16.mxu0 0
      %1813 = vmatpush1.bf16.msra.mxu0 0
      %1814 = vmatprep.subr.bf16.mxu0 0
      %1815 = vmatpush1.bf16.msra.mxu0 0
      %1816 = vmatprep.subr.bf16.mxu0 0
      %1817 = vmatpush1.bf16.msra.mxu0 0
      %1818 = vmatprep.mubr.bf16.mxu0 0
      %1819 = vmatmul.mubr.bf16.gmra.mrb[0].mxu0 %v1784
      %v1820 = vpop.f32.mrb[0].mxu0
      %v1821 = vadd.f32 0.0, %v1820
      %v1822 = vpop.f32.mrb[0].mxu0
      %v1823 = vpop.f32.mrb[0].mxu0
      %v1824 = vadd.f32 0.0, %v1823
      %v1825 = vpop.f32.mrb[0].mxu0
      %1826 = vdwg.mxu0
      %1829 = vrot.lane.b32.xlu0 %v1762, 96
      %v1830 = vpop.permute.xlu0 %1829
      %1831 = vrot.lane.b32.xlu0 %v1763, 96
      %v1832 = vpop.permute.xlu0 %1831
      %v1835 = vmul.f32 %v1821, %v1830
      %v1836 = vmul.f32 %v1824, %v1832
      %v1837 = vadd.f32 %v1764, %v1835
      %v1838 = vadd.f32 %v1765, %v1836
      %v1839 = vpack.c.bf16 %v1838, %v1837
      %1840 = vxpose.xlu0.c.b16.start [1/8] %v1839, 128
      %1841 = vxpose.xlu0.c.b16.cont [2/8] 0, 128
      %1842 = vxpose.xlu0.c.b16.cont [3/8] 0, 128
      %1843 = vxpose.xlu0.c.b16.cont [4/8] 0, 128
      %1844 = vxpose.xlu0.c.b16.cont [5/8] 0, 128
      %1845 = vxpose.xlu0.c.b16.cont [6/8] 0, 128
      %1846 = vxpose.xlu0.c.b16.cont [7/8] 0, 128
      %1847 = vxpose.xlu0.c.b16.end [8/8] 0, 128
      %v1848 = vpop.trf.xlu0
      %v1849 = vpop.trf.xlu0
      %v1850 = vpop.trf.xlu0
      %v1851 = vpop.trf.xlu0
      %v1852 = vpop.trf.xlu0
      %v1853 = vpop.trf.xlu0
      %v1854 = vpop.trf.xlu0
      %v1855 = vpop.trf.xlu0
      %vm1856 = vcmask 97280
      %v1858 = vsel %vm1856, %v1848, 0
      %v1861 = vsel %vm1856, %v1849, 0
      %v1864 = vsel %vm872, %v1723, 0
      %v1867 = vsel %vm872, %v1724, 0
      %1869 = vmatprep.subr.bf16.mxu0 %v1867
      %1870 = vmatpush1.bf16.msra.mxu0 %v1864
      %1871 = vmatprep.subr.bf16.mxu0 0
      %1872 = vmatpush1.bf16.msra.mxu0 0
      %1873 = vmatprep.subr.bf16.mxu0 0
      %1874 = vmatpush1.bf16.msra.mxu0 0
      %1875 = vmatprep.subr.bf16.mxu0 0
      %1876 = vmatpush1.bf16.msra.mxu0 0
      %1877 = vmatprep.subr.bf16.mxu0 0
      %1878 = vmatpush1.bf16.msra.mxu0 0
      %1879 = vmatprep.subr.bf16.mxu0 0
      %1880 = vmatpush1.bf16.msra.mxu0 0
      %1881 = vmatprep.subr.bf16.mxu0 0
      %1882 = vmatpush1.bf16.msra.mxu0 0
      %1883 = vmatprep.subr.bf16.mxu0 0
      %1884 = vmatpush1.bf16.msra.mxu0 0
      %1885 = vmatprep.subr.bf16.mxu0 0
      %1886 = vmatpush1.bf16.msra.mxu0 0
      %1887 = vmatprep.subr.bf16.mxu0 0
      %1888 = vmatpush1.bf16.msra.mxu0 0
      %1889 = vmatprep.subr.bf16.mxu0 0
      %1890 = vmatpush1.bf16.msra.mxu0 0
      %1891 = vmatprep.subr.bf16.mxu0 0
      %1892 = vmatpush1.bf16.msra.mxu0 0
      %1893 = vmatprep.subr.bf16.mxu0 0
      %1894 = vmatpush1.bf16.msra.mxu0 0
      %1895 = vmatprep.subr.bf16.mxu0 0
      %1896 = vmatpush1.bf16.msra.mxu0 0
      %1897 = vmatprep.subr.bf16.mxu0 0
      %1898 = vmatpush1.bf16.msra.mxu0 0
      %1899 = vmatprep.subr.bf16.mxu0 0
      %1900 = vmatpush1.bf16.msra.mxu0 0
      %1901 = vmatprep.mubr.bf16.mxu0 0
      %1902 = vmatmul.mubr.bf16.gmra.mrb[0].mxu0 %v1858
      %v1903 = vpop.f32.mrb[0].mxu0
      %v1904 = vadd.f32 0.0, %v1903
      %v1905 = vpop.f32.mrb[0].mxu0
      %v1906 = vadd.f32 0.0, %v1905
      %v1907 = vpop.f32.mrb[0].mxu0
      %v1908 = vadd.f32 0.0, %v1907
      %v1909 = vpop.f32.mrb[0].mxu0
      %v1910 = vadd.f32 0.0, %v1909
      %1911 = vmatprep.mubr.bf16.mxu0 0
      %1912 = vmatmul.mubr.bf16.gmra.mrb[0].mxu0 %v1861
      %v1913 = vpop.f32.mrb[0].mxu0
      %v1914 = vadd.f32 0.0, %v1913
      %v1915 = vpop.f32.mrb[0].mxu0
      %v1916 = vadd.f32 0.0, %v1915
      %v1917 = vpop.f32.mrb[0].mxu0
      %v1918 = vadd.f32 0.0, %v1917
      %v1919 = vpop.f32.mrb[0].mxu0
      %v1920 = vadd.f32 0.0, %v1919
      %1921 = vdwg.mxu0
      %v1922 = vmul.f32 %v1904, 0.083333336
      %v1923 = vmul.f32 %v1906, 0.083333336
      %v1924 = vmul.f32 %v1908, 0.083333336
      %v1925 = vmul.f32 %v1910, 0.083333336
      %v1926 = vmul.f32 %v1914, 0.083333336
      %v1927 = vmul.f32 %v1916, 0.083333336
      %v1928 = vmul.f32 %v1918, 0.083333336
      %v1929 = vmul.f32 %v1920, 0.083333336
      %1930 = vst [vmem:[%s345] sm:$0xff] %v1922
      %1931 = vst [vmem:[%s345 + $0x8] sm:$0xff] %v1923
      %1932 = vst [vmem:[%s345 + $0x10] sm:$0xff] %v1924
      %1933 = vst [vmem:[%s345 + $0x18] sm:$0xff] %v1925
      %1934 = vst [vmem:[%s345 + $0x20] sm:$0xff] %v1926
      %1935 = vst [vmem:[%s345 + $0x28] sm:$0xff] %v1927
      %1936 = vst [vmem:[%s345 + $0x30] sm:$0xff] %v1928
      %1937 = vst [vmem:[%s345 + $0x38] sm:$0xff] %v1929
      %p1938 = scmp.lt.s32.totalorder %s21, 1
      %s1939 = scalar_select %p1938, %s21, 1
      %s1940 = smul.addr %s1939, 6
      %s1941 = smul.addr %s1940, 4
      %s1942 = scalar_lea.vmem %s8, %s1941
      %p1943 = scmp.lt.s32.totalorder %s21, 1
      %s1944 = scalar_select %p1943, %s21, 1
      %s1945 = smul.addr %s1944, 8
      %s1946 = smul.addr %s1945, 8
      %s1947 = scalar_lea.vmem %s9, %s1946
      // Predicated region
      $region53: #{mossformer_m2_forward.7} parent=51 // pred_check
        %p1948 = pneg %p212
      $region54: #{mossformer_m2_forward.7} parent=51 // pred_check_branch
        %1950 = sbr.rel (%p1948) target = $region56
      $region55: #{mossformer_m2_forward.7} parent=51 // pred_region
        _
      $region56: #{mossformer_m2_forward.7} parent=51 // pred_fallthru
        _
      // Predicated region
      $region57: #{mossformer_m2_forward.7} parent=51 // pred_check
        %p1951 = pneg %p238
      $region58: #{mossformer_m2_forward.7} parent=51 // pred_check_branch
        %1953 = sbr.rel (%p1951) target = $region60
      $region59: #{mossformer_m2_forward.7} parent=51 // pred_region
        _
      $region60: #{mossformer_m2_forward.7} parent=51 // pred_fallthru
        _
    $region52: #{mossformer_m2_forward.7} parent=5 // pred_fallthru
      _
    %p1954 = scmp.le.s32.totalorder 2, %s16
    // Predicated region
    $region61: #{mossformer_m2_forward.7} parent=5 // pred_check
      %p1955 = pneg %p1954
    $region62: #{mossformer_m2_forward.7} parent=5 // pred_check_branch
      %1957 = sbr.rel (%p1955) target = $region64
    $region63: #{mossformer_m2_forward.7} parent=5 // pred_region
      %s1958 = ssub.s32 %s16, 2
      // Predicated region
      $region65: #{mossformer_m2_forward.7} parent=63 // pred_check
        %p1959 = pneg %p218
      $region66: #{mossformer_m2_forward.7} parent=63 // pred_check_branch
        %1961 = sbr.rel (%p1959) target = $region68
      $region67: #{mossformer_m2_forward.7} parent=63 // pred_region
        %p1962 = scmp.lt.s32.totalorder %s22, 1
        %s1963 = scalar_select %p1962, %s22, 1
        %s1964 = smul.addr %s1963, 6
        %s1965 = smul.addr %s1964, 4
        %s1966 = scalar_lea.vmem %s8, %s1965
      $region68: #{mossformer_m2_forward.7} parent=63 // pred_fallthru
        _
      // Predicated region
      $region69: #{mossformer_m2_forward.7} parent=63 // pred_check
        %p1967 = pneg %p244
      $region70: #{mossformer_m2_forward.7} parent=63 // pred_check_branch
        %1969 = sbr.rel (%p1967) target = $region72
      $region71: #{mossformer_m2_forward.7} parent=63 // pred_region
        %p1970 = scmp.lt.s32.totalorder %s22, 1
        %s1971 = scalar_select %p1970, %s22, 1
        %s1972 = smul.addr %s1971, 8
        %s1973 = smul.addr %s1972, 8
        %s1974 = scalar_lea.vmem %s9, %s1973
      $region72: #{mossformer_m2_forward.7} parent=63 // pred_fallthru
        _
    $region64: #{mossformer_m2_forward.7} parent=5 // pred_fallthru
      _
  $region6: #{mossformer_m2_forward.7} parent=0 // loop_footer
    %s20 = sadd.s32 1, %s16
  $region7: #{mossformer_m2_forward.7} parent=0 // loop_footer_branch
    %15 = sbr.rel target = $region3
  $region8: #{mossformer_m2_forward.7} parent=0 // loop_exit
    _

</llo_original>
